<compile_context>
chip_gen: v7x
topology: tpu7x:2x2x1
jax: 0.10.0
libtpu: 0.0.40
codegen_flags: <defaults>
</compile_context>

<pallas_src>
import functools

import jax
import jax.numpy as jnp
from jax.experimental import pallas as pl
from jax.experimental.pallas import tpu as pltpu


def _round_up(v, m):
    return (v + m - 1) // m * m


def _pick_vmem_limit():
    """Generation-aware scoped-VMEM budget (v5e/v6e: 128 MiB phys, v7x: 64 MiB)."""
    cap = None
    try:
        cap = getattr(pltpu.get_tpu_info(), "vmem_capacity_bytes", None)
    except Exception:
        cap = None
    if cap is not None and cap >= 96 * 1024 * 1024:
        return 100 * 1024 * 1024      # v5e / v6e: plenty of headroom under 128 MiB
    return 48 * 1024 * 1024           # v7x (or unknown): stay well under 64 MiB


_VMEM_LIMIT = _pick_vmem_limit()


def _pick_m_tiling(m, max_tile=512):
    """(tm, Mp): Mp % tm == 0, tm % 8 == 0; prefer >=2 tiles so both v7x TCs work."""
    mp = _round_up(m, 8)
    if mp <= 8:
        return mp, mp
    tm = min(_round_up(mp // 2, 8), max_tile)
    mp = _round_up(mp, tm)
    return tm, mp


def _pick_seq_tile(seq, target=512):
    if seq % 8 != 0:
        return seq                      # full-dim block (exempt from 8-alignment)
    t = min((target // 8) * 8, seq)
    while t >= 8:
        if seq % t == 0:
            return t
        t -= 8
    return seq


# ----------------------------------------------------------------------------
# Kernel 1: single-pass matmul + bias (+ ReLU) — both conv layers (im2col form)
# ----------------------------------------------------------------------------
def _matmul_bias_act_kernel(x_ref, w_ref, b_ref, o_ref, *, apply_relu):
    out = jnp.dot(x_ref[...], w_ref[...], preferred_element_type=jnp.float32)
    out = out + b_ref[...]
    if apply_relu:
        out = jnp.maximum(out, 0.0)
    o_ref[...] = out.astype(o_ref.dtype)


def fused_matmul_bias_relu(x, w, b, *, apply_relu=True, out_dtype=jnp.bfloat16):
    """relu?( x @ w + b ).  bf16 MXU feed, f32 accumulate, bf16 output.

    K is kept as one full-dim block (no K grid axis / no zero-padding),
    N is kept unpadded (full-dim block), only M is tiled (>=2 tiles if possible).
    """
    M, K = x.shape
    N = w.shape[1]
    tm, Mp = _pick_m_tiling(M)

    xb = x.astype(jnp.bfloat16)
    if Mp != M:
        xb = jnp.pad(xb, ((0, Mp - M), (0, 0)))
    wb = w.astype(jnp.bfloat16)
    bb = b.reshape(1, N).astype(jnp.float32)

    out_itemsize = jnp.dtype(out_dtype).itemsize
    cost = pl.CostEstimate(
        flops=2 * Mp * K * N,
        transcendentals=0,
        bytes_accessed=Mp * K * 2 + K * N * 2 + N * 4 + Mp * N * out_itemsize,
    )

    out = pl.pallas_call(
        functools.partial(_matmul_bias_act_kernel, apply_relu=apply_relu),
        out_shape=jax.ShapeDtypeStruct((Mp, N), out_dtype),
        grid=(Mp // tm,),
        in_specs=[
            pl.BlockSpec((tm, K), lambda i: (i, 0)),
            pl.BlockSpec((K, N), lambda i: (0, 0)),
            pl.BlockSpec((1, N), lambda i: (0, 0)),
        ],
        out_specs=pl.BlockSpec((tm, N), lambda i: (i, 0)),
        compiler_params=pltpu.CompilerParams(
            dimension_semantics=("parallel",),
            vmem_limit_bytes=_VMEM_LIMIT),
        cost_estimate=cost,
    )(xb, wb, bb)
    return out[:M] if Mp != M else out


# ----------------------------------------------------------------------------
# Kernel 2: fused tail — ft_fc (Linear+ReLU) -> mean over seq -> classifier
# ----------------------------------------------------------------------------
def _ft_mean_classifier_kernel(x_ref, ftw_ref, ftb_ref, clsw_ref, clsb_ref,
                               o_ref, acc_ref, *, seq_total):
    s = pl.program_id(1)

    @pl.when(s == 0)
    def _():
        acc_ref[...] = jnp.zeros_like(acc_ref)

    h = jnp.dot(x_ref[0], ftw_ref[...],
                preferred_element_type=jnp.float32)                 # (tseq, H)
    h = jnp.maximum(h + ftb_ref[...], 0.0)                          # ft_fc ReLU
    # Seq reduction on the (idle) MXU via a ones-vector matmul instead of a
    # full (tseq,H)->(1,H) XLU reduce.
    ones = jnp.ones((1, h.shape[0]), dtype=jnp.float32)
    acc_ref[...] += jnp.dot(ones, h, preferred_element_type=jnp.float32)

    @pl.when(s == pl.num_programs(1) - 1)
    def _():
        mean = acc_ref[...] * (1.0 / seq_total)                     # (1, H)
        res = jnp.dot(mean.astype(clsw_ref.dtype), clsw_ref[...],
                      preferred_element_type=jnp.float32) + clsb_ref[...]
        o_ref[...] = res[None].astype(o_ref.dtype)


def ft_mean_classifier(x, ft_w, ft_b, cls_w, cls_b):
    """out = ( relu(x @ ft_w + ft_b) ).mean(axis=1) @ cls_w + cls_b, one kernel."""
    B, S, F = x.shape
    Hdim = ft_w.shape[1]
    N = cls_w.shape[1]
    tseq = _pick_seq_tile(S)

    xb = x.astype(jnp.bfloat16)                                     # F unpadded
    ftw = ft_w.astype(jnp.bfloat16)
    ftb = ft_b.reshape(1, Hdim).astype(jnp.float32)
    clsw = cls_w.astype(jnp.bfloat16)                               # N unpadded
    clsb = cls_b.reshape(1, N).astype(jnp.float32)

    cost = pl.CostEstimate(
        flops=2 * B * S * F * Hdim + 2 * B * S * Hdim + 2 * B * Hdim * N,
        transcendentals=0,
        bytes_accessed=(B * S * F * 2 + F * Hdim * 2 + Hdim * 4
                        + Hdim * N * 2 + N * 4 + B * N * 4),
    )

    # TODO(synk): mark the resident weight specs (ftw/ftb/clsw/clsb, constant
    # index_map) with pipeline_mode=pl.Buffered(1) to drop their second VMEM
    # buffer once single-buffer pipeline_mode is robust on this JAX version.
    kernel = functools.partial(_ft_mean_classifier_kernel, seq_total=S)
    out = pl.pallas_call(
        kernel,
        out_shape=jax.ShapeDtypeStruct((B, 1, N), jnp.float32),
        grid=(B, S // tseq),
        in_specs=[
            pl.BlockSpec((1, tseq, F), lambda b, s: (b, s, 0)),
            pl.BlockSpec((F, Hdim), lambda b, s: (0, 0)),
            pl.BlockSpec((1, Hdim), lambda b, s: (0, 0)),
            pl.BlockSpec((Hdim, N), lambda b, s: (0, 0)),
            pl.BlockSpec((1, N), lambda b, s: (0, 0)),
        ],
        out_specs=pl.BlockSpec((1, 1, N), lambda b, s: (b, 0, 0)),
        scratch_shapes=[pltpu.VMEM((1, Hdim), jnp.float32)],
        compiler_params=pltpu.CompilerParams(
            dimension_semantics=("parallel", "arbitrary"),
            vmem_limit_bytes=_VMEM_LIMIT),
        cost_estimate=cost,
    )(xb, ftw, ftb, clsw, clsb)
    return out.reshape(B, N)


# ----------------------------------------------------------------------------
# Glue: im2col patch extraction (channels-last, bf16) + BN fold
# ----------------------------------------------------------------------------
def _im2col_3d_ndhwc(x, kernel, stride):
    """x: (B, D, H, W, C) -> patches (B*Do*Ho*Wo, kd*kh*kw*C), (dz,dy,dx,c) order."""
    B, D, H, W, C = x.shape
    kd, kh, kw = kernel
    sd, sh, sw = stride
    Do = (D - kd) // sd + 1
    Ho = (H - kh) // sh + 1
    Wo = (W - kw) // sw + 1
    # TODO(synk): fold this gather into the conv kernel (manual DMA of the
    # kd*kh*kw shifted windows from an HBM ref with memory_space=pl.ANY) to
    # avoid materializing the inflated patch matrix in HBM at all.  Interim
    # mitigation: x is already bf16 here, so the patch matrix is emitted in
    # bf16 directly (half the bytes, no extra pad/cast pass).
    pats = []
    for dz in range(kd):
        for dy in range(kh):
            for dx in range(kw):
                pats.append(x[:, dz:dz + sd * Do:sd,
                              dy:dy + sh * Ho:sh,
                              dx:dx + sw * Wo:sw, :])        # (B,Do,Ho,Wo,C)
    p = jnp.stack(pats, axis=4)                               # (B,Do,Ho,Wo,k^3,C)
    p = p.reshape(B * Do * Ho * Wo, kd * kh * kw * C)
    return p, (Do, Ho, Wo)


def conv3d_bn_relu_ndhwc(x, w, b, gamma, beta, running_mean, running_var,
                         stride, eps=1e-5):
    """Conv3d (no padding) -> BatchNorm3d (eval, running stats) -> ReLU, NDHWC, bf16."""
    Cout, Cin, kd, kh, kw = w.shape
    x = x.astype(jnp.bfloat16)                     # cast the SMALL tensor, pre-im2col
    patches, (Do, Ho, Wo) = _im2col_3d_ndhwc(x, (kd, kh, kw), stride)
    # weight columns in (dz, dy, dx, cin) order to match the patch layout
    wmat = w.transpose(2, 3, 4, 1, 0).reshape(kd * kh * kw * Cin, Cout)
    inv_std = 1.0 / jnp.sqrt(running_var + eps)
    scale = gamma * inv_std                        # (Cout,)
    shift = beta + scale * (b - running_mean)      # (Cout,)
    wmat = wmat * scale[None, :]                   # fold BN scale into weights
    out = fused_matmul_bias_relu(patches, wmat, shift, apply_relu=True,
                                 out_dtype=jnp.bfloat16)
    B = x.shape[0]
    return out.reshape(B, Do, Ho, Wo, Cout)        # stays channels-last, bf16


# ----------------------------------------------------------------------------
# CNN3D.video_forward
# ----------------------------------------------------------------------------
def cnn3d_forward(x_3d, att, params):
    del att  # video_forward never uses the attention input
    # NCDHW -> NDHWC once; both convs run channels-last (no per-layer relayout).
    x = x_3d.transpose(0, 2, 3, 4, 1)

    # conv1 -> bn1 -> relu -> drop (Dropout3d is identity in eval mode)
    x = conv3d_bn_relu_ndhwc(x, params["conv1_w"], params["conv1_b"],
                             params["bn1_gamma"], params["bn1_beta"],
                             params["bn1_mean"], params["bn1_var"],
                             stride=(2, 2, 2))
    # conv2 -> bn2 -> relu -> drop
    # TODO(synk): at these toy sizes conv2's (16 x 864 x 48) matmul could be
    # folded into the ft kernel's prologue to cut launch/glue overhead.
    x = conv3d_bn_relu_ndhwc(x, params["conv2_w"], params["conv2_b"],
                             params["bn2_gamma"], params["bn2_beta"],
                             params["bn2_mean"], params["bn2_var"],
                             stride=(2, 2, 2))

    B, Fr, Hh, Ww, C = x.shape
    # PyTorch: x.view(B, C, F, -1).view(B, C*F, -1) on NCDHW activations
    x = x.transpose(0, 4, 1, 2, 3).reshape(B, C * Fr, Hh * Ww)

    # ft_fc (Linear + ReLU) -> [TTT model] -> mean(dim=1) -> classifier, fused.
    # TODO(synk): TTTForCausalLM (self.ttt_model) source is not provided in the
    # module; its 2048-dim logits are approximated by identity on the hidden states.
    out = ft_mean_classifier(x, params["ft_w"], params["ft_b"],
                             params["cls_w"], params["cls_b"])
    return out, out


# ----------------------------------------------------------------------------
# Pure-JAX f32 reference (same identity stand-in for the TTT model)
# ----------------------------------------------------------------------------
def reference_forward(x_3d, params, eps=1e-5):
    hi = jax.lax.Precision.HIGHEST

    def conv_bn_relu(x, w, b, gamma, beta, mean, var, stride):
        y = jax.lax.conv_general_dilated(
            x, w, window_strides=stride, padding="VALID",
            dimension_numbers=("NCDHW", "OIDHW", "NCDHW"), precision=hi)
        y = y + b.reshape(1, -1, 1, 1, 1)
        inv = 1.0 / jnp.sqrt(var + eps)
        y = (y - mean.reshape(1, -1, 1, 1, 1)) * (gamma * inv).reshape(1, -1, 1, 1, 1)
        y = y + beta.reshape(1, -1, 1, 1, 1)
        return jnp.maximum(y, 0.0)

    x = conv_bn_relu(x_3d, params["conv1_w"], params["conv1_b"],
                     params["bn1_gamma"], params["bn1_beta"],
                     params["bn1_mean"], params["bn1_var"], (2, 2, 2))
    x = conv_bn_relu(x, params["conv2_w"], params["conv2_b"],
                     params["bn2_gamma"], params["bn2_beta"],
                     params["bn2_mean"], params["bn2_var"], (2, 2, 2))
    B, C, Fr, Hh, Ww = x.shape
    x = x.reshape(B, C * Fr, Hh * Ww)
    h = jnp.maximum(jnp.matmul(x, params["ft_w"], precision=hi) + params["ft_b"], 0.0)
    m = h.mean(axis=1)
    return jnp.matmul(m, params["cls_w"], precision=hi) + params["cls_b"]


# ----------------------------------------------------------------------------
# Main: deterministic params + small example input
# ----------------------------------------------------------------------------
if __name__ == "__main__":
    # Small config: t_dim=16, img_x=16, img_y=16, num_classes=10, batch=2.
    # conv1 (k=5,s=2): 16 -> 6 ; conv2 (k=3,s=2): 6 -> 2  => conv2_outshape=(2,2,2)
    B, T, IX, IY = 2, 16, 16, 16
    CH1, CH2 = 32, 48
    NUM_CLASSES = 10
    FT_IN = 2 * 2            # conv2_outshape[1] * conv2_outshape[2]
    FT_OUT = 2048

    key = jax.random.PRNGKey(0)
    ks = jax.random.split(key, 16)
    f32 = jnp.float32
    params = {
        "conv1_w": 0.05 * jax.random.normal(ks[0], (CH1, 3, 5, 5, 5), f32),
        "conv1_b": 0.05 * jax.random.normal(ks[1], (CH1,), f32),
        "bn1_gamma": 1.0 + 0.05 * jax.random.normal(ks[2], (CH1,), f32),
        "bn1_beta": 0.05 * jax.random.normal(ks[3], (CH1,), f32),
        "bn1_mean": jnp.zeros((CH1,), f32),
        "bn1_var": jnp.ones((CH1,), f32),
        "conv2_w": 0.05 * jax.random.normal(ks[4], (CH2, CH1, 3, 3, 3), f32),
        "conv2_b": 0.05 * jax.random.normal(ks[5], (CH2,), f32),
        "bn2_gamma": 1.0 + 0.05 * jax.random.normal(ks[6], (CH2,), f32),
        "bn2_beta": 0.05 * jax.random.normal(ks[7], (CH2,), f32),
        "bn2_mean": jnp.zeros((CH2,), f32),
        "bn2_var": jnp.ones((CH2,), f32),
        "ft_w": 0.05 * jax.random.normal(ks[8], (FT_IN, FT_OUT), f32),
        "ft_b": 0.05 * jax.random.normal(ks[9], (FT_OUT,), f32),
        "cls_w": 0.05 * jax.random.normal(ks[10], (FT_OUT, NUM_CLASSES), f32),
        "cls_b": 0.05 * jax.random.normal(ks[11], (NUM_CLASSES,), f32),
    }

    x_3d = jax.random.normal(ks[12], (B, 3, T, IX, IY), f32)   # NCDHW
    att = jax.random.normal(ks[13], (B, T), f32)               # unused in video_forward

    fwd = jax.jit(functools.partial(cnn3d_forward, params=params))
    out_a, out_b = fwd(x_3d, att)
    jax.block_until_ready(out_a)
    assert out_a.shape == (B, NUM_CLASSES)
    assert jnp.all(jnp.isfinite(out_a))

    # Tolerance check vs a pure-JAX f32 reference (bf16 MXU feed => small drift).
    ref = reference_forward(x_3d, params)
    assert jnp.allclose(out_a, ref, rtol=5e-2, atol=5e-2), (
        f"max abs err {float(jnp.max(jnp.abs(out_a - ref)))}")

    print("KERNEL_OK")
</pallas_src>

<mosaic_0001>
module attributes {stable_mosaic.version = 11 : i64} {
  func.func @_matmul_bias_act_kernel(%arg0: i32, %arg1: memref<216x375xbf16, #tpu.memory_space<vmem>>, %arg2: memref<375x32xbf16, #tpu.memory_space<vmem>>, %arg3: memref<1x32xf32, #tpu.memory_space<vmem>>, %arg4: memref<216x32xbf16, #tpu.memory_space<vmem>>) attributes {dimension_semantics = [#tpu.dimension_semantics<parallel>], iteration_bounds = array<i64: 2>, scalar_prefetch = 0 : i64, scratch_operands = 0 : i64, tpu.core_type = #tpu.core_type<tc>, window_params = [{transform_indices = @transform_0, window_bounds = array<i64: 216, 375>}, {pipeline_mode = #tpu.pipeline_mode<synchronous>, transform_indices = @transform_1, window_bounds = array<i64: 375, 32>}, {pipeline_mode = #tpu.pipeline_mode<synchronous>, transform_indices = @transform_2, window_bounds = array<i64: 1, 32>}, {transform_indices = @transform_3, window_bounds = array<i64: 216, 32>}]} {
    %c0 = arith.constant 0 : index
    %c0_0 = arith.constant 0 : index
    %0 = vector.load %arg1[%c0, %c0_0] : memref<216x375xbf16, #tpu.memory_space<vmem>>, vector<216x375xbf16>
    %c0_1 = arith.constant 0 : index
    %c0_2 = arith.constant 0 : index
    %1 = vector.load %arg2[%c0_1, %c0_2] : memref<375x32xbf16, #tpu.memory_space<vmem>>, vector<375x32xbf16>
    %cst = arith.constant dense<0.000000e+00> : vector<216x32xf32>
    %2 = tpu.matmul %0, %1, %cst {dimension_numbers = #tpu.dot_dimension_numbers<[1], [0], [0], [1], [0, 0, 1, 1], [], []>} : vector<216x375xbf16>, vector<375x32xbf16>, vector<216x32xf32> -> vector<216x32xf32>
    %c0_3 = arith.constant 0 : index
    %c0_4 = arith.constant 0 : index
    %3 = vector.load %arg3[%c0_3, %c0_4] : memref<1x32xf32, #tpu.memory_space<vmem>>, vector<1x32xf32>
    %4 = vector.broadcast %3 : vector<1x32xf32> to vector<216x32xf32>
    %5 = arith.addf %2, %4 : vector<216x32xf32>
    %cst_5 = arith.constant 0.000000e+00 : f32
    %6 = vector.broadcast %cst_5 : f32 to vector<216x32xf32>
    %7 = arith.maximumf %5, %6 : vector<216x32xf32>
    %8 = arith.truncf %7 : vector<216x32xf32> to vector<216x32xbf16>
    %c0_6 = arith.constant 0 : index
    %c0_7 = arith.constant 0 : index
    %9 = vector.load %arg4[%c0_6, %c0_7] : memref<216x32xbf16, #tpu.memory_space<vmem>>, vector<216x32xbf16>
    tpu.vector_store %arg4[%c0_6, %c0_7], %8 {strides = array<i32>} : memref<216x32xbf16, #tpu.memory_space<vmem>>, vector<216x32xbf16>,
    return
  }
  func.func @transform_0(%arg0: i32) -> (i32, i32) {
    %c0_i32 = arith.constant 0 : i32
    %c0_i32_0 = arith.constant 0 : i32
    return %arg0, %c0_i32 : i32, i32
  }
  func.func @transform_1(%arg0: i32) -> (i32, i32) {
    %c0_i32 = arith.constant 0 : i32
    %c0_i32_0 = arith.constant 0 : i32
    %c0_i32_1 = arith.constant 0 : i32
    return %c0_i32, %c0_i32_0 : i32, i32
  }
  func.func @transform_2(%arg0: i32) -> (i32, i32) {
    %c0_i32 = arith.constant 0 : i32
    %c0_i32_0 = arith.constant 0 : i32
    %c0_i32_1 = arith.constant 0 : i32
    return %c0_i32, %c0_i32_0 : i32, i32
  }
  func.func @transform_3(%arg0: i32) -> (i32, i32) {
    %c0_i32 = arith.constant 0 : i32
    %c0_i32_0 = arith.constant 0 : i32
    return %arg0, %c0_i32 : i32, i32
  }
}

module attributes {stable_mosaic.version = 11 : i64} {
  func.func @_matmul_bias_act_kernel(%arg0: i32, %arg1: memref<8x864xbf16, #tpu.memory_space<vmem>>, %arg2: memref<864x48xbf16, #tpu.memory_space<vmem>>, %arg3: memref<1x48xf32, #tpu.memory_space<vmem>>, %arg4: memref<8x48xbf16, #tpu.memory_space<vmem>>) attributes {dimension_semantics = [#tpu.dimension_semantics<parallel>], iteration_bounds = array<i64: 2>, scalar_prefetch = 0 : i64, scratch_operands = 0 : i64, tpu.core_type = #tpu.core_type<tc>, window_params = [{transform_indices = @transform_0, window_bounds = array<i64: 8, 864>}, {pipeline_mode = #tpu.pipeline_mode<synchronous>, transform_indices = @transform_1, window_bounds = array<i64: 864, 48>}, {pipeline_mode = #tpu.pipeline_mode<synchronous>, transform_indices = @transform_2, window_bounds = array<i64: 1, 48>}, {transform_indices = @transform_3, window_bounds = array<i64: 8, 48>}]} {
    %c0 = arith.constant 0 : index
    %c0_0 = arith.constant 0 : index
    %0 = vector.load %arg1[%c0, %c0_0] : memref<8x864xbf16, #tpu.memory_space<vmem>>, vector<8x864xbf16>
    %c0_1 = arith.constant 0 : index
    %c0_2 = arith.constant 0 : index
    %1 = vector.load %arg2[%c0_1, %c0_2] : memref<864x48xbf16, #tpu.memory_space<vmem>>, vector<864x48xbf16>
    %cst = arith.constant dense<0.000000e+00> : vector<8x48xf32>
    %2 = tpu.matmul %0, %1, %cst {dimension_numbers = #tpu.dot_dimension_numbers<[1], [0], [0], [1], [0, 0, 1, 1], [], []>} : vector<8x864xbf16>, vector<864x48xbf16>, vector<8x48xf32> -> vector<8x48xf32>
    %c0_3 = arith.constant 0 : index
    %c0_4 = arith.constant 0 : index
    %3 = vector.load %arg3[%c0_3, %c0_4] : memref<1x48xf32, #tpu.memory_space<vmem>>, vector<1x48xf32>
    %4 = vector.broadcast %3 : vector<1x48xf32> to vector<8x48xf32>
    %5 = arith.addf %2, %4 : vector<8x48xf32>
    %cst_5 = arith.constant 0.000000e+00 : f32
    %6 = vector.broadcast %cst_5 : f32 to vector<8x48xf32>
    %7 = arith.maximumf %5, %6 : vector<8x48xf32>
    %8 = arith.truncf %7 : vector<8x48xf32> to vector<8x48xbf16>
    %c0_6 = arith.constant 0 : index
    %c0_7 = arith.constant 0 : index
    %9 = vector.load %arg4[%c0_6, %c0_7] : memref<8x48xbf16, #tpu.memory_space<vmem>>, vector<8x48xbf16>
    tpu.vector_store %arg4[%c0_6, %c0_7], %8 {strides = array<i32>} : memref<8x48xbf16, #tpu.memory_space<vmem>>, vector<8x48xbf16>,
    return
  }
  func.func @transform_0(%arg0: i32) -> (i32, i32) {
    %c0_i32 = arith.constant 0 : i32
    %c0_i32_0 = arith.constant 0 : i32
    return %arg0, %c0_i32 : i32, i32
  }
  func.func @transform_1(%arg0: i32) -> (i32, i32) {
    %c0_i32 = arith.constant 0 : i32
    %c0_i32_0 = arith.constant 0 : i32
    %c0_i32_1 = arith.constant 0 : i32
    return %c0_i32, %c0_i32_0 : i32, i32
  }
  func.func @transform_2(%arg0: i32) -> (i32, i32) {
    %c0_i32 = arith.constant 0 : i32
    %c0_i32_0 = arith.constant 0 : i32
    %c0_i32_1 = arith.constant 0 : i32
    return %c0_i32, %c0_i32_0 : i32, i32
  }
  func.func @transform_3(%arg0: i32) -> (i32, i32) {
    %c0_i32 = arith.constant 0 : i32
    %c0_i32_0 = arith.constant 0 : i32
    return %arg0, %c0_i32 : i32, i32
  }
}

module attributes {stable_mosaic.version = 11 : i64} {
  func.func @_ft_mean_classifier_kernel(%arg0: i32, %arg1: i32, %arg2: memref<1x96x4xbf16, #tpu.memory_space<vmem>>, %arg3: memref<4x2048xbf16, #tpu.memory_space<vmem>>, %arg4: memref<1x2048xf32, #tpu.memory_space<vmem>>, %arg5: memref<2048x10xbf16, #tpu.memory_space<vmem>>, %arg6: memref<1x10xf32, #tpu.memory_space<vmem>>, %arg7: memref<1x1x10xf32, #tpu.memory_space<vmem>>, %arg8: memref<1x2048xf32, #tpu.memory_space<vmem>>) attributes {dimension_semantics = [#tpu.dimension_semantics<parallel>, #tpu.dimension_semantics<arbitrary>], iteration_bounds = array<i64: 2, 1>, scalar_prefetch = 0 : i64, scratch_operands = 1 : i64, tpu.core_type = #tpu.core_type<tc>, window_params = [{transform_indices = @transform_0, window_bounds = array<i64: 1, 96, 4>}, {pipeline_mode = #tpu.pipeline_mode<synchronous>, transform_indices = @transform_1, window_bounds = array<i64: 4, 2048>}, {pipeline_mode = #tpu.pipeline_mode<synchronous>, transform_indices = @transform_2, window_bounds = array<i64: 1, 2048>}, {pipeline_mode = #tpu.pipeline_mode<synchronous>, transform_indices = @transform_3, window_bounds = array<i64: 2048, 10>}, {pipeline_mode = #tpu.pipeline_mode<synchronous>, transform_indices = @transform_4, window_bounds = array<i64: 1, 10>}, {transform_indices = @transform_5, window_bounds = array<i64: 1, 1, 10>}]} {
    %c0_i32 = arith.constant 0 : i32
    %0 = arith.cmpi eq, %arg1, %c0_i32 : i32
    %1 = arith.extui %0 : i1 to i32
    %c0_i32_0 = arith.constant 0 : i32
    %2 = arith.cmpi ne, %1, %c0_i32_0 : i32
    scf.if %2 {
      %cst_16 = arith.constant 0.000000e+00 : f32
      %20 = vector.broadcast %cst_16 : f32 to vector<1x2048xf32>
      %c0_17 = arith.constant 0 : index
      %c0_18 = arith.constant 0 : index
      %21 = vector.load %arg8[%c0_17, %c0_18] : memref<1x2048xf32, #tpu.memory_space<vmem>>, vector<1x2048xf32>
      tpu.vector_store %arg8[%c0_17, %c0_18], %20 {strides = array<i32>} : memref<1x2048xf32, #tpu.memory_space<vmem>>, vector<1x2048xf32>,
    } else {
    }
    %c0 = arith.constant 0 : index
    %c0_1 = arith.constant 0 : index
    %c0_2 = arith.constant 0 : index
    %3 = vector.load %arg2[%c0, %c0_1, %c0_2] : memref<1x96x4xbf16, #tpu.memory_space<vmem>>, vector<1x96x4xbf16>
    %4 = vector.shape_cast %3 : vector<1x96x4xbf16> to vector<96x4xbf16>
    %c0_3 = arith.constant 0 : index
    %c0_4 = arith.constant 0 : index
    %5 = vector.load %arg3[%c0_3, %c0_4] : memref<4x2048xbf16, #tpu.memory_space<vmem>>, vector<4x2048xbf16>
    %cst = arith.constant dense<0.000000e+00> : vector<96x2048xf32>
    %6 = tpu.matmul %4, %5, %cst {dimension_numbers = #tpu.dot_dimension_numbers<[1], [0], [0], [1], [0, 0, 1, 1], [], []>} : vector<96x4xbf16>, vector<4x2048xbf16>, vector<96x2048xf32> -> vector<96x2048xf32>
    %c0_5 = arith.constant 0 : index
    %c0_6 = arith.constant 0 : index
    %7 = vector.load %arg4[%c0_5, %c0_6] : memref<1x2048xf32, #tpu.memory_space<vmem>>, vector<1x2048xf32>
    %8 = vector.broadcast %7 : vector<1x2048xf32> to vector<96x2048xf32>
    %9 = arith.addf %6, %8 : vector<96x2048xf32>
    %cst_7 = arith.constant 0.000000e+00 : f32
    %10 = vector.broadcast %cst_7 : f32 to vector<96x2048xf32>
    %11 = arith.maximumf %9, %10 : vector<96x2048xf32>
    %cst_8 = arith.constant 1.000000e+00 : f32
    %12 = vector.broadcast %cst_8 : f32 to vector<1x96xf32>
    %c0_9 = arith.constant 0 : index
    %c0_10 = arith.constant 0 : index
    %13 = vector.load %arg8[%c0_9, %c0_10] : memref<1x2048xf32, #tpu.memory_space<vmem>>, vector<1x2048xf32>
    %cst_11 = arith.constant dense<0.000000e+00> : vector<1x2048xf32>
    %14 = tpu.matmul %12, %11, %cst_11 {dimension_numbers = #tpu.dot_dimension_numbers<[1], [0], [0], [1], [0, 0, 1, 1], [], []>} : vector<1x96xf32>, vector<96x2048xf32>, vector<1x2048xf32> -> vector<1x2048xf32>
    %15 = arith.addf %13, %14 : vector<1x2048xf32>
    %c0_12 = arith.constant 0 : index
    %c0_13 = arith.constant 0 : index
    %16 = vector.load %arg8[%c0_12, %c0_13] : memref<1x2048xf32, #tpu.memory_space<vmem>>, vector<1x2048xf32>
    tpu.vector_store %arg8[%c0_12, %c0_13], %15 {strides = array<i32>} : memref<1x2048xf32, #tpu.memory_space<vmem>>, vector<1x2048xf32>,
    %c0_i32_14 = arith.constant 0 : i32
    %17 = arith.cmpi eq, %arg1, %c0_i32_14 : i32
    %18 = arith.extui %17 : i1 to i32
    %c0_i32_15 = arith.constant 0 : i32
    %19 = arith.cmpi ne, %18, %c0_i32_15 : i32
    scf.if %19 {
      %c0_16 = arith.constant 0 : index
      %c0_17 = arith.constant 0 : index
      %20 = vector.load %arg8[%c0_16, %c0_17] : memref<1x2048xf32, #tpu.memory_space<vmem>>, vector<1x2048xf32>
      %cst_18 = arith.constant 0.010416667 : f32
      %21 = vector.broadcast %cst_18 : f32 to vector<1x2048xf32>
      %22 = arith.mulf %20, %21 : vector<1x2048xf32>
      %23 = arith.truncf %22 : vector<1x2048xf32> to vector<1x2048xbf16>
      %c0_19 = arith.constant 0 : index
      %c0_20 = arith.constant 0 : index
      %24 = vector.load %arg5[%c0_19, %c0_20] : memref<2048x10xbf16, #tpu.memory_space<vmem>>, vector<2048x10xbf16>
      %cst_21 = arith.constant dense<0.000000e+00> : vector<1x10xf32>
      %25 = tpu.matmul %23, %24, %cst_21 {dimension_numbers = #tpu.dot_dimension_numbers<[1], [0], [0], [1], [0, 0, 1, 1], [], []>} : vector<1x2048xbf16>, vector<2048x10xbf16>, vector<1x10xf32> -> vector<1x10xf32>
      %c0_22 = arith.constant 0 : index
      %c0_23 = arith.constant 0 : index
      %26 = vector.load %arg6[%c0_22, %c0_23] : memref<1x10xf32, #tpu.memory_space<vmem>>, vector<1x10xf32>
      %27 = arith.addf %25, %26 : vector<1x10xf32>
      %28 = vector.shape_cast %27 : vector<1x10xf32> to vector<1x1x10xf32>
      %c0_24 = arith.constant 0 : index
      %c0_25 = arith.constant 0 : index
      %c0_26 = arith.constant 0 : index
      %29 = vector.load %arg7[%c0_24, %c0_25, %c0_26] : memref<1x1x10xf32, #tpu.memory_space<vmem>>, vector<1x1x10xf32>
      tpu.vector_store %arg7[%c0_24, %c0_25, %c0_26], %28 {strides = array<i32>} : memref<1x1x10xf32, #tpu.memory_space<vmem>>, vector<1x1x10xf32>,
    } else {
    }
    return
  }
  func.func @transform_0(%arg0: i32, %arg1: i32) -> (i32, i32, i32) {
    %c0_i32 = arith.constant 0 : i32
    %c0_i32_0 = arith.constant 0 : i32
    return %arg0, %arg1, %c0_i32 : i32, i32, i32
  }
  func.func @transform_1(%arg0: i32, %arg1: i32) -> (i32, i32) {
    %c0_i32 = arith.constant 0 : i32
    %c0_i32_0 = arith.constant 0 : i32
    %c0_i32_1 = arith.constant 0 : i32
    return %c0_i32, %c0_i32_0 : i32, i32
  }
  func.func @transform_2(%arg0: i32, %arg1: i32) -> (i32, i32) {
    %c0_i32 = arith.constant 0 : i32
    %c0_i32_0 = arith.constant 0 : i32
    %c0_i32_1 = arith.constant 0 : i32
    return %c0_i32, %c0_i32_0 : i32, i32
  }
  func.func @transform_3(%arg0: i32, %arg1: i32) -> (i32, i32) {
    %c0_i32 = arith.constant 0 : i32
    %c0_i32_0 = arith.constant 0 : i32
    %c0_i32_1 = arith.constant 0 : i32
    return %c0_i32, %c0_i32_0 : i32, i32
  }
  func.func @transform_4(%arg0: i32, %arg1: i32) -> (i32, i32) {
    %c0_i32 = arith.constant 0 : i32
    %c0_i32_0 = arith.constant 0 : i32
    %c0_i32_1 = arith.constant 0 : i32
    return %c0_i32, %c0_i32_0 : i32, i32
  }
  func.func @transform_5(%arg0: i32, %arg1: i32) -> (i32, i32, i32) {
    %c0_i32 = arith.constant 0 : i32
    %c0_i32_0 = arith.constant 0 : i32
    %c0_i32_1 = arith.constant 0 : i32
    return %arg0, %c0_i32, %c0_i32_0 : i32, i32, i32
  }
}

</mosaic_0001>

<llo_original>
// kernel: cnn3d_forward.3
$region0: #{cnn3d_forward.3}
  #allocation0 [shape = 'u32[]', space=smem, size = 0x4, offset = 0x4, fixed_abs, tag = 'smem constant byte address 0x4 - core index']
  #allocation1 [shape = 'u32[144,128]{1,0:T(1,128)}', space=vmem, size = 0x12000, scoped, tag = 'internal scratch']
  %s0 = inlined_call_operand.vmem [shape: bf16[432,375], index: 0, kind: input, shape index: {}]
  %s1 = inlined_call_operand.vmem [shape: bf16[375,32], index: 1, kind: input, shape index: {}]
  %s2 = inlined_call_operand.vmem [shape: f32[1,32], index: 2, kind: input, shape index: {}]
  %s3 = inlined_call_operand.vmem [shape: bf16[432,32], index: 3, kind: output, shape index: {}]
  %s4 = sld [smem:[#allocation0]]
  $region45: #{cnn3d_forward.3} parent=0
    _
  %s6 = ssub.s32 1, %s4
  %s7 = scalar_select 0, %s6, %s4
  loop: start=0, step=1, limit=4
  $region2: #{cnn3d_forward.3} parent=0 // loop_pre_header
    _
  $region3: #{cnn3d_forward.3} parent=0 // loop_header
    %s9 = sphi 0, %s13
    %p10 = scmp.ge.s32.totalorder %s9, 4
    %s19 = sphi 0, %s21
    %s22 = sphi 0, %s19
    %s23 = sphi 0, %s22
    %s39 = sphi 0, %s23
    %s43 = sphi 0, %s43
    %s45 = sphi 0, %s43
    %s46 = sphi 0, %s45
    %s60 = sphi 0, %s46
    %s64 = sphi 0, %s64
    %s66 = sphi 0, %s64
    %s67 = sphi 0, %s66
    %s81 = sphi 0, %s67
    %s87 = sphi 0, %s89
    %s90 = sphi 0, %s87
    %s91 = sphi 0, %s90
    %s107 = sphi 0, %s91
  $region4: #{cnn3d_forward.3} parent=0 // loop_header_branch
    %12 = sbr.rel (%p10) target = $region8
  $region5: #{cnn3d_forward.3} parent=0 // loop_body
    %s14 = ssub.s32 %s9, 1
    %s15 = ssub.s32 %s9, 2
    %s16 = sadd.s32 %s9, 1
    %s17 = ssub.s32 %s9, %s16
    %p18 = scmp.eq.s32.totalorder %s17, 0
    %s20 = sadd.s32 %s19, 1
    %s21 = scalar_select %p18, %s19, %s20
    %p24 = pneg %p18
    %p25 = scmp.eq.s32.totalorder %s9, 1
    %p26 = por %p24, %p25
    %p27 = scmp.ne.s32.totalorder %s19, %s22
    %p28 = scmp.eq.s32.totalorder %s9, 0
    %p29 = por %p27, %p28
    %p30 = scmp.ne.s32.totalorder %s19, %s22
    %p31 = scmp.eq.s32.totalorder %s14, 1
    %p32 = por %p30, %p31
    %p33 = scmp.ne.s32.totalorder %s22, %s23
    %p34 = scmp.eq.s32.totalorder %s14, 0
    %p35 = por %p33, %p34
    %p36 = scmp.ne.s32.totalorder %s22, %s23
    %p37 = scmp.eq.s32.totalorder %s15, 1
    %p38 = por %p36, %p37
    %p40 = scmp.ne.s32.totalorder %s23, %s39
    %p41 = scmp.eq.s32.totalorder %s15, 0
    %p42 = por %p40, %p41
    %s44 = sadd.s32 %s43, 1
    %p47 = scmp.eq.s32.totalorder %s9, 1
    %p48 = scmp.ne.s32.totalorder %s43, %s45
    %p49 = scmp.eq.s32.totalorder %s9, 0
    %p50 = por %p48, %p49
    %p51 = scmp.ne.s32.totalorder %s43, %s45
    %p52 = scmp.eq.s32.totalorder %s14, 1
    %p53 = por %p51, %p52
    %p54 = scmp.ne.s32.totalorder %s45, %s46
    %p55 = scmp.eq.s32.totalorder %s14, 0
    %p56 = por %p54, %p55
    %p57 = scmp.ne.s32.totalorder %s45, %s46
    %p58 = scmp.eq.s32.totalorder %s15, 1
    %p59 = por %p57, %p58
    %p61 = scmp.ne.s32.totalorder %s46, %s60
    %p62 = scmp.eq.s32.totalorder %s15, 0
    %p63 = por %p61, %p62
    %s65 = sadd.s32 %s64, 1
    %p68 = scmp.eq.s32.totalorder %s9, 1
    %p69 = scmp.ne.s32.totalorder %s64, %s66
    %p70 = scmp.eq.s32.totalorder %s9, 0
    %p71 = por %p69, %p70
    %p72 = scmp.ne.s32.totalorder %s64, %s66
    %p73 = scmp.eq.s32.totalorder %s14, 1
    %p74 = por %p72, %p73
    %p75 = scmp.ne.s32.totalorder %s66, %s67
    %p76 = scmp.eq.s32.totalorder %s14, 0
    %p77 = por %p75, %p76
    %p78 = scmp.ne.s32.totalorder %s66, %s67
    %p79 = scmp.eq.s32.totalorder %s15, 1
    %p80 = por %p78, %p79
    %p82 = scmp.ne.s32.totalorder %s67, %s81
    %p83 = scmp.eq.s32.totalorder %s15, 0
    %p84 = por %p82, %p83
    %s85 = ssub.s32 %s9, %s16
    %p86 = scmp.eq.s32.totalorder %s85, 0
    %s88 = sadd.s32 %s87, 1
    %s89 = scalar_select %p86, %s87, %s88
    %p92 = pneg %p86
    %p93 = scmp.eq.s32.totalorder %s9, 1
    %p94 = por %p92, %p93
    %p95 = scmp.ne.s32.totalorder %s87, %s90
    %p96 = scmp.eq.s32.totalorder %s9, 0
    %p97 = por %p95, %p96
    %p98 = scmp.ne.s32.totalorder %s87, %s90
    %p99 = scmp.eq.s32.totalorder %s14, 1
    %p100 = por %p98, %p99
    %p101 = scmp.ne.s32.totalorder %s90, %s91
    %p102 = scmp.eq.s32.totalorder %s14, 0
    %p103 = por %p101, %p102
    %p104 = scmp.ne.s32.totalorder %s90, %s91
    %p105 = scmp.eq.s32.totalorder %s15, 1
    %p106 = por %p104, %p105
    %p108 = scmp.ne.s32.totalorder %s91, %s107
    %p109 = scmp.eq.s32.totalorder %s15, 0
    %p110 = por %p108, %p109
    %p111 = scmp.le.s32.totalorder 1, %s9
    %p112 = scmp.lt.s32.totalorder %s9, 3
    %p113 = pnand %p111, %p112
    %p114 = pneg %p113
    // Predicated region
    $region9: #{cnn3d_forward.3} parent=5 // pred_check
      _
    $region10: #{cnn3d_forward.3} parent=5 // pred_check_branch
      %116 = sbr.rel (%p113) target = $region12
    $region11: #{cnn3d_forward.3} parent=5 // pred_region
      %s117 = ssub.s32 %s9, 1
      // Predicated region
      $region13: #{cnn3d_forward.3} parent=11 // pred_check
        %p118 = pneg %p56
      $region14: #{cnn3d_forward.3} parent=11 // pred_check_branch
        %120 = sbr.rel (%p118) target = $region16
      $region15: #{cnn3d_forward.3} parent=11 // pred_region
        _
      $region16: #{cnn3d_forward.3} parent=11 // pred_fallthru
        _
      // Predicated region
      $region17: #{cnn3d_forward.3} parent=11 // pred_check
        %p121 = pneg %p77
      $region18: #{cnn3d_forward.3} parent=11 // pred_check_branch
        %123 = sbr.rel (%p121) target = $region20
      $region19: #{cnn3d_forward.3} parent=11 // pred_region
        _
      $region20: #{cnn3d_forward.3} parent=11 // pred_fallthru
        _
    $region12: #{cnn3d_forward.3} parent=5 // pred_fallthru
      _
    %p124 = scmp.lt.s32.totalorder %s9, 2
    // Predicated region
    $region21: #{cnn3d_forward.3} parent=5 // pred_check
      %p125 = pneg %p124
    $region22: #{cnn3d_forward.3} parent=5 // pred_check_branch
      %127 = sbr.rel (%p125) target = $region24
    $region23: #{cnn3d_forward.3} parent=5 // pred_region
      // Predicated region
      $region25: #{cnn3d_forward.3} parent=23 // pred_check
        %p128 = pneg %p29
      $region26: #{cnn3d_forward.3} parent=23 // pred_check_branch
        %130 = sbr.rel (%p128) target = $region28
      $region27: #{cnn3d_forward.3} parent=23 // pred_region
        %s131 = smul.u32 27, %s9
        %p132 = scmp.lt.s32.totalorder %s131, 53
        %s133 = scalar_select %p132, %s131, 53
        %s134 = smul.addr %s133, 3
        %s135 = smul.addr %s134, 4
        %s136 = scalar_lea.vmem %s0, %s135
        %s137 = smul.u32 27, %s9
      $region28: #{cnn3d_forward.3} parent=23 // pred_fallthru
        _
    $region24: #{cnn3d_forward.3} parent=5 // pred_fallthru
      _
    %p138 = scmp.le.s32.totalorder 1, %s9
    %p139 = scmp.lt.s32.totalorder %s9, 3
    %p140 = pnand %p138, %p139
    %p141 = pneg %p140
    // Predicated region
    $region29: #{cnn3d_forward.3} parent=5 // pred_check
      _
    $region30: #{cnn3d_forward.3} parent=5 // pred_check_branch
      %143 = sbr.rel (%p140) target = $region32
    $region31: #{cnn3d_forward.3} parent=5 // pred_region
      %s144 = ssub.s32 %s9, 1
      %s145 = smul.u32 27, %s14
      %p146 = scmp.lt.s32.totalorder %s145, 53
      %s147 = scalar_select %p146, %s145, 53
      %s148 = smul.addr %s147, 3
      %s149 = smul.addr %s148, 4
      %s150 = scalar_lea.vmem %s0, %s149
      %p151 = pneg %p35
      %p152 = pneg %p32
      %p153 = pneg %p56
      %p154 = pneg %p53
      %p155 = pneg %p77
      %p156 = pneg %p74
      %p157 = pneg %p103
      %p158 = pneg %p100
      %s159 = smul.u32 27, %s14
      %p160 = scmp.lt.s32.totalorder %s159, 53
      %s161 = scalar_select %p160, %s159, 53
      %s162 = smul.addr %s161, 4
      %s163 = scalar_lea.vmem %s3, %s162
      %s164 = smul.u32 27, %s14
      %p165 = scmp.lt.s32.totalorder %s164, 53
      %s166 = scalar_select %p165, %s164, 53
      %s167 = smul.addr %s166, 3
      %s168 = smul.addr %s167, 4
      %s169 = scalar_lea.vmem %s0, %s168
      %s170 = smul.u32 27, %s14
      %s171 = smul.u32 27, %s14
      %p172 = scmp.lt.s32.totalorder %s171, 53
      %s173 = scalar_select %p172, %s171, 53
      %s174 = smul.addr %s173, 4
      %s175 = scalar_lea.vmem %s3, %s174
      %s176 = smul.u32 27, %s14
      %v178 = vld [vmem:[%s169] sm:$0xff]
      %v179 = vld [vmem:[%s169 + $0x8] sm:$0xf]
      %v180 = vld [vmem:[%s169 + $0xc] sm:$0xff]
      %v181 = vld [vmem:[%s169 + $0x14] sm:$0xf]
      %v182 = vld [vmem:[%s169 + $0x18] sm:$0xff]
      %v183 = vld [vmem:[%s169 + $0x20] sm:$0xf]
      %v184 = vld [vmem:[%s169 + $0x24] sm:$0xff]
      %v185 = vld [vmem:[%s169 + $0x2c] sm:$0xf]
      %v186 = vld [vmem:[%s169 + $0x30] sm:$0xff]
      %v187 = vld [vmem:[%s169 + $0x38] sm:$0xf]
      %v188 = vld [vmem:[%s169 + $0x3c] sm:$0xff]
      %v189 = vld [vmem:[%s169 + $0x44] sm:$0xf]
      %v190 = vld [vmem:[%s169 + $0x48] sm:$0xff]
      %v191 = vld [vmem:[%s169 + $0x50] sm:$0xf]
      %v192 = vld [vmem:[%s169 + $0x54] sm:$0xff]
      %v193 = vld [vmem:[%s169 + $0x5c] sm:$0xf]
      %v194 = vld [vmem:[%s169 + $0x60] sm:$0xff]
      %v195 = vld [vmem:[%s169 + $0x68] sm:$0xf]
      %v196 = vld [vmem:[%s169 + $0x6c] sm:$0xff]
      %v197 = vld [vmem:[%s169 + $0x74] sm:$0xf]
      %v198 = vld [vmem:[%s169 + $0x78] sm:$0xff]
      %v199 = vld [vmem:[%s169 + $0x80] sm:$0xf]
      %v200 = vld [vmem:[%s169 + $0x84] sm:$0xff]
      %v201 = vld [vmem:[%s169 + $0x8c] sm:$0xf]
      %v202 = vld [vmem:[%s169 + $0x90] sm:$0xff]
      %v203 = vld [vmem:[%s169 + $0x98] sm:$0xf]
      %v204 = vld [vmem:[%s169 + $0x9c] sm:$0xff]
      %v205 = vld [vmem:[%s169 + $0xa4] sm:$0xf]
      %v206 = vld [vmem:[%s169 + $0xa8] sm:$0xff]
      %v207 = vld [vmem:[%s169 + $0xb0] sm:$0xf]
      %v208 = vld [vmem:[%s169 + $0xb4] sm:$0xff]
      %v209 = vld [vmem:[%s169 + $0xbc] sm:$0xf]
      %v210 = vld [vmem:[%s169 + $0xc0] sm:$0xff]
      %v211 = vld [vmem:[%s169 + $0xc8] sm:$0xf]
      %v212 = vld [vmem:[%s169 + $0xcc] sm:$0xff]
      %v213 = vld [vmem:[%s169 + $0xd4] sm:$0xf]
      %v214 = vld [vmem:[%s169 + $0xd8] sm:$0xff]
      %v215 = vld [vmem:[%s169 + $0xe0] sm:$0xf]
      %v216 = vld [vmem:[%s169 + $0xe4] sm:$0xff]
      %v217 = vld [vmem:[%s169 + $0xec] sm:$0xf]
      %v218 = vld [vmem:[%s169 + $0xf0] sm:$0xff]
      %v219 = vld [vmem:[%s169 + $0xf8] sm:$0xf]
      %v220 = vld [vmem:[%s169 + $0xfc] sm:$0xff]
      %v221 = vld [vmem:[%s169 + $0x104] sm:$0xf]
      %v222 = vld [vmem:[%s169 + $0x108] sm:$0xff]
      %v223 = vld [vmem:[%s169 + $0x110] sm:$0xf]
      %v224 = vld [vmem:[%s169 + $0x114] sm:$0xff]
      %v225 = vld [vmem:[%s169 + $0x11c] sm:$0xf]
      %v226 = vld [vmem:[%s169 + $0x120] sm:$0xff]
      %v227 = vld [vmem:[%s169 + $0x128] sm:$0xf]
      %v228 = vld [vmem:[%s169 + $0x12c] sm:$0xff]
      %v229 = vld [vmem:[%s169 + $0x134] sm:$0xf]
      %v230 = vld [vmem:[%s169 + $0x138] sm:$0xff]
      %v231 = vld [vmem:[%s169 + $0x140] sm:$0xf]
      %v232 = vld [vmem:[%s1] sm:$0xf]
      %v233 = vld [vmem:[%s1 + $0x4] sm:$0xf]
      %v234 = vld [vmem:[%s1 + $0x8] sm:$0xf]
      %v235 = vld [vmem:[%s1 + $0xc] sm:$0xf]
      %v236 = vld [vmem:[%s1 + $0x10] sm:$0xf]
      %v237 = vld [vmem:[%s1 + $0x14] sm:$0xf]
      %v238 = vld [vmem:[%s1 + $0x18] sm:$0xf]
      %v239 = vld [vmem:[%s1 + $0x1c] sm:$0xf]
      %v240 = vld [vmem:[%s1 + $0x20] sm:$0xf]
      %v241 = vld [vmem:[%s1 + $0x24] sm:$0xf]
      %v242 = vld [vmem:[%s1 + $0x28] sm:$0xf]
      %v243 = vld [vmem:[%s1 + $0x2c] sm:$0xf]
      %v244 = vld [vmem:[%s1 + $0x30] sm:$0xf]
      %v245 = vld [vmem:[%s1 + $0x34] sm:$0xf]
      %v246 = vld [vmem:[%s1 + $0x38] sm:$0xf]
      %v247 = vld [vmem:[%s1 + $0x3c] sm:$0xf]
      %v248 = vld [vmem:[%s1 + $0x40] sm:$0xf]
      %v249 = vld [vmem:[%s1 + $0x44] sm:$0xf]
      %v250 = vld [vmem:[%s1 + $0x48] sm:$0xf]
      %v251 = vld [vmem:[%s1 + $0x4c] sm:$0xf]
      %v252 = vld [vmem:[%s1 + $0x50] sm:$0xf]
      %v253 = vld [vmem:[%s1 + $0x54] sm:$0xf]
      %v254 = vld [vmem:[%s1 + $0x58] sm:$0xf]
      %v255 = vld [vmem:[%s1 + $0x5c] sm:$0xf]
      %v256 = vld [vmem:[%s1 + $0x60] sm:$0xf]
      %v257 = vld [vmem:[%s1 + $0x64] sm:$0xf]
      %v258 = vld [vmem:[%s1 + $0x68] sm:$0xf]
      %v259 = vld [vmem:[%s1 + $0x6c] sm:$0xf]
      %v260 = vld [vmem:[%s1 + $0x70] sm:$0xf]
      %v261 = vld [vmem:[%s1 + $0x74] sm:$0xf]
      %v262 = vld [vmem:[%s1 + $0x78] sm:$0xf]
      %v263 = vld [vmem:[%s1 + $0x7c] sm:$0xf]
      %v264 = vld [vmem:[%s1 + $0x80] sm:$0xf]
      %v265 = vld [vmem:[%s1 + $0x84] sm:$0xf]
      %v266 = vld [vmem:[%s1 + $0x88] sm:$0xf]
      %v267 = vld [vmem:[%s1 + $0x8c] sm:$0xf]
      %v268 = vld [vmem:[%s1 + $0x90] sm:$0xf]
      %v269 = vld [vmem:[%s1 + $0x94] sm:$0xf]
      %v270 = vld [vmem:[%s1 + $0x98] sm:$0xf]
      %v271 = vld [vmem:[%s1 + $0x9c] sm:$0xf]
      %v272 = vld [vmem:[%s1 + $0xa0] sm:$0xf]
      %v273 = vld [vmem:[%s1 + $0xa4] sm:$0xf]
      %v274 = vld [vmem:[%s1 + $0xa8] sm:$0xf]
      %v275 = vld [vmem:[%s1 + $0xac] sm:$0xf]
      %v276 = vld [vmem:[%s1 + $0xb0] sm:$0xf]
      %v277 = vld [vmem:[%s1 + $0xb4] sm:$0xf]
      %v278 = vld [vmem:[%s1 + $0xb8] sm:$0xf]
      %v279 = vld [vmem:[%s2] sm:$0x1]
      %v281 = vlaneseq
      %v282 = vshrl.u32 %v281, 7
      %v283 = vsub.s32 0, %v282
      %v284 = vrot.slane %v279, %v283
      %v340 = vunpack.c.l.b16 %v178
      %v341 = vunpack.c.h.b16 %v178
      %v342 = vunpack.c.l.b16 %v179
      %v343 = vunpack.c.l.b16 %v180
      %v344 = vunpack.c.h.b16 %v180
      %v345 = vunpack.c.l.b16 %v181
      %v346 = vunpack.c.l.b16 %v182
      %v347 = vunpack.c.h.b16 %v182
      %v348 = vunpack.c.l.b16 %v183
      %v349 = vunpack.c.l.b16 %v184
      %v350 = vunpack.c.h.b16 %v184
      %v351 = vunpack.c.l.b16 %v185
      %v352 = vunpack.c.l.b16 %v186
      %v353 = vunpack.c.h.b16 %v186
      %v354 = vunpack.c.l.b16 %v187
      %v355 = vunpack.c.l.b16 %v188
      %v356 = vunpack.c.h.b16 %v188
      %v357 = vunpack.c.l.b16 %v189
      %v358 = vunpack.c.l.b16 %v190
      %v359 = vunpack.c.h.b16 %v190
      %v360 = vunpack.c.l.b16 %v191
      %v361 = vunpack.c.l.b16 %v192
      %v362 = vunpack.c.h.b16 %v192
      %v363 = vunpack.c.l.b16 %v193
      %v364 = vunpack.c.l.b16 %v194
      %v365 = vunpack.c.h.b16 %v194
      %v366 = vunpack.c.l.b16 %v195
      %v367 = vunpack.c.l.b16 %v196
      %v368 = vunpack.c.h.b16 %v196
      %v369 = vunpack.c.l.b16 %v197
      %v370 = vunpack.c.l.b16 %v198
      %v371 = vunpack.c.h.b16 %v198
      %v372 = vunpack.c.l.b16 %v199
      %v373 = vunpack.c.l.b16 %v200
      %v374 = vunpack.c.h.b16 %v200
      %v375 = vunpack.c.l.b16 %v201
      %v376 = vunpack.c.l.b16 %v202
      %v377 = vunpack.c.h.b16 %v202
      %v378 = vunpack.c.l.b16 %v203
      %v379 = vunpack.c.l.b16 %v204
      %v380 = vunpack.c.h.b16 %v204
      %v381 = vunpack.c.l.b16 %v205
      %v382 = vunpack.c.l.b16 %v206
      %v383 = vunpack.c.h.b16 %v206
      %v384 = vunpack.c.l.b16 %v207
      %v385 = vunpack.c.l.b16 %v208
      %v386 = vunpack.c.h.b16 %v208
      %v387 = vunpack.c.l.b16 %v209
      %v388 = vunpack.c.l.b16 %v210
      %v389 = vunpack.c.h.b16 %v210
      %v390 = vunpack.c.l.b16 %v211
      %v391 = vunpack.c.l.b16 %v212
      %v392 = vunpack.c.h.b16 %v212
      %v393 = vunpack.c.l.b16 %v213
      %v394 = vunpack.c.l.b16 %v214
      %v395 = vunpack.c.h.b16 %v214
      %v396 = vunpack.c.l.b16 %v215
      %v397 = vunpack.c.l.b16 %v216
      %v398 = vunpack.c.h.b16 %v216
      %v399 = vunpack.c.l.b16 %v217
      %v400 = vunpack.c.l.b16 %v218
      %v401 = vunpack.c.h.b16 %v218
      %v402 = vunpack.c.l.b16 %v219
      %v403 = vunpack.c.l.b16 %v220
      %v404 = vunpack.c.h.b16 %v220
      %v405 = vunpack.c.l.b16 %v221
      %v406 = vunpack.c.l.b16 %v222
      %v407 = vunpack.c.h.b16 %v222
      %v408 = vunpack.c.l.b16 %v223
      %v409 = vunpack.c.l.b16 %v224
      %v410 = vunpack.c.h.b16 %v224
      %v411 = vunpack.c.l.b16 %v225
      %v412 = vunpack.c.l.b16 %v226
      %v413 = vunpack.c.h.b16 %v226
      %v414 = vunpack.c.l.b16 %v227
      %v415 = vunpack.c.l.b16 %v228
      %v416 = vunpack.c.h.b16 %v228
      %v417 = vunpack.c.l.b16 %v229
      %v418 = vunpack.c.l.b16 %v230
      %v419 = vunpack.c.h.b16 %v230
      %v420 = vunpack.c.l.b16 %v231
      %v421 = vpack.c.b16 %v343, %v340
      %v422 = vpack.c.b16 %v344, %v341
      %v423 = vpack.c.b16 %v345, %v342
      %v424 = vpack.c.b16 %v349, %v346
      %v425 = vpack.c.b16 %v350, %v347
      %v426 = vpack.c.b16 %v351, %v348
      %v427 = vpack.c.b16 %v355, %v352
      %v428 = vpack.c.b16 %v356, %v353
      %v429 = vpack.c.b16 %v357, %v354
      %v430 = vpack.c.b16 %v361, %v358
      %v431 = vpack.c.b16 %v362, %v359
      %v432 = vpack.c.b16 %v363, %v360
      %v433 = vpack.c.b16 %v367, %v364
      %v434 = vpack.c.b16 %v368, %v365
      %v435 = vpack.c.b16 %v369, %v366
      %v436 = vpack.c.b16 %v373, %v370
      %v437 = vpack.c.b16 %v374, %v371
      %v438 = vpack.c.b16 %v375, %v372
      %v439 = vpack.c.b16 %v379, %v376
      %v440 = vpack.c.b16 %v380, %v377
      %v441 = vpack.c.b16 %v381, %v378
      %v442 = vpack.c.b16 %v385, %v382
      %v443 = vpack.c.b16 %v386, %v383
      %v444 = vpack.c.b16 %v387, %v384
      %v445 = vpack.c.b16 %v391, %v388
      %v446 = vpack.c.b16 %v392, %v389
      %v447 = vpack.c.b16 %v393, %v390
      %v448 = vpack.c.b16 %v397, %v394
      %v449 = vpack.c.b16 %v398, %v395
      %v450 = vpack.c.b16 %v399, %v396
      %v451 = vpack.c.b16 %v403, %v400
      %v452 = vpack.c.b16 %v404, %v401
      %v453 = vpack.c.b16 %v405, %v402
      %v454 = vpack.c.b16 %v409, %v406
      %v455 = vpack.c.b16 %v410, %v407
      %v456 = vpack.c.b16 %v411, %v408
      %v457 = vpack.c.b16 %v415, %v412
      %v458 = vpack.c.b16 %v416, %v413
      %v459 = vpack.c.b16 %v417, %v414
      %v460 = vpack.c.b16 %v418, %v418
      %v461 = vpack.c.b16 %v419, %v419
      %v462 = vpack.c.b16 %v420, %v420
      %v538 = vunpack.c.l.b16 %v232
      %v539 = vunpack.c.l.b16 %v233
      %v540 = vunpack.c.l.b16 %v234
      %v541 = vunpack.c.l.b16 %v235
      %v542 = vunpack.c.l.b16 %v236
      %v543 = vunpack.c.l.b16 %v237
      %v544 = vunpack.c.l.b16 %v238
      %v545 = vunpack.c.l.b16 %v239
      %v546 = vunpack.c.l.b16 %v240
      %v547 = vunpack.c.l.b16 %v241
      %v548 = vunpack.c.l.b16 %v242
      %v549 = vunpack.c.l.b16 %v243
      %v550 = vunpack.c.l.b16 %v244
      %v551 = vunpack.c.l.b16 %v245
      %v552 = vunpack.c.l.b16 %v246
      %v553 = vunpack.c.l.b16 %v247
      %v554 = vunpack.c.l.b16 %v248
      %v555 = vunpack.c.l.b16 %v249
      %v556 = vunpack.c.l.b16 %v250
      %v557 = vunpack.c.l.b16 %v251
      %v558 = vunpack.c.l.b16 %v252
      %v559 = vunpack.c.l.b16 %v253
      %v560 = vunpack.c.l.b16 %v254
      %v561 = vunpack.c.l.b16 %v255
      %v562 = vunpack.c.l.b16 %v256
      %v563 = vunpack.c.l.b16 %v257
      %v564 = vunpack.c.l.b16 %v258
      %v565 = vunpack.c.l.b16 %v259
      %v566 = vunpack.c.l.b16 %v260
      %v567 = vunpack.c.l.b16 %v261
      %v568 = vunpack.c.l.b16 %v262
      %v569 = vunpack.c.l.b16 %v263
      %v570 = vunpack.c.l.b16 %v264
      %v571 = vunpack.c.l.b16 %v265
      %v572 = vunpack.c.l.b16 %v266
      %v573 = vunpack.c.l.b16 %v267
      %v574 = vunpack.c.l.b16 %v268
      %v575 = vunpack.c.l.b16 %v269
      %v576 = vunpack.c.l.b16 %v270
      %v577 = vunpack.c.l.b16 %v271
      %v578 = vunpack.c.l.b16 %v272
      %v579 = vunpack.c.l.b16 %v273
      %v580 = vunpack.c.l.b16 %v274
      %v581 = vunpack.c.l.b16 %v275
      %v582 = vunpack.c.l.b16 %v276
      %v583 = vunpack.c.l.b16 %v277
      %v584 = vunpack.c.l.b16 %v278
      %v585 = vpack.c.b16 %v539, %v538
      %v586 = vpack.c.b16 %v541, %v540
      %v587 = vpack.c.b16 %v543, %v542
      %v588 = vpack.c.b16 %v545, %v544
      %v589 = vpack.c.b16 %v547, %v546
      %v590 = vpack.c.b16 %v549, %v548
      %v591 = vpack.c.b16 %v551, %v550
      %v592 = vpack.c.b16 %v553, %v552
      %v593 = vpack.c.b16 %v555, %v554
      %v594 = vpack.c.b16 %v557, %v556
      %v595 = vpack.c.b16 %v559, %v558
      %v596 = vpack.c.b16 %v561, %v560
      %v597 = vpack.c.b16 %v563, %v562
      %v598 = vpack.c.b16 %v565, %v564
      %v599 = vpack.c.b16 %v567, %v566
      %v600 = vpack.c.b16 %v569, %v568
      %v601 = vpack.c.b16 %v571, %v570
      %v602 = vpack.c.b16 %v573, %v572
      %v603 = vpack.c.b16 %v575, %v574
      %v604 = vpack.c.b16 %v577, %v576
      %v605 = vpack.c.b16 %v579, %v578
      %v606 = vpack.c.b16 %v581, %v580
      %v607 = vpack.c.b16 %v583, %v582
      %v608 = vpack.c.b16 %v584, %v584
      %vm632 = vcmask 973824
      %v634 = vsel %vm632, %v423, 0
      %v637 = vsel %vm632, %v426, 0
      %v640 = vsel %vm632, %v429, 0
      %v643 = vsel %vm632, %v432, 0
      %v646 = vsel %vm632, %v435, 0
      %v649 = vsel %vm632, %v438, 0
      %v652 = vsel %vm632, %v441, 0
      %v655 = vsel %vm632, %v444, 0
      %v658 = vsel %vm632, %v447, 0
      %v661 = vsel %vm632, %v450, 0
      %v664 = vsel %vm632, %v453, 0
      %v667 = vsel %vm632, %v456, 0
      %v670 = vsel %vm632, %v459, 0
      %v673 = vsel %vm632, %v462, 0
      %vm675 = vcmask 1042432
      %vm676 = vcmask 1043456
      %v677 = vsel %vm675, 4294967295, 65535
      %v678 = vsel %vm676, %v677, 0
      %v680 = vand.u32 %v608, %v678
      %682 = vmatprep.subr.bf16.mxu0 0
      %683 = vmatpush1.bf16.msra.mxu0 %v585
      %684 = vmatprep.subr.bf16.mxu0 0
      %685 = vmatpush1.bf16.msra.mxu0 %v586
      %686 = vmatprep.subr.bf16.mxu0 0
      %687 = vmatpush1.bf16.msra.mxu0 %v587
      %688 = vmatprep.subr.bf16.mxu0 0
      %689 = vmatpush1.bf16.msra.mxu0 %v588
      %690 = vmatprep.subr.bf16.mxu0 0
      %691 = vmatpush1.bf16.msra.mxu0 %v589
      %692 = vmatprep.subr.bf16.mxu0 0
      %693 = vmatpush1.bf16.msra.mxu0 %v590
      %694 = vmatprep.subr.bf16.mxu0 0
      %695 = vmatpush1.bf16.msra.mxu0 %v591
      %696 = vmatprep.subr.bf16.mxu0 0
      %697 = vmatpush1.bf16.msra.mxu0 %v592
      %698 = vmatprep.subr.bf16.mxu0 0
      %699 = vmatpush1.bf16.msra.mxu0 %v593
      %700 = vmatprep.subr.bf16.mxu0 0
      %701 = vmatpush1.bf16.msra.mxu0 %v594
      %702 = vmatprep.subr.bf16.mxu0 0
      %703 = vmatpush1.bf16.msra.mxu0 %v595
      %704 = vmatprep.subr.bf16.mxu0 0
      %705 = vmatpush1.bf16.msra.mxu0 %v596
      %706 = vmatprep.subr.bf16.mxu0 0
      %707 = vmatpush1.bf16.msra.mxu0 %v597
      %708 = vmatprep.subr.bf16.mxu0 0
      %709 = vmatpush1.bf16.msra.mxu0 %v598
      %710 = vmatprep.subr.bf16.mxu0 0
      %711 = vmatpush1.bf16.msra.mxu0 %v599
      %712 = vmatprep.subr.bf16.mxu0 0
      %713 = vmatpush1.bf16.msra.mxu0 %v600
      %714 = vmatprep.mubr.bf16.mxu0 %v422
      %715 = vmatmul.mubr.bf16.gmra.mrb[0].mxu0 %v421
      %v716 = vpop.f32.mrb[0].mxu0
      %v717 = vadd.f32 %v284, %v716
      %v718 = vpop.f32.mrb[0].mxu0
      %v719 = vpop.f32.mrb[0].mxu0
      %v720 = vadd.f32 %v284, %v719
      %v721 = vpop.f32.mrb[0].mxu0
      %722 = vmatprep.mubr.bf16.mxu0 %v425
      %723 = vmatmul.mubr.bf16.gmra.mrb[0].mxu0 %v424
      %v724 = vpop.f32.mrb[0].mxu0
      %v725 = vadd.f32 %v284, %v724
      %v726 = vpop.f32.mrb[0].mxu0
      %v727 = vpop.f32.mrb[0].mxu0
      %v728 = vadd.f32 %v284, %v727
      %v729 = vpop.f32.mrb[0].mxu0
      %730 = vmatprep.mubr.bf16.mxu0 %v428
      %731 = vmatmul.mubr.bf16.gmra.mrb[0].mxu0 %v427
      %v732 = vpop.f32.mrb[0].mxu0
      %v733 = vadd.f32 %v284, %v732
      %v734 = vpop.f32.mrb[0].mxu0
      %v735 = vpop.f32.mrb[0].mxu0
      %v736 = vadd.f32 %v284, %v735
      %v737 = vpop.f32.mrb[0].mxu0
      %738 = vmatprep.mubr.bf16.mxu0 %v431
      %739 = vmatmul.mubr.bf16.gmra.mrb[0].mxu0 %v430
      %v740 = vpop.f32.mrb[0].mxu0
      %v741 = vadd.f32 %v284, %v740
      %v742 = vpop.f32.mrb[0].mxu0
      %v743 = vpop.f32.mrb[0].mxu0
      %v744 = vadd.f32 %v284, %v743
      %v745 = vpop.f32.mrb[0].mxu0
      %746 = vmatprep.mubr.bf16.mxu0 %v434
      %747 = vmatmul.mubr.bf16.gmra.mrb[0].mxu0 %v433
      %v748 = vpop.f32.mrb[0].mxu0
      %v749 = vadd.f32 %v284, %v748
      %v750 = vpop.f32.mrb[0].mxu0
      %v751 = vpop.f32.mrb[0].mxu0
      %v752 = vadd.f32 %v284, %v751
      %v753 = vpop.f32.mrb[0].mxu0
      %754 = vmatprep.mubr.bf16.mxu0 %v437
      %755 = vmatmul.mubr.bf16.gmra.mrb[0].mxu0 %v436
      %v756 = vpop.f32.mrb[0].mxu0
      %v757 = vadd.f32 %v284, %v756
      %v758 = vpop.f32.mrb[0].mxu0
      %v759 = vpop.f32.mrb[0].mxu0
      %v760 = vadd.f32 %v284, %v759
      %v761 = vpop.f32.mrb[0].mxu0
      %762 = vmatprep.mubr.bf16.mxu0 %v440
      %763 = vmatmul.mubr.bf16.gmra.mrb[0].mxu0 %v439
      %v764 = vpop.f32.mrb[0].mxu0
      %v765 = vadd.f32 %v284, %v764
      %v766 = vpop.f32.mrb[0].mxu0
      %v767 = vpop.f32.mrb[0].mxu0
      %v768 = vadd.f32 %v284, %v767
      %v769 = vpop.f32.mrb[0].mxu0
      %770 = vmatprep.mubr.bf16.mxu0 %v443
      %771 = vmatmul.mubr.bf16.gmra.mrb[0].mxu0 %v442
      %v772 = vpop.f32.mrb[0].mxu0
      %v773 = vadd.f32 %v284, %v772
      %v774 = vpop.f32.mrb[0].mxu0
      %v775 = vpop.f32.mrb[0].mxu0
      %v776 = vadd.f32 %v284, %v775
      %v777 = vpop.f32.mrb[0].mxu0
      %778 = vmatprep.mubr.bf16.mxu0 %v446
      %779 = vmatmul.mubr.bf16.gmra.mrb[0].mxu0 %v445
      %v780 = vpop.f32.mrb[0].mxu0
      %v781 = vadd.f32 %v284, %v780
      %v782 = vpop.f32.mrb[0].mxu0
      %v783 = vpop.f32.mrb[0].mxu0
      %v784 = vadd.f32 %v284, %v783
      %v785 = vpop.f32.mrb[0].mxu0
      %786 = vmatprep.mubr.bf16.mxu0 %v449
      %787 = vmatmul.mubr.bf16.gmra.mrb[0].mxu0 %v448
      %v788 = vpop.f32.mrb[0].mxu0
      %v789 = vadd.f32 %v284, %v788
      %v790 = vpop.f32.mrb[0].mxu0
      %v791 = vpop.f32.mrb[0].mxu0
      %v792 = vadd.f32 %v284, %v791
      %v793 = vpop.f32.mrb[0].mxu0
      %794 = vmatprep.mubr.bf16.mxu0 %v452
      %795 = vmatmul.mubr.bf16.gmra.mrb[0].mxu0 %v451
      %v796 = vpop.f32.mrb[0].mxu0
      %v797 = vadd.f32 %v284, %v796
      %v798 = vpop.f32.mrb[0].mxu0
      %v799 = vpop.f32.mrb[0].mxu0
      %v800 = vadd.f32 %v284, %v799
      %v801 = vpop.f32.mrb[0].mxu0
      %802 = vmatprep.mubr.bf16.mxu0 %v455
      %803 = vmatmul.mubr.bf16.gmra.mrb[0].mxu0 %v454
      %v804 = vpop.f32.mrb[0].mxu0
      %v805 = vadd.f32 %v284, %v804
      %v806 = vpop.f32.mrb[0].mxu0
      %v807 = vpop.f32.mrb[0].mxu0
      %v808 = vadd.f32 %v284, %v807
      %v809 = vpop.f32.mrb[0].mxu0
      %810 = vmatprep.mubr.bf16.mxu0 %v458
      %811 = vmatmul.mubr.bf16.gmra.mrb[0].mxu0 %v457
      %v812 = vpop.f32.mrb[0].mxu0
      %v813 = vadd.f32 %v284, %v812
      %v814 = vpop.f32.mrb[0].mxu0
      %v815 = vpop.f32.mrb[0].mxu0
      %v816 = vadd.f32 %v284, %v815
      %v817 = vpop.f32.mrb[0].mxu0
      %818 = vmatprep.mubr.bf16.mxu0 %v461
      %819 = vmatmul.mubr.bf16.gmra.mrb[0].mxu0 %v460
      %v820 = vpop.f32.mrb[0].mxu0
      %v821 = vadd.f32 %v284, %v820
      %v822 = vpop.f32.mrb[0].mxu0
      %v823 = vpop.f32.mrb[0].mxu0
      %v824 = vpop.f32.mrb[0].mxu0
      %825 = vdwg.mxu0
      %826 = vmatprep.subr.bf16.mxu0 0
      %827 = vmatpush1.bf16.msra.mxu0 %v601
      %828 = vmatprep.subr.bf16.mxu0 0
      %829 = vmatpush1.bf16.msra.mxu0 %v602
      %830 = vmatprep.subr.bf16.mxu0 0
      %831 = vmatpush1.bf16.msra.mxu0 %v603
      %832 = vmatprep.subr.bf16.mxu0 0
      %833 = vmatpush1.bf16.msra.mxu0 %v604
      %834 = vmatprep.subr.bf16.mxu0 0
      %835 = vmatpush1.bf16.msra.mxu0 %v605
      %836 = vmatprep.subr.bf16.mxu0 0
      %837 = vmatpush1.bf16.msra.mxu0 %v606
      %838 = vmatprep.subr.bf16.mxu0 0
      %839 = vmatpush1.bf16.msra.mxu0 %v607
      %840 = vmatprep.subr.bf16.mxu0 0
      %841 = vmatpush1.bf16.msra.mxu0 %v680
      %842 = vmatprep.subr.bf16.mxu0 0
      %843 = vmatpush1.bf16.msra.mxu0 0
      %844 = vmatprep.subr.bf16.mxu0 0
      %845 = vmatpush1.bf16.msra.mxu0 0
      %846 = vmatprep.subr.bf16.mxu0 0
      %847 = vmatpush1.bf16.msra.mxu0 0
      %848 = vmatprep.subr.bf16.mxu0 0
      %849 = vmatpush1.bf16.msra.mxu0 0
      %850 = vmatprep.subr.bf16.mxu0 0
      %851 = vmatpush1.bf16.msra.mxu0 0
      %852 = vmatprep.subr.bf16.mxu0 0
      %853 = vmatpush1.bf16.msra.mxu0 0
      %854 = vmatprep.subr.bf16.mxu0 0
      %855 = vmatpush1.bf16.msra.mxu0 0
      %856 = vmatprep.subr.bf16.mxu0 0
      %857 = vmatpush1.bf16.msra.mxu0 0
      %858 = vmatprep.mubr.bf16.mxu0 0
      %859 = vmatmul.mubr.bf16.gmra.mrb[0].mxu0 %v634
      %v860 = vpop.f32.mrb[0].mxu0
      %v861 = vadd.f32 %v717, %v860
      %v862 = vpop.f32.mrb[0].mxu0
      %v863 = vpop.f32.mrb[0].mxu0
      %v864 = vadd.f32 %v720, %v863
      %v865 = vpop.f32.mrb[0].mxu0
      %866 = vmatprep.mubr.bf16.mxu0 0
      %867 = vmatmul.mubr.bf16.gmra.mrb[0].mxu0 %v637
      %v868 = vpop.f32.mrb[0].mxu0
      %v869 = vadd.f32 %v725, %v868
      %v870 = vpop.f32.mrb[0].mxu0
      %v871 = vpop.f32.mrb[0].mxu0
      %v872 = vadd.f32 %v728, %v871
      %v873 = vpop.f32.mrb[0].mxu0
      %874 = vmatprep.mubr.bf16.mxu0 0
      %875 = vmatmul.mubr.bf16.gmra.mrb[0].mxu0 %v640
      %v876 = vpop.f32.mrb[0].mxu0
      %v877 = vadd.f32 %v733, %v876
      %v878 = vpop.f32.mrb[0].mxu0
      %v879 = vpop.f32.mrb[0].mxu0
      %v880 = vadd.f32 %v736, %v879
      %v881 = vpop.f32.mrb[0].mxu0
      %882 = vmatprep.mubr.bf16.mxu0 0
      %883 = vmatmul.mubr.bf16.gmra.mrb[0].mxu0 %v643
      %v884 = vpop.f32.mrb[0].mxu0
      %v885 = vadd.f32 %v741, %v884
      %v886 = vpop.f32.mrb[0].mxu0
      %v887 = vpop.f32.mrb[0].mxu0
      %v888 = vadd.f32 %v744, %v887
      %v889 = vpop.f32.mrb[0].mxu0
      %890 = vmatprep.mubr.bf16.mxu0 0
      %891 = vmatmul.mubr.bf16.gmra.mrb[0].mxu0 %v646
      %v892 = vpop.f32.mrb[0].mxu0
      %v893 = vadd.f32 %v749, %v892
      %v894 = vpop.f32.mrb[0].mxu0
      %v895 = vpop.f32.mrb[0].mxu0
      %v896 = vadd.f32 %v752, %v895
      %v897 = vpop.f32.mrb[0].mxu0
      %898 = vmatprep.mubr.bf16.mxu0 0
      %899 = vmatmul.mubr.bf16.gmra.mrb[0].mxu0 %v649
      %v900 = vpop.f32.mrb[0].mxu0
      %v901 = vadd.f32 %v757, %v900
      %v902 = vpop.f32.mrb[0].mxu0
      %v903 = vpop.f32.mrb[0].mxu0
      %v904 = vadd.f32 %v760, %v903
      %v905 = vpop.f32.mrb[0].mxu0
      %906 = vmatprep.mubr.bf16.mxu0 0
      %907 = vmatmul.mubr.bf16.gmra.mrb[0].mxu0 %v652
      %v908 = vpop.f32.mrb[0].mxu0
      %v909 = vadd.f32 %v765, %v908
      %v910 = vpop.f32.mrb[0].mxu0
      %v911 = vpop.f32.mrb[0].mxu0
      %v912 = vadd.f32 %v768, %v911
      %v913 = vpop.f32.mrb[0].mxu0
      %914 = vmatprep.mubr.bf16.mxu0 0
      %915 = vmatmul.mubr.bf16.gmra.mrb[0].mxu0 %v655
      %v916 = vpop.f32.mrb[0].mxu0
      %v917 = vadd.f32 %v773, %v916
      %v918 = vpop.f32.mrb[0].mxu0
      %v919 = vpop.f32.mrb[0].mxu0
      %v920 = vadd.f32 %v776, %v919
      %v921 = vpop.f32.mrb[0].mxu0
      %922 = vmatprep.mubr.bf16.mxu0 0
      %923 = vmatmul.mubr.bf16.gmra.mrb[0].mxu0 %v658
      %v924 = vpop.f32.mrb[0].mxu0
      %v925 = vadd.f32 %v781, %v924
      %v926 = vpop.f32.mrb[0].mxu0
      %v927 = vpop.f32.mrb[0].mxu0
      %v928 = vadd.f32 %v784, %v927
      %v929 = vpop.f32.mrb[0].mxu0
      %930 = vmatprep.mubr.bf16.mxu0 0
      %931 = vmatmul.mubr.bf16.gmra.mrb[0].mxu0 %v661
      %v932 = vpop.f32.mrb[0].mxu0
      %v933 = vadd.f32 %v789, %v932
      %v934 = vpop.f32.mrb[0].mxu0
      %v935 = vpop.f32.mrb[0].mxu0
      %v936 = vadd.f32 %v792, %v935
      %v937 = vpop.f32.mrb[0].mxu0
      %938 = vmatprep.mubr.bf16.mxu0 0
      %939 = vmatmul.mubr.bf16.gmra.mrb[0].mxu0 %v664
      %v940 = vpop.f32.mrb[0].mxu0
      %v941 = vadd.f32 %v797, %v940
      %v942 = vpop.f32.mrb[0].mxu0
      %v943 = vpop.f32.mrb[0].mxu0
      %v944 = vadd.f32 %v800, %v943
      %v945 = vpop.f32.mrb[0].mxu0
      %946 = vmatprep.mubr.bf16.mxu0 0
      %947 = vmatmul.mubr.bf16.gmra.mrb[0].mxu0 %v667
      %v948 = vpop.f32.mrb[0].mxu0
      %v949 = vadd.f32 %v805, %v948
      %v950 = vpop.f32.mrb[0].mxu0
      %v951 = vpop.f32.mrb[0].mxu0
      %v952 = vadd.f32 %v808, %v951
      %v953 = vpop.f32.mrb[0].mxu0
      %954 = vmatprep.mubr.bf16.mxu0 0
      %955 = vmatmul.mubr.bf16.gmra.mrb[0].mxu0 %v670
      %v956 = vpop.f32.mrb[0].mxu0
      %v957 = vadd.f32 %v813, %v956
      %v958 = vpop.f32.mrb[0].mxu0
      %v959 = vpop.f32.mrb[0].mxu0
      %v960 = vadd.f32 %v816, %v959
      %v961 = vpop.f32.mrb[0].mxu0
      %962 = vmatprep.mubr.bf16.mxu0 0
      %963 = vmatmul.mubr.bf16.gmra.mrb[0].mxu0 %v673
      %v964 = vpop.f32.mrb[0].mxu0
      %v965 = vadd.f32 %v821, %v964
      %v966 = vpop.f32.mrb[0].mxu0
      %v967 = vpop.f32.mrb[0].mxu0
      %v968 = vpop.f32.mrb[0].mxu0
      %969 = vdwg.mxu0
      %v970 = vmax.f32 %v861, 0.0
      %v971 = vmax.f32 %v864, 0.0
      %v972 = vmax.f32 %v869, 0.0
      %v973 = vmax.f32 %v872, 0.0
      %v974 = vmax.f32 %v877, 0.0
      %v975 = vmax.f32 %v880, 0.0
      %v976 = vmax.f32 %v885, 0.0
      %v977 = vmax.f32 %v888, 0.0
      %v978 = vmax.f32 %v893, 0.0
      %v979 = vmax.f32 %v896, 0.0
      %v980 = vmax.f32 %v901, 0.0
      %v981 = vmax.f32 %v904, 0.0
      %v982 = vmax.f32 %v909, 0.0
      %v983 = vmax.f32 %v912, 0.0
      %v984 = vmax.f32 %v917, 0.0
      %v985 = vmax.f32 %v920, 0.0
      %v986 = vmax.f32 %v925, 0.0
      %v987 = vmax.f32 %v928, 0.0
      %v988 = vmax.f32 %v933, 0.0
      %v989 = vmax.f32 %v936, 0.0
      %v990 = vmax.f32 %v941, 0.0
      %v991 = vmax.f32 %v944, 0.0
      %v992 = vmax.f32 %v949, 0.0
      %v993 = vmax.f32 %v952, 0.0
      %v994 = vmax.f32 %v957, 0.0
      %v995 = vmax.f32 %v960, 0.0
      %v996 = vmax.f32 %v965, 0.0
      %v997 = vpack.c.bf16 %v971, %v970
      %v998 = vpack.c.bf16 %v973, %v972
      %v999 = vpack.c.bf16 %v975, %v974
      %v1000 = vpack.c.bf16 %v977, %v976
      %v1001 = vpack.c.bf16 %v979, %v978
      %v1002 = vpack.c.bf16 %v981, %v980
      %v1003 = vpack.c.bf16 %v983, %v982
      %v1004 = vpack.c.bf16 %v985, %v984
      %v1005 = vpack.c.bf16 %v987, %v986
      %v1006 = vpack.c.bf16 %v989, %v988
      %v1007 = vpack.c.bf16 %v991, %v990
      %v1008 = vpack.c.bf16 %v993, %v992
      %v1009 = vpack.c.bf16 %v995, %v994
      %v1010 = vpack.c.bf16 %v996, %v996
      %v1025 = vunpack.c.l.b16 %v997
      %v1026 = vunpack.c.h.b16 %v997
      %v1027 = vunpack.c.l.b16 %v998
      %v1028 = vunpack.c.h.b16 %v998
      %v1029 = vunpack.c.l.b16 %v999
      %v1030 = vunpack.c.h.b16 %v999
      %v1031 = vunpack.c.l.b16 %v1000
      %v1032 = vunpack.c.h.b16 %v1000
      %v1033 = vunpack.c.l.b16 %v1001
      %v1034 = vunpack.c.h.b16 %v1001
      %v1035 = vunpack.c.l.b16 %v1002
      %v1036 = vunpack.c.h.b16 %v1002
      %v1037 = vunpack.c.l.b16 %v1003
      %v1038 = vunpack.c.h.b16 %v1003
      %v1039 = vunpack.c.l.b16 %v1004
      %v1040 = vunpack.c.h.b16 %v1004
      %v1041 = vunpack.c.l.b16 %v1005
      %v1042 = vunpack.c.h.b16 %v1005
      %v1043 = vunpack.c.l.b16 %v1006
      %v1044 = vunpack.c.h.b16 %v1006
      %v1045 = vunpack.c.l.b16 %v1007
      %v1046 = vunpack.c.h.b16 %v1007
      %v1047 = vunpack.c.l.b16 %v1008
      %v1048 = vunpack.c.h.b16 %v1008
      %v1049 = vunpack.c.l.b16 %v1009
      %v1050 = vunpack.c.h.b16 %v1009
      %v1051 = vunpack.c.l.b16 %v1010
      %v1052 = vpack.c.b16 %v1025, %v1025
      %v1053 = vpack.c.b16 %v1026, %v1026
      %v1054 = vpack.c.b16 %v1027, %v1027
      %v1055 = vpack.c.b16 %v1028, %v1028
      %v1056 = vpack.c.b16 %v1029, %v1029
      %v1057 = vpack.c.b16 %v1030, %v1030
      %v1058 = vpack.c.b16 %v1031, %v1031
      %v1059 = vpack.c.b16 %v1032, %v1032
      %v1060 = vpack.c.b16 %v1033, %v1033
      %v1061 = vpack.c.b16 %v1034, %v1034
      %v1062 = vpack.c.b16 %v1035, %v1035
      %v1063 = vpack.c.b16 %v1036, %v1036
      %v1064 = vpack.c.b16 %v1037, %v1037
      %v1065 = vpack.c.b16 %v1038, %v1038
      %v1066 = vpack.c.b16 %v1039, %v1039
      %v1067 = vpack.c.b16 %v1040, %v1040
      %v1068 = vpack.c.b16 %v1041, %v1041
      %v1069 = vpack.c.b16 %v1042, %v1042
      %v1070 = vpack.c.b16 %v1043, %v1043
      %v1071 = vpack.c.b16 %v1044, %v1044
      %v1072 = vpack.c.b16 %v1045, %v1045
      %v1073 = vpack.c.b16 %v1046, %v1046
      %v1074 = vpack.c.b16 %v1047, %v1047
      %v1075 = vpack.c.b16 %v1048, %v1048
      %v1076 = vpack.c.b16 %v1049, %v1049
      %v1077 = vpack.c.b16 %v1050, %v1050
      %v1078 = vpack.c.b16 %v1051, %v1051
      %vm1106 = vcmask 257024
      %1107 = vst.msk [vmem:[%s175] sm:$0xf] %vm1106, %v1052
      %1108 = vst.msk [vmem:[%s175 + $0x4] sm:$0xf] %vm1106, %v1053
      %1109 = vst.msk [vmem:[%s175 + $0x8] sm:$0xf] %vm1106, %v1054
      %1110 = vst.msk [vmem:[%s175 + $0xc] sm:$0xf] %vm1106, %v1055
      %1111 = vst.msk [vmem:[%s175 + $0x10] sm:$0xf] %vm1106, %v1056
      %1112 = vst.msk [vmem:[%s175 + $0x14] sm:$0xf] %vm1106, %v1057
      %1113 = vst.msk [vmem:[%s175 + $0x18] sm:$0xf] %vm1106, %v1058
      %1114 = vst.msk [vmem:[%s175 + $0x1c] sm:$0xf] %vm1106, %v1059
      %1115 = vst.msk [vmem:[%s175 + $0x20] sm:$0xf] %vm1106, %v1060
      %1116 = vst.msk [vmem:[%s175 + $0x24] sm:$0xf] %vm1106, %v1061
      %1117 = vst.msk [vmem:[%s175 + $0x28] sm:$0xf] %vm1106, %v1062
      %1118 = vst.msk [vmem:[%s175 + $0x2c] sm:$0xf] %vm1106, %v1063
      %1119 = vst.msk [vmem:[%s175 + $0x30] sm:$0xf] %vm1106, %v1064
      %1120 = vst.msk [vmem:[%s175 + $0x34] sm:$0xf] %vm1106, %v1065
      %1121 = vst.msk [vmem:[%s175 + $0x38] sm:$0xf] %vm1106, %v1066
      %1122 = vst.msk [vmem:[%s175 + $0x3c] sm:$0xf] %vm1106, %v1067
      %1123 = vst.msk [vmem:[%s175 + $0x40] sm:$0xf] %vm1106, %v1068
      %1124 = vst.msk [vmem:[%s175 + $0x44] sm:$0xf] %vm1106, %v1069
      %1125 = vst.msk [vmem:[%s175 + $0x48] sm:$0xf] %vm1106, %v1070
      %1126 = vst.msk [vmem:[%s175 + $0x4c] sm:$0xf] %vm1106, %v1071
      %1127 = vst.msk [vmem:[%s175 + $0x50] sm:$0xf] %vm1106, %v1072
      %1128 = vst.msk [vmem:[%s175 + $0x54] sm:$0xf] %vm1106, %v1073
      %1129 = vst.msk [vmem:[%s175 + $0x58] sm:$0xf] %vm1106, %v1074
      %1130 = vst.msk [vmem:[%s175 + $0x5c] sm:$0xf] %vm1106, %v1075
      %1131 = vst.msk [vmem:[%s175 + $0x60] sm:$0xf] %vm1106, %v1076
      %1132 = vst.msk [vmem:[%s175 + $0x64] sm:$0xf] %vm1106, %v1077
      %1133 = vst.msk [vmem:[%s175 + $0x68] sm:$0xf] %vm1106, %v1078
      %s1134 = smul.u32 27, %s14
      %p1135 = scmp.lt.s32.totalorder %s1134, 53
      %s1136 = scalar_select %p1135, %s1134, 53
      %s1137 = smul.addr %s1136, 4
      %s1138 = scalar_lea.vmem %s3, %s1137
      // Predicated region
      $region33: #{cnn3d_forward.3} parent=31 // pred_check
        %p1139 = pneg %p100
      $region34: #{cnn3d_forward.3} parent=31 // pred_check_branch
        %1141 = sbr.rel (%p1139) target = $region36
      $region35: #{cnn3d_forward.3} parent=31 // pred_region
        %s1142 = smul.u32 27, %s14
      $region36: #{cnn3d_forward.3} parent=31 // pred_fallthru
        _
    $region32: #{cnn3d_forward.3} parent=5 // pred_fallthru
      _
    %p1143 = scmp.le.s32.totalorder 2, %s9
    // Predicated region
    $region37: #{cnn3d_forward.3} parent=5 // pred_check
      %p1144 = pneg %p1143
    $region38: #{cnn3d_forward.3} parent=5 // pred_check_branch
      %1146 = sbr.rel (%p1144) target = $region40
    $region39: #{cnn3d_forward.3} parent=5 // pred_region
      %s1147 = ssub.s32 %s9, 2
      // Predicated region
      $region41: #{cnn3d_forward.3} parent=39 // pred_check
        %p1148 = pneg %p106
      $region42: #{cnn3d_forward.3} parent=39 // pred_check_branch
        %1150 = sbr.rel (%p1148) target = $region44
      $region43: #{cnn3d_forward.3} parent=39 // pred_region
        %s1151 = smul.u32 27, %s15
        %p1152 = scmp.lt.s32.totalorder %s1151, 53
        %s1153 = scalar_select %p1152, %s1151, 53
        %s1154 = smul.addr %s1153, 4
        %s1155 = scalar_lea.vmem %s3, %s1154
      $region44: #{cnn3d_forward.3} parent=39 // pred_fallthru
        _
    $region40: #{cnn3d_forward.3} parent=5 // pred_fallthru
      _
  $region6: #{cnn3d_forward.3} parent=0 // loop_footer
    %s13 = sadd.s32 1, %s9
  $region7: #{cnn3d_forward.3} parent=0 // loop_footer_branch
    %8 = sbr.rel target = $region3
  $region8: #{cnn3d_forward.3} parent=0 // loop_exit
    _

// kernel: cnn3d_forward.4
$region0: #{cnn3d_forward.4}
  #allocation0 [shape = 'u32[]', space=smem, size = 0x4, offset = 0x4, fixed_abs, tag = 'smem constant byte address 0x4 - core index']
  #allocation1 [shape = 'u32[144,128]{1,0:T(1,128)}', space=vmem, size = 0x12000, scoped, tag = 'internal scratch']
  %s0 = inlined_call_operand.vmem [shape: bf16[16,864], index: 0, kind: input, shape index: {}]
  %s1 = inlined_call_operand.vmem [shape: bf16[864,48], index: 1, kind: input, shape index: {}]
  %s2 = inlined_call_operand.vmem [shape: f32[1,48], index: 2, kind: input, shape index: {}]
  %s3 = inlined_call_operand.vmem [shape: bf16[16,48], index: 3, kind: output, shape index: {}]
  %s4 = sld [smem:[#allocation0]]
  $region45: #{cnn3d_forward.4} parent=0
    _
  %s6 = ssub.s32 1, %s4
  %s7 = scalar_select 0, %s6, %s4
  loop: start=0, step=1, limit=4
  $region2: #{cnn3d_forward.4} parent=0 // loop_pre_header
    _
  $region3: #{cnn3d_forward.4} parent=0 // loop_header
    %s9 = sphi 0, %s13
    %p10 = scmp.ge.s32.totalorder %s9, 4
    %s19 = sphi 0, %s21
    %s22 = sphi 0, %s19
    %s23 = sphi 0, %s22
    %s39 = sphi 0, %s23
    %s43 = sphi 0, %s43
    %s45 = sphi 0, %s43
    %s46 = sphi 0, %s45
    %s60 = sphi 0, %s46
    %s64 = sphi 0, %s64
    %s66 = sphi 0, %s64
    %s67 = sphi 0, %s66
    %s81 = sphi 0, %s67
    %s87 = sphi 0, %s89
    %s90 = sphi 0, %s87
    %s91 = sphi 0, %s90
    %s107 = sphi 0, %s91
  $region4: #{cnn3d_forward.4} parent=0 // loop_header_branch
    %12 = sbr.rel (%p10) target = $region8
  $region5: #{cnn3d_forward.4} parent=0 // loop_body
    %s14 = ssub.s32 %s9, 1
    %s15 = ssub.s32 %s9, 2
    %s16 = sadd.s32 %s9, 1
    %s17 = ssub.s32 %s9, %s16
    %p18 = scmp.eq.s32.totalorder %s17, 0
    %s20 = sadd.s32 %s19, 1
    %s21 = scalar_select %p18, %s19, %s20
    %p24 = pneg %p18
    %p25 = scmp.eq.s32.totalorder %s9, 1
    %p26 = por %p24, %p25
    %p27 = scmp.ne.s32.totalorder %s19, %s22
    %p28 = scmp.eq.s32.totalorder %s9, 0
    %p29 = por %p27, %p28
    %p30 = scmp.ne.s32.totalorder %s19, %s22
    %p31 = scmp.eq.s32.totalorder %s14, 1
    %p32 = por %p30, %p31
    %p33 = scmp.ne.s32.totalorder %s22, %s23
    %p34 = scmp.eq.s32.totalorder %s14, 0
    %p35 = por %p33, %p34
    %p36 = scmp.ne.s32.totalorder %s22, %s23
    %p37 = scmp.eq.s32.totalorder %s15, 1
    %p38 = por %p36, %p37
    %p40 = scmp.ne.s32.totalorder %s23, %s39
    %p41 = scmp.eq.s32.totalorder %s15, 0
    %p42 = por %p40, %p41
    %s44 = sadd.s32 %s43, 1
    %p47 = scmp.eq.s32.totalorder %s9, 1
    %p48 = scmp.ne.s32.totalorder %s43, %s45
    %p49 = scmp.eq.s32.totalorder %s9, 0
    %p50 = por %p48, %p49
    %p51 = scmp.ne.s32.totalorder %s43, %s45
    %p52 = scmp.eq.s32.totalorder %s14, 1
    %p53 = por %p51, %p52
    %p54 = scmp.ne.s32.totalorder %s45, %s46
    %p55 = scmp.eq.s32.totalorder %s14, 0
    %p56 = por %p54, %p55
    %p57 = scmp.ne.s32.totalorder %s45, %s46
    %p58 = scmp.eq.s32.totalorder %s15, 1
    %p59 = por %p57, %p58
    %p61 = scmp.ne.s32.totalorder %s46, %s60
    %p62 = scmp.eq.s32.totalorder %s15, 0
    %p63 = por %p61, %p62
    %s65 = sadd.s32 %s64, 1
    %p68 = scmp.eq.s32.totalorder %s9, 1
    %p69 = scmp.ne.s32.totalorder %s64, %s66
    %p70 = scmp.eq.s32.totalorder %s9, 0
    %p71 = por %p69, %p70
    %p72 = scmp.ne.s32.totalorder %s64, %s66
    %p73 = scmp.eq.s32.totalorder %s14, 1
    %p74 = por %p72, %p73
    %p75 = scmp.ne.s32.totalorder %s66, %s67
    %p76 = scmp.eq.s32.totalorder %s14, 0
    %p77 = por %p75, %p76
    %p78 = scmp.ne.s32.totalorder %s66, %s67
    %p79 = scmp.eq.s32.totalorder %s15, 1
    %p80 = por %p78, %p79
    %p82 = scmp.ne.s32.totalorder %s67, %s81
    %p83 = scmp.eq.s32.totalorder %s15, 0
    %p84 = por %p82, %p83
    %s85 = ssub.s32 %s9, %s16
    %p86 = scmp.eq.s32.totalorder %s85, 0
    %s88 = sadd.s32 %s87, 1
    %s89 = scalar_select %p86, %s87, %s88
    %p92 = pneg %p86
    %p93 = scmp.eq.s32.totalorder %s9, 1
    %p94 = por %p92, %p93
    %p95 = scmp.ne.s32.totalorder %s87, %s90
    %p96 = scmp.eq.s32.totalorder %s9, 0
    %p97 = por %p95, %p96
    %p98 = scmp.ne.s32.totalorder %s87, %s90
    %p99 = scmp.eq.s32.totalorder %s14, 1
    %p100 = por %p98, %p99
    %p101 = scmp.ne.s32.totalorder %s90, %s91
    %p102 = scmp.eq.s32.totalorder %s14, 0
    %p103 = por %p101, %p102
    %p104 = scmp.ne.s32.totalorder %s90, %s91
    %p105 = scmp.eq.s32.totalorder %s15, 1
    %p106 = por %p104, %p105
    %p108 = scmp.ne.s32.totalorder %s91, %s107
    %p109 = scmp.eq.s32.totalorder %s15, 0
    %p110 = por %p108, %p109
    %p111 = scmp.le.s32.totalorder 1, %s9
    %p112 = scmp.lt.s32.totalorder %s9, 3
    %p113 = pnand %p111, %p112
    %p114 = pneg %p113
    // Predicated region
    $region9: #{cnn3d_forward.4} parent=5 // pred_check
      _
    $region10: #{cnn3d_forward.4} parent=5 // pred_check_branch
      %116 = sbr.rel (%p113) target = $region12
    $region11: #{cnn3d_forward.4} parent=5 // pred_region
      %s117 = ssub.s32 %s9, 1
      // Predicated region
      $region13: #{cnn3d_forward.4} parent=11 // pred_check
        %p118 = pneg %p56
      $region14: #{cnn3d_forward.4} parent=11 // pred_check_branch
        %120 = sbr.rel (%p118) target = $region16
      $region15: #{cnn3d_forward.4} parent=11 // pred_region
        _
      $region16: #{cnn3d_forward.4} parent=11 // pred_fallthru
        _
      // Predicated region
      $region17: #{cnn3d_forward.4} parent=11 // pred_check
        %p121 = pneg %p77
      $region18: #{cnn3d_forward.4} parent=11 // pred_check_branch
        %123 = sbr.rel (%p121) target = $region20
      $region19: #{cnn3d_forward.4} parent=11 // pred_region
        _
      $region20: #{cnn3d_forward.4} parent=11 // pred_fallthru
        _
    $region12: #{cnn3d_forward.4} parent=5 // pred_fallthru
      _
    %p124 = scmp.lt.s32.totalorder %s9, 2
    // Predicated region
    $region21: #{cnn3d_forward.4} parent=5 // pred_check
      %p125 = pneg %p124
    $region22: #{cnn3d_forward.4} parent=5 // pred_check_branch
      %127 = sbr.rel (%p125) target = $region24
    $region23: #{cnn3d_forward.4} parent=5 // pred_region
      // Predicated region
      $region25: #{cnn3d_forward.4} parent=23 // pred_check
        %p128 = pneg %p29
      $region26: #{cnn3d_forward.4} parent=23 // pred_check_branch
        %130 = sbr.rel (%p128) target = $region28
      $region27: #{cnn3d_forward.4} parent=23 // pred_region
        %p131 = scmp.lt.s32.totalorder %s9, 1
        %s132 = scalar_select %p131, %s9, 1
        %s133 = smul.addr %s132, 7
        %s134 = smul.addr %s133, 4
        %s135 = scalar_lea.vmem %s0, %s134
      $region28: #{cnn3d_forward.4} parent=23 // pred_fallthru
        _
    $region24: #{cnn3d_forward.4} parent=5 // pred_fallthru
      _
    %p136 = scmp.le.s32.totalorder 1, %s9
    %p137 = scmp.lt.s32.totalorder %s9, 3
    %p138 = pnand %p136, %p137
    %p139 = pneg %p138
    // Predicated region
    $region29: #{cnn3d_forward.4} parent=5 // pred_check
      _
    $region30: #{cnn3d_forward.4} parent=5 // pred_check_branch
      %141 = sbr.rel (%p138) target = $region32
    $region31: #{cnn3d_forward.4} parent=5 // pred_region
      %s142 = ssub.s32 %s9, 1
      %p143 = scmp.lt.s32.totalorder %s14, 1
      %s144 = scalar_select %p143, %s14, 1
      %s145 = smul.addr %s144, 7
      %s146 = smul.addr %s145, 4
      %s147 = scalar_lea.vmem %s0, %s146
      %p148 = pneg %p35
      %p149 = pneg %p32
      %p150 = pneg %p56
      %p151 = pneg %p53
      %p152 = pneg %p77
      %p153 = pneg %p74
      %p154 = pneg %p103
      %p155 = pneg %p100
      %p156 = scmp.lt.s32.totalorder %s14, 1
      %s157 = scalar_select %p156, %s14, 1
      %s158 = smul.addr %s157, 4
      %s159 = scalar_lea.vmem %s3, %s158
      %p160 = scmp.lt.s32.totalorder %s14, 1
      %s161 = scalar_select %p160, %s14, 1
      %s162 = smul.addr %s161, 7
      %s163 = smul.addr %s162, 4
      %s164 = scalar_lea.vmem %s0, %s163
      %p165 = scmp.lt.s32.totalorder %s14, 1
      %s166 = scalar_select %p165, %s14, 1
      %s167 = smul.addr %s166, 4
      %s168 = scalar_lea.vmem %s3, %s167
      %v170 = vld [vmem:[%s164] sm:$0xff]
      %v171 = vld [vmem:[%s164 + $0x8] sm:$0xff]
      %v172 = vld [vmem:[%s164 + $0x10] sm:$0xff]
      %v173 = vld [vmem:[%s164 + $0x18] sm:$0xf]
      %v174 = vld [vmem:[%s1] sm:$0xf]
      %v175 = vld [vmem:[%s1 + $0x4] sm:$0xf]
      %v176 = vld [vmem:[%s1 + $0x8] sm:$0xf]
      %v177 = vld [vmem:[%s1 + $0xc] sm:$0xf]
      %v178 = vld [vmem:[%s1 + $0x10] sm:$0xf]
      %v179 = vld [vmem:[%s1 + $0x14] sm:$0xf]
      %v180 = vld [vmem:[%s1 + $0x18] sm:$0xf]
      %v181 = vld [vmem:[%s1 + $0x1c] sm:$0xf]
      %v182 = vld [vmem:[%s1 + $0x20] sm:$0xf]
      %v183 = vld [vmem:[%s1 + $0x24] sm:$0xf]
      %v184 = vld [vmem:[%s1 + $0x28] sm:$0xf]
      %v185 = vld [vmem:[%s1 + $0x2c] sm:$0xf]
      %v186 = vld [vmem:[%s1 + $0x30] sm:$0xf]
      %v187 = vld [vmem:[%s1 + $0x34] sm:$0xf]
      %v188 = vld [vmem:[%s1 + $0x38] sm:$0xf]
      %v189 = vld [vmem:[%s1 + $0x3c] sm:$0xf]
      %v190 = vld [vmem:[%s1 + $0x40] sm:$0xf]
      %v191 = vld [vmem:[%s1 + $0x44] sm:$0xf]
      %v192 = vld [vmem:[%s1 + $0x48] sm:$0xf]
      %v193 = vld [vmem:[%s1 + $0x4c] sm:$0xf]
      %v194 = vld [vmem:[%s1 + $0x50] sm:$0xf]
      %v195 = vld [vmem:[%s1 + $0x54] sm:$0xf]
      %v196 = vld [vmem:[%s1 + $0x58] sm:$0xf]
      %v197 = vld [vmem:[%s1 + $0x5c] sm:$0xf]
      %v198 = vld [vmem:[%s1 + $0x60] sm:$0xf]
      %v199 = vld [vmem:[%s1 + $0x64] sm:$0xf]
      %v200 = vld [vmem:[%s1 + $0x68] sm:$0xf]
      %v201 = vld [vmem:[%s1 + $0x6c] sm:$0xf]
      %v202 = vld [vmem:[%s1 + $0x70] sm:$0xf]
      %v203 = vld [vmem:[%s1 + $0x74] sm:$0xf]
      %v204 = vld [vmem:[%s1 + $0x78] sm:$0xf]
      %v205 = vld [vmem:[%s1 + $0x7c] sm:$0xf]
      %v206 = vld [vmem:[%s1 + $0x80] sm:$0xf]
      %v207 = vld [vmem:[%s1 + $0x84] sm:$0xf]
      %v208 = vld [vmem:[%s1 + $0x88] sm:$0xf]
      %v209 = vld [vmem:[%s1 + $0x8c] sm:$0xf]
      %v210 = vld [vmem:[%s1 + $0x90] sm:$0xf]
      %v211 = vld [vmem:[%s1 + $0x94] sm:$0xf]
      %v212 = vld [vmem:[%s1 + $0x98] sm:$0xf]
      %v213 = vld [vmem:[%s1 + $0x9c] sm:$0xf]
      %v214 = vld [vmem:[%s1 + $0xa0] sm:$0xf]
      %v215 = vld [vmem:[%s1 + $0xa4] sm:$0xf]
      %v216 = vld [vmem:[%s1 + $0xa8] sm:$0xf]
      %v217 = vld [vmem:[%s1 + $0xac] sm:$0xf]
      %v218 = vld [vmem:[%s1 + $0xb0] sm:$0xf]
      %v219 = vld [vmem:[%s1 + $0xb4] sm:$0xf]
      %v220 = vld [vmem:[%s1 + $0xb8] sm:$0xf]
      %v221 = vld [vmem:[%s1 + $0xbc] sm:$0xf]
      %v222 = vld [vmem:[%s1 + $0xc0] sm:$0xf]
      %v223 = vld [vmem:[%s1 + $0xc4] sm:$0xf]
      %v224 = vld [vmem:[%s1 + $0xc8] sm:$0xf]
      %v225 = vld [vmem:[%s1 + $0xcc] sm:$0xf]
      %v226 = vld [vmem:[%s1 + $0xd0] sm:$0xf]
      %v227 = vld [vmem:[%s1 + $0xd4] sm:$0xf]
      %v228 = vld [vmem:[%s1 + $0xd8] sm:$0xf]
      %v229 = vld [vmem:[%s1 + $0xdc] sm:$0xf]
      %v230 = vld [vmem:[%s1 + $0xe0] sm:$0xf]
      %v231 = vld [vmem:[%s1 + $0xe4] sm:$0xf]
      %v232 = vld [vmem:[%s1 + $0xe8] sm:$0xf]
      %v233 = vld [vmem:[%s1 + $0xec] sm:$0xf]
      %v234 = vld [vmem:[%s1 + $0xf0] sm:$0xf]
      %v235 = vld [vmem:[%s1 + $0xf4] sm:$0xf]
      %v236 = vld [vmem:[%s1 + $0xf8] sm:$0xf]
      %v237 = vld [vmem:[%s1 + $0xfc] sm:$0xf]
      %v238 = vld [vmem:[%s1 + $0x100] sm:$0xf]
      %v239 = vld [vmem:[%s1 + $0x104] sm:$0xf]
      %v240 = vld [vmem:[%s1 + $0x108] sm:$0xf]
      %v241 = vld [vmem:[%s1 + $0x10c] sm:$0xf]
      %v242 = vld [vmem:[%s1 + $0x110] sm:$0xf]
      %v243 = vld [vmem:[%s1 + $0x114] sm:$0xf]
      %v244 = vld [vmem:[%s1 + $0x118] sm:$0xf]
      %v245 = vld [vmem:[%s1 + $0x11c] sm:$0xf]
      %v246 = vld [vmem:[%s1 + $0x120] sm:$0xf]
      %v247 = vld [vmem:[%s1 + $0x124] sm:$0xf]
      %v248 = vld [vmem:[%s1 + $0x128] sm:$0xf]
      %v249 = vld [vmem:[%s1 + $0x12c] sm:$0xf]
      %v250 = vld [vmem:[%s1 + $0x130] sm:$0xf]
      %v251 = vld [vmem:[%s1 + $0x134] sm:$0xf]
      %v252 = vld [vmem:[%s1 + $0x138] sm:$0xf]
      %v253 = vld [vmem:[%s1 + $0x13c] sm:$0xf]
      %v254 = vld [vmem:[%s1 + $0x140] sm:$0xf]
      %v255 = vld [vmem:[%s1 + $0x144] sm:$0xf]
      %v256 = vld [vmem:[%s1 + $0x148] sm:$0xf]
      %v257 = vld [vmem:[%s1 + $0x14c] sm:$0xf]
      %v258 = vld [vmem:[%s1 + $0x150] sm:$0xf]
      %v259 = vld [vmem:[%s1 + $0x154] sm:$0xf]
      %v260 = vld [vmem:[%s1 + $0x158] sm:$0xf]
      %v261 = vld [vmem:[%s1 + $0x15c] sm:$0xf]
      %v262 = vld [vmem:[%s1 + $0x160] sm:$0xf]
      %v263 = vld [vmem:[%s1 + $0x164] sm:$0xf]
      %v264 = vld [vmem:[%s1 + $0x168] sm:$0xf]
      %v265 = vld [vmem:[%s1 + $0x16c] sm:$0xf]
      %v266 = vld [vmem:[%s1 + $0x170] sm:$0xf]
      %v267 = vld [vmem:[%s1 + $0x174] sm:$0xf]
      %v268 = vld [vmem:[%s1 + $0x178] sm:$0xf]
      %v269 = vld [vmem:[%s1 + $0x17c] sm:$0xf]
      %v270 = vld [vmem:[%s1 + $0x180] sm:$0xf]
      %v271 = vld [vmem:[%s1 + $0x184] sm:$0xf]
      %v272 = vld [vmem:[%s1 + $0x188] sm:$0xf]
      %v273 = vld [vmem:[%s1 + $0x18c] sm:$0xf]
      %v274 = vld [vmem:[%s1 + $0x190] sm:$0xf]
      %v275 = vld [vmem:[%s1 + $0x194] sm:$0xf]
      %v276 = vld [vmem:[%s1 + $0x198] sm:$0xf]
      %v277 = vld [vmem:[%s1 + $0x19c] sm:$0xf]
      %v278 = vld [vmem:[%s1 + $0x1a0] sm:$0xf]
      %v279 = vld [vmem:[%s1 + $0x1a4] sm:$0xf]
      %v280 = vld [vmem:[%s1 + $0x1a8] sm:$0xf]
      %v281 = vld [vmem:[%s1 + $0x1ac] sm:$0xf]
      %v282 = vld [vmem:[%s2] sm:$0x1]
      %v284 = vlaneseq
      %v285 = vshrl.u32 %v284, 7
      %v286 = vsub.s32 0, %v285
      %v287 = vrot.slane %v282, %v286
      %v293 = vunpack.c.l.b16 %v170
      %v294 = vunpack.c.h.b16 %v170
      %v295 = vunpack.c.l.b16 %v171
      %v296 = vunpack.c.h.b16 %v171
      %v297 = vunpack.c.l.b16 %v172
      %v298 = vunpack.c.h.b16 %v172
      %v299 = vunpack.c.l.b16 %v173
      %v300 = vpack.c.b16 %v293, %v293
      %v301 = vpack.c.b16 %v294, %v294
      %v302 = vpack.c.b16 %v295, %v295
      %v303 = vpack.c.b16 %v296, %v296
      %v304 = vpack.c.b16 %v297, %v297
      %v305 = vpack.c.b16 %v298, %v298
      %v306 = vpack.c.b16 %v299, %v299
      %v421 = vunpack.c.l.b16 %v174
      %v422 = vunpack.c.l.b16 %v175
      %v423 = vunpack.c.l.b16 %v176
      %v424 = vunpack.c.l.b16 %v177
      %v425 = vunpack.c.l.b16 %v178
      %v426 = vunpack.c.l.b16 %v179
      %v427 = vunpack.c.l.b16 %v180
      %v428 = vunpack.c.l.b16 %v181
      %v429 = vunpack.c.l.b16 %v182
      %v430 = vunpack.c.l.b16 %v183
      %v431 = vunpack.c.l.b16 %v184
      %v432 = vunpack.c.l.b16 %v185
      %v433 = vunpack.c.l.b16 %v186
      %v434 = vunpack.c.l.b16 %v187
      %v435 = vunpack.c.l.b16 %v188
      %v436 = vunpack.c.l.b16 %v189
      %v437 = vunpack.c.l.b16 %v190
      %v438 = vunpack.c.l.b16 %v191
      %v439 = vunpack.c.l.b16 %v192
      %v440 = vunpack.c.l.b16 %v193
      %v441 = vunpack.c.l.b16 %v194
      %v442 = vunpack.c.l.b16 %v195
      %v443 = vunpack.c.l.b16 %v196
      %v444 = vunpack.c.l.b16 %v197
      %v445 = vunpack.c.l.b16 %v198
      %v446 = vunpack.c.l.b16 %v199
      %v447 = vunpack.c.l.b16 %v200
      %v448 = vunpack.c.l.b16 %v201
      %v449 = vunpack.c.l.b16 %v202
      %v450 = vunpack.c.l.b16 %v203
      %v451 = vunpack.c.l.b16 %v204
      %v452 = vunpack.c.l.b16 %v205
      %v453 = vunpack.c.l.b16 %v206
      %v454 = vunpack.c.l.b16 %v207
      %v455 = vunpack.c.l.b16 %v208
      %v456 = vunpack.c.l.b16 %v209
      %v457 = vunpack.c.l.b16 %v210
      %v458 = vunpack.c.l.b16 %v211
      %v459 = vunpack.c.l.b16 %v212
      %v460 = vunpack.c.l.b16 %v213
      %v461 = vunpack.c.l.b16 %v214
      %v462 = vunpack.c.l.b16 %v215
      %v463 = vunpack.c.l.b16 %v216
      %v464 = vunpack.c.l.b16 %v217
      %v465 = vunpack.c.l.b16 %v218
      %v466 = vunpack.c.l.b16 %v219
      %v467 = vunpack.c.l.b16 %v220
      %v468 = vunpack.c.l.b16 %v221
      %v469 = vunpack.c.l.b16 %v222
      %v470 = vunpack.c.l.b16 %v223
      %v471 = vunpack.c.l.b16 %v224
      %v472 = vunpack.c.l.b16 %v225
      %v473 = vunpack.c.l.b16 %v226
      %v474 = vunpack.c.l.b16 %v227
      %v475 = vunpack.c.l.b16 %v228
      %v476 = vunpack.c.l.b16 %v229
      %v477 = vunpack.c.l.b16 %v230
      %v478 = vunpack.c.l.b16 %v231
      %v479 = vunpack.c.l.b16 %v232
      %v480 = vunpack.c.l.b16 %v233
      %v481 = vunpack.c.l.b16 %v234
      %v482 = vunpack.c.l.b16 %v235
      %v483 = vunpack.c.l.b16 %v236
      %v484 = vunpack.c.l.b16 %v237
      %v485 = vunpack.c.l.b16 %v238
      %v486 = vunpack.c.l.b16 %v239
      %v487 = vunpack.c.l.b16 %v240
      %v488 = vunpack.c.l.b16 %v241
      %v489 = vunpack.c.l.b16 %v242
      %v490 = vunpack.c.l.b16 %v243
      %v491 = vunpack.c.l.b16 %v244
      %v492 = vunpack.c.l.b16 %v245
      %v493 = vunpack.c.l.b16 %v246
      %v494 = vunpack.c.l.b16 %v247
      %v495 = vunpack.c.l.b16 %v248
      %v496 = vunpack.c.l.b16 %v249
      %v497 = vunpack.c.l.b16 %v250
      %v498 = vunpack.c.l.b16 %v251
      %v499 = vunpack.c.l.b16 %v252
      %v500 = vunpack.c.l.b16 %v253
      %v501 = vunpack.c.l.b16 %v254
      %v502 = vunpack.c.l.b16 %v255
      %v503 = vunpack.c.l.b16 %v256
      %v504 = vunpack.c.l.b16 %v257
      %v505 = vunpack.c.l.b16 %v258
      %v506 = vunpack.c.l.b16 %v259
      %v507 = vunpack.c.l.b16 %v260
      %v508 = vunpack.c.l.b16 %v261
      %v509 = vunpack.c.l.b16 %v262
      %v510 = vunpack.c.l.b16 %v263
      %v511 = vunpack.c.l.b16 %v264
      %v512 = vunpack.c.l.b16 %v265
      %v513 = vunpack.c.l.b16 %v266
      %v514 = vunpack.c.l.b16 %v267
      %v515 = vunpack.c.l.b16 %v268
      %v516 = vunpack.c.l.b16 %v269
      %v517 = vunpack.c.l.b16 %v270
      %v518 = vunpack.c.l.b16 %v271
      %v519 = vunpack.c.l.b16 %v272
      %v520 = vunpack.c.l.b16 %v273
      %v521 = vunpack.c.l.b16 %v274
      %v522 = vunpack.c.l.b16 %v275
      %v523 = vunpack.c.l.b16 %v276
      %v524 = vunpack.c.l.b16 %v277
      %v525 = vunpack.c.l.b16 %v278
      %v526 = vunpack.c.l.b16 %v279
      %v527 = vunpack.c.l.b16 %v280
      %v528 = vunpack.c.l.b16 %v281
      %v529 = vpack.c.b16 %v422, %v421
      %v530 = vpack.c.b16 %v424, %v423
      %v531 = vpack.c.b16 %v426, %v425
      %v532 = vpack.c.b16 %v428, %v427
      %v533 = vpack.c.b16 %v430, %v429
      %v534 = vpack.c.b16 %v432, %v431
      %v535 = vpack.c.b16 %v434, %v433
      %v536 = vpack.c.b16 %v436, %v435
      %v537 = vpack.c.b16 %v438, %v437
      %v538 = vpack.c.b16 %v440, %v439
      %v539 = vpack.c.b16 %v442, %v441
      %v540 = vpack.c.b16 %v444, %v443
      %v541 = vpack.c.b16 %v446, %v445
      %v542 = vpack.c.b16 %v448, %v447
      %v543 = vpack.c.b16 %v450, %v449
      %v544 = vpack.c.b16 %v452, %v451
      %v545 = vpack.c.b16 %v454, %v453
      %v546 = vpack.c.b16 %v456, %v455
      %v547 = vpack.c.b16 %v458, %v457
      %v548 = vpack.c.b16 %v460, %v459
      %v549 = vpack.c.b16 %v462, %v461
      %v550 = vpack.c.b16 %v464, %v463
      %v551 = vpack.c.b16 %v466, %v465
      %v552 = vpack.c.b16 %v468, %v467
      %v553 = vpack.c.b16 %v470, %v469
      %v554 = vpack.c.b16 %v472, %v471
      %v555 = vpack.c.b16 %v474, %v473
      %v556 = vpack.c.b16 %v476, %v475
      %v557 = vpack.c.b16 %v478, %v477
      %v558 = vpack.c.b16 %v480, %v479
      %v559 = vpack.c.b16 %v482, %v481
      %v560 = vpack.c.b16 %v484, %v483
      %v561 = vpack.c.b16 %v486, %v485
      %v562 = vpack.c.b16 %v488, %v487
      %v563 = vpack.c.b16 %v490, %v489
      %v564 = vpack.c.b16 %v492, %v491
      %v565 = vpack.c.b16 %v494, %v493
      %v566 = vpack.c.b16 %v496, %v495
      %v567 = vpack.c.b16 %v498, %v497
      %v568 = vpack.c.b16 %v500, %v499
      %v569 = vpack.c.b16 %v502, %v501
      %v570 = vpack.c.b16 %v504, %v503
      %v571 = vpack.c.b16 %v506, %v505
      %v572 = vpack.c.b16 %v508, %v507
      %v573 = vpack.c.b16 %v510, %v509
      %v574 = vpack.c.b16 %v512, %v511
      %v575 = vpack.c.b16 %v514, %v513
      %v576 = vpack.c.b16 %v516, %v515
      %v577 = vpack.c.b16 %v518, %v517
      %v578 = vpack.c.b16 %v520, %v519
      %v579 = vpack.c.b16 %v522, %v521
      %v580 = vpack.c.b16 %v524, %v523
      %v581 = vpack.c.b16 %v526, %v525
      %v582 = vpack.c.b16 %v528, %v527
      %vm637 = vcmask 785408
      %v639 = vsel %vm637, %v306, 0
      %641 = vmatprep.subr.bf16.mxu0 0
      %642 = vmatpush1.bf16.msra.mxu0 %v529
      %643 = vmatprep.subr.bf16.mxu0 0
      %644 = vmatpush1.bf16.msra.mxu0 %v530
      %645 = vmatprep.subr.bf16.mxu0 0
      %646 = vmatpush1.bf16.msra.mxu0 %v531
      %647 = vmatprep.subr.bf16.mxu0 0
      %648 = vmatpush1.bf16.msra.mxu0 %v532
      %649 = vmatprep.subr.bf16.mxu0 0
      %650 = vmatpush1.bf16.msra.mxu0 %v533
      %651 = vmatprep.subr.bf16.mxu0 0
      %652 = vmatpush1.bf16.msra.mxu0 %v534
      %653 = vmatprep.subr.bf16.mxu0 0
      %654 = vmatpush1.bf16.msra.mxu0 %v535
      %655 = vmatprep.subr.bf16.mxu0 0
      %656 = vmatpush1.bf16.msra.mxu0 %v536
      %657 = vmatprep.subr.bf16.mxu0 0
      %658 = vmatpush1.bf16.msra.mxu0 %v537
      %659 = vmatprep.subr.bf16.mxu0 0
      %660 = vmatpush1.bf16.msra.mxu0 %v538
      %661 = vmatprep.subr.bf16.mxu0 0
      %662 = vmatpush1.bf16.msra.mxu0 %v539
      %663 = vmatprep.subr.bf16.mxu0 0
      %664 = vmatpush1.bf16.msra.mxu0 %v540
      %665 = vmatprep.subr.bf16.mxu0 0
      %666 = vmatpush1.bf16.msra.mxu0 %v541
      %667 = vmatprep.subr.bf16.mxu0 0
      %668 = vmatpush1.bf16.msra.mxu0 %v542
      %669 = vmatprep.subr.bf16.mxu0 0
      %670 = vmatpush1.bf16.msra.mxu0 %v543
      %671 = vmatprep.subr.bf16.mxu0 0
      %672 = vmatpush1.bf16.msra.mxu0 %v544
      %673 = vmatprep.mubr.bf16.mxu0 %v301
      %674 = vmatmul.mubr.bf16.gmra.mrb[0].mxu0 %v300
      %v675 = vpop.f32.mrb[0].mxu0
      %v676 = vadd.f32 %v287, %v675
      %v677 = vpop.f32.mrb[0].mxu0
      %v678 = vpop.f32.mrb[0].mxu0
      %v679 = vpop.f32.mrb[0].mxu0
      %680 = vdwg.mxu0
      %681 = vmatprep.subr.bf16.mxu0 0
      %682 = vmatpush1.bf16.msra.mxu0 %v545
      %683 = vmatprep.subr.bf16.mxu0 0
      %684 = vmatpush1.bf16.msra.mxu0 %v546
      %685 = vmatprep.subr.bf16.mxu0 0
      %686 = vmatpush1.bf16.msra.mxu0 %v547
      %687 = vmatprep.subr.bf16.mxu0 0
      %688 = vmatpush1.bf16.msra.mxu0 %v548
      %689 = vmatprep.subr.bf16.mxu0 0
      %690 = vmatpush1.bf16.msra.mxu0 %v549
      %691 = vmatprep.subr.bf16.mxu0 0
      %692 = vmatpush1.bf16.msra.mxu0 %v550
      %693 = vmatprep.subr.bf16.mxu0 0
      %694 = vmatpush1.bf16.msra.mxu0 %v551
      %695 = vmatprep.subr.bf16.mxu0 0
      %696 = vmatpush1.bf16.msra.mxu0 %v552
      %697 = vmatprep.subr.bf16.mxu0 0
      %698 = vmatpush1.bf16.msra.mxu0 %v553
      %699 = vmatprep.subr.bf16.mxu0 0
      %700 = vmatpush1.bf16.msra.mxu0 %v554
      %701 = vmatprep.subr.bf16.mxu0 0
      %702 = vmatpush1.bf16.msra.mxu0 %v555
      %703 = vmatprep.subr.bf16.mxu0 0
      %704 = vmatpush1.bf16.msra.mxu0 %v556
      %705 = vmatprep.subr.bf16.mxu0 0
      %706 = vmatpush1.bf16.msra.mxu0 %v557
      %707 = vmatprep.subr.bf16.mxu0 0
      %708 = vmatpush1.bf16.msra.mxu0 %v558
      %709 = vmatprep.subr.bf16.mxu0 0
      %710 = vmatpush1.bf16.msra.mxu0 %v559
      %711 = vmatprep.subr.bf16.mxu0 0
      %712 = vmatpush1.bf16.msra.mxu0 %v560
      %713 = vmatprep.mubr.bf16.mxu0 %v303
      %714 = vmatmul.mubr.bf16.gmra.mrb[0].mxu0 %v302
      %v715 = vpop.f32.mrb[0].mxu0
      %v716 = vadd.f32 %v676, %v715
      %v717 = vpop.f32.mrb[0].mxu0
      %v718 = vpop.f32.mrb[0].mxu0
      %v719 = vpop.f32.mrb[0].mxu0
      %720 = vdwg.mxu0
      %721 = vmatprep.subr.bf16.mxu0 0
      %722 = vmatpush1.bf16.msra.mxu0 %v561
      %723 = vmatprep.subr.bf16.mxu0 0
      %724 = vmatpush1.bf16.msra.mxu0 %v562
      %725 = vmatprep.subr.bf16.mxu0 0
      %726 = vmatpush1.bf16.msra.mxu0 %v563
      %727 = vmatprep.subr.bf16.mxu0 0
      %728 = vmatpush1.bf16.msra.mxu0 %v564
      %729 = vmatprep.subr.bf16.mxu0 0
      %730 = vmatpush1.bf16.msra.mxu0 %v565
      %731 = vmatprep.subr.bf16.mxu0 0
      %732 = vmatpush1.bf16.msra.mxu0 %v566
      %733 = vmatprep.subr.bf16.mxu0 0
      %734 = vmatpush1.bf16.msra.mxu0 %v567
      %735 = vmatprep.subr.bf16.mxu0 0
      %736 = vmatpush1.bf16.msra.mxu0 %v568
      %737 = vmatprep.subr.bf16.mxu0 0
      %738 = vmatpush1.bf16.msra.mxu0 %v569
      %739 = vmatprep.subr.bf16.mxu0 0
      %740 = vmatpush1.bf16.msra.mxu0 %v570
      %741 = vmatprep.subr.bf16.mxu0 0
      %742 = vmatpush1.bf16.msra.mxu0 %v571
      %743 = vmatprep.subr.bf16.mxu0 0
      %744 = vmatpush1.bf16.msra.mxu0 %v572
      %745 = vmatprep.subr.bf16.mxu0 0
      %746 = vmatpush1.bf16.msra.mxu0 %v573
      %747 = vmatprep.subr.bf16.mxu0 0
      %748 = vmatpush1.bf16.msra.mxu0 %v574
      %749 = vmatprep.subr.bf16.mxu0 0
      %750 = vmatpush1.bf16.msra.mxu0 %v575
      %751 = vmatprep.subr.bf16.mxu0 0
      %752 = vmatpush1.bf16.msra.mxu0 %v576
      %753 = vmatprep.mubr.bf16.mxu0 %v305
      %754 = vmatmul.mubr.bf16.gmra.mrb[0].mxu0 %v304
      %v755 = vpop.f32.mrb[0].mxu0
      %v756 = vadd.f32 %v716, %v755
      %v757 = vpop.f32.mrb[0].mxu0
      %v758 = vpop.f32.mrb[0].mxu0
      %v759 = vpop.f32.mrb[0].mxu0
      %760 = vdwg.mxu0
      %761 = vmatprep.subr.bf16.mxu0 0
      %762 = vmatpush1.bf16.msra.mxu0 %v577
      %763 = vmatprep.subr.bf16.mxu0 0
      %764 = vmatpush1.bf16.msra.mxu0 %v578
      %765 = vmatprep.subr.bf16.mxu0 0
      %766 = vmatpush1.bf16.msra.mxu0 %v579
      %767 = vmatprep.subr.bf16.mxu0 0
      %768 = vmatpush1.bf16.msra.mxu0 %v580
      %769 = vmatprep.subr.bf16.mxu0 0
      %770 = vmatpush1.bf16.msra.mxu0 %v581
      %771 = vmatprep.subr.bf16.mxu0 0
      %772 = vmatpush1.bf16.msra.mxu0 %v582
      %773 = vmatprep.subr.bf16.mxu0 0
      %774 = vmatpush1.bf16.msra.mxu0 0
      %775 = vmatprep.subr.bf16.mxu0 0
      %776 = vmatpush1.bf16.msra.mxu0 0
      %777 = vmatprep.subr.bf16.mxu0 0
      %778 = vmatpush1.bf16.msra.mxu0 0
      %779 = vmatprep.subr.bf16.mxu0 0
      %780 = vmatpush1.bf16.msra.mxu0 0
      %781 = vmatprep.subr.bf16.mxu0 0
      %782 = vmatpush1.bf16.msra.mxu0 0
      %783 = vmatprep.subr.bf16.mxu0 0
      %784 = vmatpush1.bf16.msra.mxu0 0
      %785 = vmatprep.subr.bf16.mxu0 0
      %786 = vmatpush1.bf16.msra.mxu0 0
      %787 = vmatprep.subr.bf16.mxu0 0
      %788 = vmatpush1.bf16.msra.mxu0 0
      %789 = vmatprep.subr.bf16.mxu0 0
      %790 = vmatpush1.bf16.msra.mxu0 0
      %791 = vmatprep.subr.bf16.mxu0 0
      %792 = vmatpush1.bf16.msra.mxu0 0
      %793 = vmatprep.mubr.bf16.mxu0 0
      %794 = vmatmul.mubr.bf16.gmra.mrb[0].mxu0 %v639
      %v795 = vpop.f32.mrb[0].mxu0
      %v796 = vadd.f32 %v756, %v795
      %v797 = vpop.f32.mrb[0].mxu0
      %v798 = vpop.f32.mrb[0].mxu0
      %v799 = vpop.f32.mrb[0].mxu0
      %800 = vdwg.mxu0
      %v801 = vmax.f32 %v796, 0.0
      %v802 = vpack.c.bf16 %v801, %v801
      %vm803 = vcmask 388096
      %804 = vst.msk [vmem:[%s168] sm:$0xf] %vm803, %v802
      %p805 = scmp.lt.s32.totalorder %s14, 1
      %s806 = scalar_select %p805, %s14, 1
      %s807 = smul.addr %s806, 4
      %s808 = scalar_lea.vmem %s3, %s807
      // Predicated region
      $region33: #{cnn3d_forward.4} parent=31 // pred_check
        %p809 = pneg %p100
      $region34: #{cnn3d_forward.4} parent=31 // pred_check_branch
        %811 = sbr.rel (%p809) target = $region36
      $region35: #{cnn3d_forward.4} parent=31 // pred_region
        _
      $region36: #{cnn3d_forward.4} parent=31 // pred_fallthru
        _
    $region32: #{cnn3d_forward.4} parent=5 // pred_fallthru
      _
    %p812 = scmp.le.s32.totalorder 2, %s9
    // Predicated region
    $region37: #{cnn3d_forward.4} parent=5 // pred_check
      %p813 = pneg %p812
    $region38: #{cnn3d_forward.4} parent=5 // pred_check_branch
      %815 = sbr.rel (%p813) target = $region40
    $region39: #{cnn3d_forward.4} parent=5 // pred_region
      %s816 = ssub.s32 %s9, 2
      // Predicated region
      $region41: #{cnn3d_forward.4} parent=39 // pred_check
        %p817 = pneg %p106
      $region42: #{cnn3d_forward.4} parent=39 // pred_check_branch
        %819 = sbr.rel (%p817) target = $region44
      $region43: #{cnn3d_forward.4} parent=39 // pred_region
        %p820 = scmp.lt.s32.totalorder %s15, 1
        %s821 = scalar_select %p820, %s15, 1
        %s822 = smul.addr %s821, 4
        %s823 = scalar_lea.vmem %s3, %s822
      $region44: #{cnn3d_forward.4} parent=39 // pred_fallthru
        _
    $region40: #{cnn3d_forward.4} parent=5 // pred_fallthru
      _
  $region6: #{cnn3d_forward.4} parent=0 // loop_footer
    %s13 = sadd.s32 1, %s9
  $region7: #{cnn3d_forward.4} parent=0 // loop_footer_branch
    %8 = sbr.rel target = $region3
  $region8: #{cnn3d_forward.4} parent=0 // loop_exit
    _

// kernel: cnn3d_forward.5
$region0: #{cnn3d_forward.5}
  #allocation0 [shape = 'u32[]', space=smem, size = 0x4, offset = 0x4, fixed_abs, tag = 'smem constant byte address 0x4 - core index']
  #allocation1 [shape = 'u32[144,128]{1,0:T(1,128)}', space=vmem, size = 0x12000, scoped, tag = 'internal scratch']
  #allocation2 [shape = 'f32[1,2048]{1,0:T(1,128)}', space=vmem, size = 0x2000, scoped, tag = 'scratch operand']
  %s0 = inlined_call_operand.vmem [shape: bf16[2,96,4], index: 0, kind: input, shape index: {}]
  %s1 = inlined_call_operand.vmem [shape: bf16[4,2048], index: 1, kind: input, shape index: {}]
  %s2 = inlined_call_operand.vmem [shape: f32[1,2048], index: 2, kind: input, shape index: {}]
  %s3 = inlined_call_operand.vmem [shape: bf16[2048,10], index: 3, kind: input, shape index: {}]
  %s4 = inlined_call_operand.vmem [shape: f32[1,10], index: 4, kind: input, shape index: {}]
  %s5 = inlined_call_operand.vmem [shape: f32[2,1,10], index: 5, kind: output, shape index: {}]
  %s6 = sld [smem:[#allocation0]]
  $region61: #{cnn3d_forward.5} parent=0
    _
  %s8 = ssub.s32 1, %s6
  %s9 = scalar_select 0, %s8, %s6
  loop: start=0, step=1, limit=4
  $region2: #{cnn3d_forward.5} parent=0 // loop_pre_header
    _
  $region3: #{cnn3d_forward.5} parent=0 // loop_header
    %s11 = sphi 0, %s15
    %p12 = scmp.ge.s32.totalorder %s11, 4
    %s18 = sphi 0, %s30
    %s19 = sphi 0, %s26
    %s20 = sphi 0, %s18
    %s21 = sphi 0, %s19
    %s22 = sphi 0, %s20
    %s23 = sphi 0, %s21
    %s35 = sphi 0, %s37
    %s38 = sphi 0, %s35
    %s39 = sphi 0, %s38
    %s55 = sphi 0, %s39
    %s59 = sphi 0, %s59
    %s61 = sphi 0, %s59
    %s62 = sphi 0, %s61
    %s76 = sphi 0, %s62
    %s80 = sphi 0, %s80
    %s82 = sphi 0, %s80
    %s83 = sphi 0, %s82
    %s97 = sphi 0, %s83
    %s101 = sphi 0, %s101
    %s103 = sphi 0, %s101
    %s104 = sphi 0, %s103
    %s118 = sphi 0, %s104
    %s122 = sphi 0, %s122
    %s124 = sphi 0, %s122
    %s125 = sphi 0, %s124
    %s139 = sphi 0, %s125
    %s145 = sphi 0, %s147
    %s148 = sphi 0, %s145
    %s149 = sphi 0, %s148
    %s165 = sphi 0, %s149
  $region4: #{cnn3d_forward.5} parent=0 // loop_header_branch
    %14 = sbr.rel (%p12) target = $region8
  $region5: #{cnn3d_forward.5} parent=0 // loop_body
    %s16 = ssub.s32 %s11, 1
    %s17 = ssub.s32 %s11, 2
    %s24 = sadd.s32 1, %s19
    %p25 = scmp.ge.s32.totalorder %s24, 1
    %s26 = scalar_select %p25, 0, %s24
    %s27 = sadd.s32 1, %s18
    %s28 = scalar_select %p25, %s27, %s18
    %p29 = scmp.ge.s32.totalorder %s28, 2
    %s30 = scalar_select %p29, 0, %s28
    %s31 = ssub.s32 %s18, %s30
    %s32 = ssub.s32 %s19, %s26
    %s33 = sor.u32 %s31, %s32
    %p34 = scmp.eq.s32.totalorder %s33, 0
    %s36 = sadd.s32 %s35, 1
    %s37 = scalar_select %p34, %s35, %s36
    %p40 = pneg %p34
    %p41 = scmp.eq.s32.totalorder %s11, 1
    %p42 = por %p40, %p41
    %p43 = scmp.ne.s32.totalorder %s35, %s38
    %p44 = scmp.eq.s32.totalorder %s11, 0
    %p45 = por %p43, %p44
    %p46 = scmp.ne.s32.totalorder %s35, %s38
    %p47 = scmp.eq.s32.totalorder %s16, 1
    %p48 = por %p46, %p47
    %p49 = scmp.ne.s32.totalorder %s38, %s39
    %p50 = scmp.eq.s32.totalorder %s16, 0
    %p51 = por %p49, %p50
    %p52 = scmp.ne.s32.totalorder %s38, %s39
    %p53 = scmp.eq.s32.totalorder %s17, 1
    %p54 = por %p52, %p53
    %p56 = scmp.ne.s32.totalorder %s39, %s55
    %p57 = scmp.eq.s32.totalorder %s17, 0
    %p58 = por %p56, %p57
    %s60 = sadd.s32 %s59, 1
    %p63 = scmp.eq.s32.totalorder %s11, 1
    %p64 = scmp.ne.s32.totalorder %s59, %s61
    %p65 = scmp.eq.s32.totalorder %s11, 0
    %p66 = por %p64, %p65
    %p67 = scmp.ne.s32.totalorder %s59, %s61
    %p68 = scmp.eq.s32.totalorder %s16, 1
    %p69 = por %p67, %p68
    %p70 = scmp.ne.s32.totalorder %s61, %s62
    %p71 = scmp.eq.s32.totalorder %s16, 0
    %p72 = por %p70, %p71
    %p73 = scmp.ne.s32.totalorder %s61, %s62
    %p74 = scmp.eq.s32.totalorder %s17, 1
    %p75 = por %p73, %p74
    %p77 = scmp.ne.s32.totalorder %s62, %s76
    %p78 = scmp.eq.s32.totalorder %s17, 0
    %p79 = por %p77, %p78
    %s81 = sadd.s32 %s80, 1
    %p84 = scmp.eq.s32.totalorder %s11, 1
    %p85 = scmp.ne.s32.totalorder %s80, %s82
    %p86 = scmp.eq.s32.totalorder %s11, 0
    %p87 = por %p85, %p86
    %p88 = scmp.ne.s32.totalorder %s80, %s82
    %p89 = scmp.eq.s32.totalorder %s16, 1
    %p90 = por %p88, %p89
    %p91 = scmp.ne.s32.totalorder %s82, %s83
    %p92 = scmp.eq.s32.totalorder %s16, 0
    %p93 = por %p91, %p92
    %p94 = scmp.ne.s32.totalorder %s82, %s83
    %p95 = scmp.eq.s32.totalorder %s17, 1
    %p96 = por %p94, %p95
    %p98 = scmp.ne.s32.totalorder %s83, %s97
    %p99 = scmp.eq.s32.totalorder %s17, 0
    %p100 = por %p98, %p99
    %s102 = sadd.s32 %s101, 1
    %p105 = scmp.eq.s32.totalorder %s11, 1
    %p106 = scmp.ne.s32.totalorder %s101, %s103
    %p107 = scmp.eq.s32.totalorder %s11, 0
    %p108 = por %p106, %p107
    %p109 = scmp.ne.s32.totalorder %s101, %s103
    %p110 = scmp.eq.s32.totalorder %s16, 1
    %p111 = por %p109, %p110
    %p112 = scmp.ne.s32.totalorder %s103, %s104
    %p113 = scmp.eq.s32.totalorder %s16, 0
    %p114 = por %p112, %p113
    %p115 = scmp.ne.s32.totalorder %s103, %s104
    %p116 = scmp.eq.s32.totalorder %s17, 1
    %p117 = por %p115, %p116
    %p119 = scmp.ne.s32.totalorder %s104, %s118
    %p120 = scmp.eq.s32.totalorder %s17, 0
    %p121 = por %p119, %p120
    %s123 = sadd.s32 %s122, 1
    %p126 = scmp.eq.s32.totalorder %s11, 1
    %p127 = scmp.ne.s32.totalorder %s122, %s124
    %p128 = scmp.eq.s32.totalorder %s11, 0
    %p129 = por %p127, %p128
    %p130 = scmp.ne.s32.totalorder %s122, %s124
    %p131 = scmp.eq.s32.totalorder %s16, 1
    %p132 = por %p130, %p131
    %p133 = scmp.ne.s32.totalorder %s124, %s125
    %p134 = scmp.eq.s32.totalorder %s16, 0
    %p135 = por %p133, %p134
    %p136 = scmp.ne.s32.totalorder %s124, %s125
    %p137 = scmp.eq.s32.totalorder %s17, 1
    %p138 = por %p136, %p137
    %p140 = scmp.ne.s32.totalorder %s125, %s139
    %p141 = scmp.eq.s32.totalorder %s17, 0
    %p142 = por %p140, %p141
    %s143 = ssub.s32 %s18, %s30
    %p144 = scmp.eq.s32.totalorder %s143, 0
    %s146 = sadd.s32 %s145, 1
    %s147 = scalar_select %p144, %s145, %s146
    %p150 = pneg %p144
    %p151 = scmp.eq.s32.totalorder %s11, 1
    %p152 = por %p150, %p151
    %p153 = scmp.ne.s32.totalorder %s145, %s148
    %p154 = scmp.eq.s32.totalorder %s11, 0
    %p155 = por %p153, %p154
    %p156 = scmp.ne.s32.totalorder %s145, %s148
    %p157 = scmp.eq.s32.totalorder %s16, 1
    %p158 = por %p156, %p157
    %p159 = scmp.ne.s32.totalorder %s148, %s149
    %p160 = scmp.eq.s32.totalorder %s16, 0
    %p161 = por %p159, %p160
    %p162 = scmp.ne.s32.totalorder %s148, %s149
    %p163 = scmp.eq.s32.totalorder %s17, 1
    %p164 = por %p162, %p163
    %p166 = scmp.ne.s32.totalorder %s149, %s165
    %p167 = scmp.eq.s32.totalorder %s17, 0
    %p168 = por %p166, %p167
    %p169 = scmp.le.s32.totalorder 1, %s11
    %p170 = scmp.lt.s32.totalorder %s11, 3
    %p171 = pnand %p169, %p170
    %p172 = pneg %p171
    // Predicated region
    $region9: #{cnn3d_forward.5} parent=5 // pred_check
      _
    $region10: #{cnn3d_forward.5} parent=5 // pred_check_branch
      %174 = sbr.rel (%p171) target = $region12
    $region11: #{cnn3d_forward.5} parent=5 // pred_region
      %s175 = ssub.s32 %s11, 1
      // Predicated region
      $region13: #{cnn3d_forward.5} parent=11 // pred_check
        %p176 = pneg %p72
      $region14: #{cnn3d_forward.5} parent=11 // pred_check_branch
        %178 = sbr.rel (%p176) target = $region16
      $region15: #{cnn3d_forward.5} parent=11 // pred_region
        _
      $region16: #{cnn3d_forward.5} parent=11 // pred_fallthru
        _
      // Predicated region
      $region17: #{cnn3d_forward.5} parent=11 // pred_check
        %p179 = pneg %p93
      $region18: #{cnn3d_forward.5} parent=11 // pred_check_branch
        %181 = sbr.rel (%p179) target = $region20
      $region19: #{cnn3d_forward.5} parent=11 // pred_region
        _
      $region20: #{cnn3d_forward.5} parent=11 // pred_fallthru
        _
      // Predicated region
      $region21: #{cnn3d_forward.5} parent=11 // pred_check
        %p182 = pneg %p114
      $region22: #{cnn3d_forward.5} parent=11 // pred_check_branch
        %184 = sbr.rel (%p182) target = $region24
      $region23: #{cnn3d_forward.5} parent=11 // pred_region
        _
      $region24: #{cnn3d_forward.5} parent=11 // pred_fallthru
        _
      // Predicated region
      $region25: #{cnn3d_forward.5} parent=11 // pred_check
        %p185 = pneg %p135
      $region26: #{cnn3d_forward.5} parent=11 // pred_check_branch
        %187 = sbr.rel (%p185) target = $region28
      $region27: #{cnn3d_forward.5} parent=11 // pred_region
        _
      $region28: #{cnn3d_forward.5} parent=11 // pred_fallthru
        _
    $region12: #{cnn3d_forward.5} parent=5 // pred_fallthru
      _
    %p188 = scmp.lt.s32.totalorder %s11, 2
    // Predicated region
    $region29: #{cnn3d_forward.5} parent=5 // pred_check
      %p189 = pneg %p188
    $region30: #{cnn3d_forward.5} parent=5 // pred_check_branch
      %191 = sbr.rel (%p189) target = $region32
    $region31: #{cnn3d_forward.5} parent=5 // pred_region
      // Predicated region
      $region33: #{cnn3d_forward.5} parent=31 // pred_check
        %p192 = pneg %p45
      $region34: #{cnn3d_forward.5} parent=31 // pred_check_branch
        %194 = sbr.rel (%p192) target = $region36
      $region35: #{cnn3d_forward.5} parent=31 // pred_region
        %s195 = smul.u32 12, %s19
        %p196 = scmp.lt.s32.totalorder %s18, 1
        %s197 = scalar_select %p196, %s18, 1
        %p198 = scmp.lt.s32.totalorder %s195, 11
        %s199 = scalar_select %p198, %s195, 11
        %s200 = smul.addr %s197, 12
        %s201 = sadd.s32 %s199, %s200
        %s202 = smul.addr %s201, 4
        %s203 = scalar_lea.vmem %s0, %s202
        %s204 = smul.u32 12, %s19
      $region36: #{cnn3d_forward.5} parent=31 // pred_fallthru
        _
    $region32: #{cnn3d_forward.5} parent=5 // pred_fallthru
      _
    %p205 = scmp.le.s32.totalorder 1, %s11
    %p206 = scmp.lt.s32.totalorder %s11, 3
    %p207 = pnand %p205, %p206
    %p208 = pneg %p207
    // Predicated region
    $region37: #{cnn3d_forward.5} parent=5 // pred_check
      _
    $region38: #{cnn3d_forward.5} parent=5 // pred_check_branch
      %210 = sbr.rel (%p207) target = $region40
    $region39: #{cnn3d_forward.5} parent=5 // pred_region
      %s211 = ssub.s32 %s11, 1
      %s212 = smul.u32 12, %s21
      %p213 = scmp.lt.s32.totalorder %s20, 1
      %s214 = scalar_select %p213, %s20, 1
      %p215 = scmp.lt.s32.totalorder %s212, 11
      %s216 = scalar_select %p215, %s212, 11
      %s217 = smul.addr %s214, 12
      %s218 = sadd.s32 %s216, %s217
      %s219 = smul.addr %s218, 4
      %s220 = scalar_lea.vmem %s0, %s219
      %p221 = pneg %p51
      %p222 = pneg %p48
      %p223 = pneg %p72
      %p224 = pneg %p69
      %p225 = pneg %p93
      %p226 = pneg %p90
      %p227 = pneg %p114
      %p228 = pneg %p111
      %p229 = pneg %p135
      %p230 = pneg %p132
      %p231 = pneg %p161
      %p232 = pneg %p158
      %p233 = scmp.lt.s32.totalorder %s20, 1
      %s234 = scalar_select %p233, %s20, 1
      %s235 = scalar_lea.vmem %s5, %s234
      %s236 = smul.u32 12, %s21
      %p237 = scmp.lt.s32.totalorder %s20, 1
      %s238 = scalar_select %p237, %s20, 1
      %p239 = scmp.lt.s32.totalorder %s236, 11
      %s240 = scalar_select %p239, %s236, 11
      %s241 = smul.addr %s238, 12
      %s242 = sadd.s32 %s240, %s241
      %s243 = smul.addr %s242, 4
      %s244 = scalar_lea.vmem %s0, %s243
      %s245 = smul.u32 12, %s21
      %p246 = scmp.lt.s32.totalorder %s20, 1
      %s247 = scalar_select %p246, %s20, 1
      %s248 = scalar_lea.vmem %s5, %s247
      %p250 = scmp.eq.s32.totalorder %s21, 0
      // Predicated region
      $region41: #{cnn3d_forward.5} parent=39 // pred_check
        %p251 = pneg %p250
      $region42: #{cnn3d_forward.5} parent=39 // pred_check_branch
        %253 = sbr.rel (%p251) target = $region44
      $region43: #{cnn3d_forward.5} parent=39 // pred_region
        %254 = vst [vmem:[#allocation2] sm:$0xff] 0.0
        %255 = vst [vmem:[#allocation2 + $0x8] sm:$0xff] 0.0
      $region44: #{cnn3d_forward.5} parent=39 // pred_fallthru
        _
      %v256 = vld [vmem:[%s244] sm:$0xf]
      %v257 = vld [vmem:[%s244 + $0x4] sm:$0xf]
      %v258 = vld [vmem:[%s244 + $0x8] sm:$0xf]
      %v259 = vld [vmem:[%s244 + $0xc] sm:$0xf]
      %v260 = vld [vmem:[%s244 + $0x10] sm:$0xf]
      %v261 = vld [vmem:[%s244 + $0x14] sm:$0xf]
      %v262 = vld [vmem:[%s244 + $0x18] sm:$0xf]
      %v263 = vld [vmem:[%s244 + $0x1c] sm:$0xf]
      %v264 = vld [vmem:[%s244 + $0x20] sm:$0xf]
      %v265 = vld [vmem:[%s244 + $0x24] sm:$0xf]
      %v266 = vld [vmem:[%s244 + $0x28] sm:$0xf]
      %v267 = vld [vmem:[%s244 + $0x2c] sm:$0xf]
      %v268 = vld [vmem:[%s1] sm:$0xff]
      %v269 = vld [vmem:[%s1 + $0x8] sm:$0xff]
      %v270 = vld [vmem:[%s1 + $0x10] sm:$0xff]
      %v271 = vld [vmem:[%s1 + $0x18] sm:$0xff]
      %v272 = vld [vmem:[%s2] sm:$0xff]
      %v273 = vld [vmem:[%s2 + $0x8] sm:$0xff]
      %v276 = vlaneseq
      %v277 = vshrl.u32 %v276, 7
      %v278 = vsub.s32 0, %v277
      %v279 = vrot.slane %v272, %v278
      %v280 = vlaneseq
      %v281 = vshrl.u32 %v280, 7
      %v282 = vsub.s32 1, %v281
      %v283 = vrot.slane %v272, %v282
      %v284 = vlaneseq
      %v285 = vshrl.u32 %v284, 7
      %v286 = vsub.s32 2, %v285
      %v287 = vrot.slane %v272, %v286
      %v288 = vlaneseq
      %v289 = vshrl.u32 %v288, 7
      %v290 = vsub.s32 3, %v289
      %v291 = vrot.slane %v272, %v290
      %v292 = vlaneseq
      %v293 = vshrl.u32 %v292, 7
      %v294 = vsub.s32 4, %v293
      %v295 = vrot.slane %v272, %v294
      %v296 = vlaneseq
      %v297 = vshrl.u32 %v296, 7
      %v298 = vsub.s32 5, %v297
      %v299 = vrot.slane %v272, %v298
      %v300 = vlaneseq
      %v301 = vshrl.u32 %v300, 7
      %v302 = vsub.s32 6, %v301
      %v303 = vrot.slane %v272, %v302
      %v304 = vlaneseq
      %v305 = vshrl.u32 %v304, 7
      %v306 = vsub.s32 7, %v305
      %v307 = vrot.slane %v272, %v306
      %v308 = vlaneseq
      %v309 = vshrl.u32 %v308, 7
      %v310 = vsub.s32 0, %v309
      %v311 = vrot.slane %v273, %v310
      %v312 = vlaneseq
      %v313 = vshrl.u32 %v312, 7
      %v314 = vsub.s32 1, %v313
      %v315 = vrot.slane %v273, %v314
      %v316 = vlaneseq
      %v317 = vshrl.u32 %v316, 7
      %v318 = vsub.s32 2, %v317
      %v319 = vrot.slane %v273, %v318
      %v320 = vlaneseq
      %v321 = vshrl.u32 %v320, 7
      %v322 = vsub.s32 3, %v321
      %v323 = vrot.slane %v273, %v322
      %v324 = vlaneseq
      %v325 = vshrl.u32 %v324, 7
      %v326 = vsub.s32 4, %v325
      %v327 = vrot.slane %v273, %v326
      %v328 = vlaneseq
      %v329 = vshrl.u32 %v328, 7
      %v330 = vsub.s32 5, %v329
      %v331 = vrot.slane %v273, %v330
      %v332 = vlaneseq
      %v333 = vshrl.u32 %v332, 7
      %v334 = vsub.s32 6, %v333
      %v335 = vrot.slane %v273, %v334
      %v336 = vlaneseq
      %v337 = vshrl.u32 %v336, 7
      %v338 = vsub.s32 7, %v337
      %v339 = vrot.slane %v273, %v338
      %v368 = vunpack.c.l.b16 %v256
      %v369 = vunpack.c.l.b16 %v257
      %v370 = vunpack.c.l.b16 %v258
      %v371 = vunpack.c.l.b16 %v259
      %v372 = vunpack.c.l.b16 %v260
      %v373 = vunpack.c.l.b16 %v261
      %v374 = vunpack.c.l.b16 %v262
      %v375 = vunpack.c.l.b16 %v263
      %v376 = vunpack.c.l.b16 %v264
      %v377 = vunpack.c.l.b16 %v265
      %v378 = vunpack.c.l.b16 %v266
      %v379 = vunpack.c.l.b16 %v267
      %v380 = vpack.c.b16 %v369, %v368
      %v381 = vpack.c.b16 %v371, %v370
      %v382 = vpack.c.b16 %v373, %v372
      %v383 = vpack.c.b16 %v375, %v374
      %v384 = vpack.c.b16 %v377, %v376
      %v385 = vpack.c.b16 %v379, %v378
      %v390 = vcombine.high %v268, %v268
      %v392 = vunpack.c.l.s4 1983009808
      %v393 = vunpack.c.0.s8 %v392
      %v394 = vlaneseq
      %v395 = vshrl.u32 %v394, 7
      %v396 = vsub.s32 %v393, %v395
      %v397 = vrot.slane %v268, %v396
      %v399 = vunpack.c.l.s4 1983009808
      %v400 = vunpack.c.0.s8 %v399
      %v401 = vlaneseq
      %v402 = vshrl.u32 %v401, 7
      %v403 = vsub.s32 %v400, %v402
      %v404 = vrot.slane %v390, %v403
      %v405 = vcombine.high %v397, %v397
      %v406 = vcombine.high %v404, %v404
      %v407 = vcombine.high %v269, %v269
      %v409 = vunpack.c.l.s4 1983009808
      %v410 = vunpack.c.0.s8 %v409
      %v411 = vlaneseq
      %v412 = vshrl.u32 %v411, 7
      %v413 = vsub.s32 %v410, %v412
      %v414 = vrot.slane %v269, %v413
      %v416 = vunpack.c.l.s4 1983009808
      %v417 = vunpack.c.0.s8 %v416
      %v418 = vlaneseq
      %v419 = vshrl.u32 %v418, 7
      %v420 = vsub.s32 %v417, %v419
      %v421 = vrot.slane %v407, %v420
      %v422 = vcombine.high %v414, %v414
      %v423 = vcombine.high %v421, %v421
      %v424 = vcombine.high %v270, %v270
      %v426 = vunpack.c.l.s4 1983009808
      %v427 = vunpack.c.0.s8 %v426
      %v428 = vlaneseq
      %v429 = vshrl.u32 %v428, 7
      %v430 = vsub.s32 %v427, %v429
      %v431 = vrot.slane %v270, %v430
      %v433 = vunpack.c.l.s4 1983009808
      %v434 = vunpack.c.0.s8 %v433
      %v435 = vlaneseq
      %v436 = vshrl.u32 %v435, 7
      %v437 = vsub.s32 %v434, %v436
      %v438 = vrot.slane %v424, %v437
      %v439 = vcombine.high %v431, %v431
      %v440 = vcombine.high %v438, %v438
      %v441 = vcombine.high %v271, %v271
      %v443 = vunpack.c.l.s4 1983009808
      %v444 = vunpack.c.0.s8 %v443
      %v445 = vlaneseq
      %v446 = vshrl.u32 %v445, 7
      %v447 = vsub.s32 %v444, %v446
      %v448 = vrot.slane %v271, %v447
      %v450 = vunpack.c.l.s4 1983009808
      %v451 = vunpack.c.0.s8 %v450
      %v452 = vlaneseq
      %v453 = vshrl.u32 %v452, 7
      %v454 = vsub.s32 %v451, %v453
      %v455 = vrot.slane %v441, %v454
      %v456 = vcombine.high %v448, %v448
      %v457 = vcombine.high %v455, %v455
      %vm458 = vcmask 31744
      %v460 = vsel %vm458, %v380, 0
      %v463 = vsel %vm458, %v381, 0
      %v466 = vsel %vm458, %v382, 0
      %v469 = vsel %vm458, %v383, 0
      %v472 = vsel %vm458, %v384, 0
      %v475 = vsel %vm458, %v385, 0
      %vm477 = vcmask 1041408
      %v479 = vsel %vm477, %v397, 0
      %v482 = vsel %vm477, %v405, 0
      %v485 = vsel %vm477, %v404, 0
      %v488 = vsel %vm477, %v406, 0
      %v491 = vsel %vm477, %v414, 0
      %v494 = vsel %vm477, %v422, 0
      %v497 = vsel %vm477, %v421, 0
      %v500 = vsel %vm477, %v423, 0
      %v503 = vsel %vm477, %v431, 0
      %v506 = vsel %vm477, %v439, 0
      %v509 = vsel %vm477, %v438, 0
      %v512 = vsel %vm477, %v440, 0
      %v515 = vsel %vm477, %v448, 0
      %v518 = vsel %vm477, %v456, 0
      %v521 = vsel %vm477, %v455, 0
      %v524 = vsel %vm477, %v457, 0
      %526 = vmatprep.subr.bf16.mxu0 %v482
      %527 = vmatpush1.bf16.msra.mxu0 %v479
      %528 = vmatprep.subr.bf16.mxu0 0
      %529 = vmatpush1.bf16.msra.mxu0 0
      %530 = vmatprep.subr.bf16.mxu0 0
      %531 = vmatpush1.bf16.msra.mxu0 0
      %532 = vmatprep.subr.bf16.mxu0 0
      %533 = vmatpush1.bf16.msra.mxu0 0
      %534 = vmatprep.subr.bf16.mxu0 0
      %535 = vmatpush1.bf16.msra.mxu0 0
      %536 = vmatprep.subr.bf16.mxu0 0
      %537 = vmatpush1.bf16.msra.mxu0 0
      %538 = vmatprep.subr.bf16.mxu0 0
      %539 = vmatpush1.bf16.msra.mxu0 0
      %540 = vmatprep.subr.bf16.mxu0 0
      %541 = vmatpush1.bf16.msra.mxu0 0
      %542 = vmatprep.subr.bf16.mxu0 0
      %543 = vmatpush1.bf16.msra.mxu0 0
      %544 = vmatprep.subr.bf16.mxu0 0
      %545 = vmatpush1.bf16.msra.mxu0 0
      %546 = vmatprep.subr.bf16.mxu0 0
      %547 = vmatpush1.bf16.msra.mxu0 0
      %548 = vmatprep.subr.bf16.mxu0 0
      %549 = vmatpush1.bf16.msra.mxu0 0
      %550 = vmatprep.subr.bf16.mxu0 0
      %551 = vmatpush1.bf16.msra.mxu0 0
      %552 = vmatprep.subr.bf16.mxu0 0
      %553 = vmatpush1.bf16.msra.mxu0 0
      %554 = vmatprep.subr.bf16.mxu0 0
      %555 = vmatpush1.bf16.msra.mxu0 0
      %556 = vmatprep.subr.bf16.mxu0 0
      %557 = vmatpush1.bf16.msra.mxu0 0
      %558 = vmatprep.mubr.bf16.mxu0 0
      %559 = vmatmul.mubr.bf16.gmra.mrb[0].mxu0 %v460
      %v560 = vpop.f32.mrb[0].mxu0
      %v561 = vadd.f32 %v279, %v560
      %v562 = vpop.f32.mrb[0].mxu0
      %v563 = vadd.f32 %v283, %v562
      %v564 = vpop.f32.mrb[0].mxu0
      %v565 = vadd.f32 %v279, %v564
      %v566 = vpop.f32.mrb[0].mxu0
      %v567 = vadd.f32 %v283, %v566
      %568 = vmatprep.mubr.bf16.mxu0 0
      %569 = vmatmul.mubr.bf16.gmra.mrb[0].mxu0 %v463
      %v570 = vpop.f32.mrb[0].mxu0
      %v571 = vadd.f32 %v279, %v570
      %v572 = vpop.f32.mrb[0].mxu0
      %v573 = vadd.f32 %v283, %v572
      %v574 = vpop.f32.mrb[0].mxu0
      %v575 = vadd.f32 %v279, %v574
      %v576 = vpop.f32.mrb[0].mxu0
      %v577 = vadd.f32 %v283, %v576
      %578 = vmatprep.mubr.bf16.mxu0 0
      %579 = vmatmul.mubr.bf16.gmra.mrb[0].mxu0 %v466
      %v580 = vpop.f32.mrb[0].mxu0
      %v581 = vadd.f32 %v279, %v580
      %v582 = vpop.f32.mrb[0].mxu0
      %v583 = vadd.f32 %v283, %v582
      %v584 = vpop.f32.mrb[0].mxu0
      %v585 = vadd.f32 %v279, %v584
      %v586 = vpop.f32.mrb[0].mxu0
      %v587 = vadd.f32 %v283, %v586
      %588 = vmatprep.mubr.bf16.mxu0 0
      %589 = vmatmul.mubr.bf16.gmra.mrb[0].mxu0 %v469
      %v590 = vpop.f32.mrb[0].mxu0
      %v591 = vadd.f32 %v279, %v590
      %v592 = vpop.f32.mrb[0].mxu0
      %v593 = vadd.f32 %v283, %v592
      %v594 = vpop.f32.mrb[0].mxu0
      %v595 = vadd.f32 %v279, %v594
      %v596 = vpop.f32.mrb[0].mxu0
      %v597 = vadd.f32 %v283, %v596
      %598 = vmatprep.mubr.bf16.mxu0 0
      %599 = vmatmul.mubr.bf16.gmra.mrb[0].mxu0 %v472
      %v600 = vpop.f32.mrb[0].mxu0
      %v601 = vadd.f32 %v279, %v600
      %v602 = vpop.f32.mrb[0].mxu0
      %v603 = vadd.f32 %v283, %v602
      %v604 = vpop.f32.mrb[0].mxu0
      %v605 = vadd.f32 %v279, %v604
      %v606 = vpop.f32.mrb[0].mxu0
      %v607 = vadd.f32 %v283, %v606
      %608 = vmatprep.mubr.bf16.mxu0 0
      %609 = vmatmul.mubr.bf16.gmra.mrb[0].mxu0 %v475
      %v610 = vpop.f32.mrb[0].mxu0
      %v611 = vadd.f32 %v279, %v610
      %v612 = vpop.f32.mrb[0].mxu0
      %v613 = vadd.f32 %v283, %v612
      %v614 = vpop.f32.mrb[0].mxu0
      %v615 = vadd.f32 %v279, %v614
      %v616 = vpop.f32.mrb[0].mxu0
      %v617 = vadd.f32 %v283, %v616
      %618 = vdwg.mxu0
      %619 = vmatprep.subr.bf16.mxu0 %v488
      %620 = vmatpush1.bf16.msra.mxu0 %v485
      %621 = vmatprep.subr.bf16.mxu0 0
      %622 = vmatpush1.bf16.msra.mxu0 0
      %623 = vmatprep.subr.bf16.mxu0 0
      %624 = vmatpush1.bf16.msra.mxu0 0
      %625 = vmatprep.subr.bf16.mxu0 0
      %626 = vmatpush1.bf16.msra.mxu0 0
      %627 = vmatprep.subr.bf16.mxu0 0
      %628 = vmatpush1.bf16.msra.mxu0 0
      %629 = vmatprep.subr.bf16.mxu0 0
      %630 = vmatpush1.bf16.msra.mxu0 0
      %631 = vmatprep.subr.bf16.mxu0 0
      %632 = vmatpush1.bf16.msra.mxu0 0
      %633 = vmatprep.subr.bf16.mxu0 0
      %634 = vmatpush1.bf16.msra.mxu0 0
      %635 = vmatprep.subr.bf16.mxu0 0
      %636 = vmatpush1.bf16.msra.mxu0 0
      %637 = vmatprep.subr.bf16.mxu0 0
      %638 = vmatpush1.bf16.msra.mxu0 0
      %639 = vmatprep.subr.bf16.mxu0 0
      %640 = vmatpush1.bf16.msra.mxu0 0
      %641 = vmatprep.subr.bf16.mxu0 0
      %642 = vmatpush1.bf16.msra.mxu0 0
      %643 = vmatprep.subr.bf16.mxu0 0
      %644 = vmatpush1.bf16.msra.mxu0 0
      %645 = vmatprep.subr.bf16.mxu0 0
      %646 = vmatpush1.bf16.msra.mxu0 0
      %647 = vmatprep.subr.bf16.mxu0 0
      %648 = vmatpush1.bf16.msra.mxu0 0
      %649 = vmatprep.subr.bf16.mxu0 0
      %650 = vmatpush1.bf16.msra.mxu0 0
      %651 = vmatprep.mubr.bf16.mxu0 0
      %652 = vmatmul.mubr.bf16.gmra.mrb[0].mxu0 %v460
      %v653 = vpop.f32.mrb[0].mxu0
      %v654 = vadd.f32 %v287, %v653
      %v655 = vpop.f32.mrb[0].mxu0
      %v656 = vadd.f32 %v291, %v655
      %v657 = vpop.f32.mrb[0].mxu0
      %v658 = vadd.f32 %v287, %v657
      %v659 = vpop.f32.mrb[0].mxu0
      %v660 = vadd.f32 %v291, %v659
      %661 = vmatprep.mubr.bf16.mxu0 0
      %662 = vmatmul.mubr.bf16.gmra.mrb[0].mxu0 %v463
      %v663 = vpop.f32.mrb[0].mxu0
      %v664 = vadd.f32 %v287, %v663
      %v665 = vpop.f32.mrb[0].mxu0
      %v666 = vadd.f32 %v291, %v665
      %v667 = vpop.f32.mrb[0].mxu0
      %v668 = vadd.f32 %v287, %v667
      %v669 = vpop.f32.mrb[0].mxu0
      %v670 = vadd.f32 %v291, %v669
      %671 = vmatprep.mubr.bf16.mxu0 0
      %672 = vmatmul.mubr.bf16.gmra.mrb[0].mxu0 %v466
      %v673 = vpop.f32.mrb[0].mxu0
      %v674 = vadd.f32 %v287, %v673
      %v675 = vpop.f32.mrb[0].mxu0
      %v676 = vadd.f32 %v291, %v675
      %v677 = vpop.f32.mrb[0].mxu0
      %v678 = vadd.f32 %v287, %v677
      %v679 = vpop.f32.mrb[0].mxu0
      %v680 = vadd.f32 %v291, %v679
      %681 = vmatprep.mubr.bf16.mxu0 0
      %682 = vmatmul.mubr.bf16.gmra.mrb[0].mxu0 %v469
      %v683 = vpop.f32.mrb[0].mxu0
      %v684 = vadd.f32 %v287, %v683
      %v685 = vpop.f32.mrb[0].mxu0
      %v686 = vadd.f32 %v291, %v685
      %v687 = vpop.f32.mrb[0].mxu0
      %v688 = vadd.f32 %v287, %v687
      %v689 = vpop.f32.mrb[0].mxu0
      %v690 = vadd.f32 %v291, %v689
      %691 = vmatprep.mubr.bf16.mxu0 0
      %692 = vmatmul.mubr.bf16.gmra.mrb[0].mxu0 %v472
      %v693 = vpop.f32.mrb[0].mxu0
      %v694 = vadd.f32 %v287, %v693
      %v695 = vpop.f32.mrb[0].mxu0
      %v696 = vadd.f32 %v291, %v695
      %v697 = vpop.f32.mrb[0].mxu0
      %v698 = vadd.f32 %v287, %v697
      %v699 = vpop.f32.mrb[0].mxu0
      %v700 = vadd.f32 %v291, %v699
      %701 = vmatprep.mubr.bf16.mxu0 0
      %702 = vmatmul.mubr.bf16.gmra.mrb[0].mxu0 %v475
      %v703 = vpop.f32.mrb[0].mxu0
      %v704 = vadd.f32 %v287, %v703
      %v705 = vpop.f32.mrb[0].mxu0
      %v706 = vadd.f32 %v291, %v705
      %v707 = vpop.f32.mrb[0].mxu0
      %v708 = vadd.f32 %v287, %v707
      %v709 = vpop.f32.mrb[0].mxu0
      %v710 = vadd.f32 %v291, %v709
      %711 = vdwg.mxu0
      %712 = vmatprep.subr.bf16.mxu0 %v494
      %713 = vmatpush1.bf16.msra.mxu0 %v491
      %714 = vmatprep.subr.bf16.mxu0 0
      %715 = vmatpush1.bf16.msra.mxu0 0
      %716 = vmatprep.subr.bf16.mxu0 0
      %717 = vmatpush1.bf16.msra.mxu0 0
      %718 = vmatprep.subr.bf16.mxu0 0
      %719 = vmatpush1.bf16.msra.mxu0 0
      %720 = vmatprep.subr.bf16.mxu0 0
      %721 = vmatpush1.bf16.msra.mxu0 0
      %722 = vmatprep.subr.bf16.mxu0 0
      %723 = vmatpush1.bf16.msra.mxu0 0
      %724 = vmatprep.subr.bf16.mxu0 0
      %725 = vmatpush1.bf16.msra.mxu0 0
      %726 = vmatprep.subr.bf16.mxu0 0
      %727 = vmatpush1.bf16.msra.mxu0 0
      %728 = vmatprep.subr.bf16.mxu0 0
      %729 = vmatpush1.bf16.msra.mxu0 0
      %730 = vmatprep.subr.bf16.mxu0 0
      %731 = vmatpush1.bf16.msra.mxu0 0
      %732 = vmatprep.subr.bf16.mxu0 0
      %733 = vmatpush1.bf16.msra.mxu0 0
      %734 = vmatprep.subr.bf16.mxu0 0
      %735 = vmatpush1.bf16.msra.mxu0 0
      %736 = vmatprep.subr.bf16.mxu0 0
      %737 = vmatpush1.bf16.msra.mxu0 0
      %738 = vmatprep.subr.bf16.mxu0 0
      %739 = vmatpush1.bf16.msra.mxu0 0
      %740 = vmatprep.subr.bf16.mxu0 0
      %741 = vmatpush1.bf16.msra.mxu0 0
      %742 = vmatprep.subr.bf16.mxu0 0
      %743 = vmatpush1.bf16.msra.mxu0 0
      %744 = vmatprep.mubr.bf16.mxu0 0
      %745 = vmatmul.mubr.bf16.gmra.mrb[0].mxu0 %v460
      %v746 = vpop.f32.mrb[0].mxu0
      %v747 = vadd.f32 %v295, %v746
      %v748 = vpop.f32.mrb[0].mxu0
      %v749 = vadd.f32 %v299, %v748
      %v750 = vpop.f32.mrb[0].mxu0
      %v751 = vadd.f32 %v295, %v750
      %v752 = vpop.f32.mrb[0].mxu0
      %v753 = vadd.f32 %v299, %v752
      %754 = vmatprep.mubr.bf16.mxu0 0
      %755 = vmatmul.mubr.bf16.gmra.mrb[0].mxu0 %v463
      %v756 = vpop.f32.mrb[0].mxu0
      %v757 = vadd.f32 %v295, %v756
      %v758 = vpop.f32.mrb[0].mxu0
      %v759 = vadd.f32 %v299, %v758
      %v760 = vpop.f32.mrb[0].mxu0
      %v761 = vadd.f32 %v295, %v760
      %v762 = vpop.f32.mrb[0].mxu0
      %v763 = vadd.f32 %v299, %v762
      %764 = vmatprep.mubr.bf16.mxu0 0
      %765 = vmatmul.mubr.bf16.gmra.mrb[0].mxu0 %v466
      %v766 = vpop.f32.mrb[0].mxu0
      %v767 = vadd.f32 %v295, %v766
      %v768 = vpop.f32.mrb[0].mxu0
      %v769 = vadd.f32 %v299, %v768
      %v770 = vpop.f32.mrb[0].mxu0
      %v771 = vadd.f32 %v295, %v770
      %v772 = vpop.f32.mrb[0].mxu0
      %v773 = vadd.f32 %v299, %v772
      %774 = vmatprep.mubr.bf16.mxu0 0
      %775 = vmatmul.mubr.bf16.gmra.mrb[0].mxu0 %v469
      %v776 = vpop.f32.mrb[0].mxu0
      %v777 = vadd.f32 %v295, %v776
      %v778 = vpop.f32.mrb[0].mxu0
      %v779 = vadd.f32 %v299, %v778
      %v780 = vpop.f32.mrb[0].mxu0
      %v781 = vadd.f32 %v295, %v780
      %v782 = vpop.f32.mrb[0].mxu0
      %v783 = vadd.f32 %v299, %v782
      %784 = vmatprep.mubr.bf16.mxu0 0
      %785 = vmatmul.mubr.bf16.gmra.mrb[0].mxu0 %v472
      %v786 = vpop.f32.mrb[0].mxu0
      %v787 = vadd.f32 %v295, %v786
      %v788 = vpop.f32.mrb[0].mxu0
      %v789 = vadd.f32 %v299, %v788
      %v790 = vpop.f32.mrb[0].mxu0
      %v791 = vadd.f32 %v295, %v790
      %v792 = vpop.f32.mrb[0].mxu0
      %v793 = vadd.f32 %v299, %v792
      %794 = vmatprep.mubr.bf16.mxu0 0
      %795 = vmatmul.mubr.bf16.gmra.mrb[0].mxu0 %v475
      %v796 = vpop.f32.mrb[0].mxu0
      %v797 = vadd.f32 %v295, %v796
      %v798 = vpop.f32.mrb[0].mxu0
      %v799 = vadd.f32 %v299, %v798
      %v800 = vpop.f32.mrb[0].mxu0
      %v801 = vadd.f32 %v295, %v800
      %v802 = vpop.f32.mrb[0].mxu0
      %v803 = vadd.f32 %v299, %v802
      %804 = vdwg.mxu0
      %805 = vmatprep.subr.bf16.mxu0 %v500
      %806 = vmatpush1.bf16.msra.mxu0 %v497
      %807 = vmatprep.subr.bf16.mxu0 0
      %808 = vmatpush1.bf16.msra.mxu0 0
      %809 = vmatprep.subr.bf16.mxu0 0
      %810 = vmatpush1.bf16.msra.mxu0 0
      %811 = vmatprep.subr.bf16.mxu0 0
      %812 = vmatpush1.bf16.msra.mxu0 0
      %813 = vmatprep.subr.bf16.mxu0 0
      %814 = vmatpush1.bf16.msra.mxu0 0
      %815 = vmatprep.subr.bf16.mxu0 0
      %816 = vmatpush1.bf16.msra.mxu0 0
      %817 = vmatprep.subr.bf16.mxu0 0
      %818 = vmatpush1.bf16.msra.mxu0 0
      %819 = vmatprep.subr.bf16.mxu0 0
      %820 = vmatpush1.bf16.msra.mxu0 0
      %821 = vmatprep.subr.bf16.mxu0 0
      %822 = vmatpush1.bf16.msra.mxu0 0
      %823 = vmatprep.subr.bf16.mxu0 0
      %824 = vmatpush1.bf16.msra.mxu0 0
      %825 = vmatprep.subr.bf16.mxu0 0
      %826 = vmatpush1.bf16.msra.mxu0 0
      %827 = vmatprep.subr.bf16.mxu0 0
      %828 = vmatpush1.bf16.msra.mxu0 0
      %829 = vmatprep.subr.bf16.mxu0 0
      %830 = vmatpush1.bf16.msra.mxu0 0
      %831 = vmatprep.subr.bf16.mxu0 0
      %832 = vmatpush1.bf16.msra.mxu0 0
      %833 = vmatprep.subr.bf16.mxu0 0
      %834 = vmatpush1.bf16.msra.mxu0 0
      %835 = vmatprep.subr.bf16.mxu0 0
      %836 = vmatpush1.bf16.msra.mxu0 0
      %837 = vmatprep.mubr.bf16.mxu0 0
      %838 = vmatmul.mubr.bf16.gmra.mrb[0].mxu0 %v460
      %v839 = vpop.f32.mrb[0].mxu0
      %v840 = vadd.f32 %v303, %v839
      %v841 = vpop.f32.mrb[0].mxu0
      %v842 = vadd.f32 %v307, %v841
      %v843 = vpop.f32.mrb[0].mxu0
      %v844 = vadd.f32 %v303, %v843
      %v845 = vpop.f32.mrb[0].mxu0
      %v846 = vadd.f32 %v307, %v845
      %847 = vmatprep.mubr.bf16.mxu0 0
      %848 = vmatmul.mubr.bf16.gmra.mrb[0].mxu0 %v463
      %v849 = vpop.f32.mrb[0].mxu0
      %v850 = vadd.f32 %v303, %v849
      %v851 = vpop.f32.mrb[0].mxu0
      %v852 = vadd.f32 %v307, %v851
      %v853 = vpop.f32.mrb[0].mxu0
      %v854 = vadd.f32 %v303, %v853
      %v855 = vpop.f32.mrb[0].mxu0
      %v856 = vadd.f32 %v307, %v855
      %857 = vmatprep.mubr.bf16.mxu0 0
      %858 = vmatmul.mubr.bf16.gmra.mrb[0].mxu0 %v466
      %v859 = vpop.f32.mrb[0].mxu0
      %v860 = vadd.f32 %v303, %v859
      %v861 = vpop.f32.mrb[0].mxu0
      %v862 = vadd.f32 %v307, %v861
      %v863 = vpop.f32.mrb[0].mxu0
      %v864 = vadd.f32 %v303, %v863
      %v865 = vpop.f32.mrb[0].mxu0
      %v866 = vadd.f32 %v307, %v865
      %867 = vmatprep.mubr.bf16.mxu0 0
      %868 = vmatmul.mubr.bf16.gmra.mrb[0].mxu0 %v469
      %v869 = vpop.f32.mrb[0].mxu0
      %v870 = vadd.f32 %v303, %v869
      %v871 = vpop.f32.mrb[0].mxu0
      %v872 = vadd.f32 %v307, %v871
      %v873 = vpop.f32.mrb[0].mxu0
      %v874 = vadd.f32 %v303, %v873
      %v875 = vpop.f32.mrb[0].mxu0
      %v876 = vadd.f32 %v307, %v875
      %877 = vmatprep.mubr.bf16.mxu0 0
      %878 = vmatmul.mubr.bf16.gmra.mrb[0].mxu0 %v472
      %v879 = vpop.f32.mrb[0].mxu0
      %v880 = vadd.f32 %v303, %v879
      %v881 = vpop.f32.mrb[0].mxu0
      %v882 = vadd.f32 %v307, %v881
      %v883 = vpop.f32.mrb[0].mxu0
      %v884 = vadd.f32 %v303, %v883
      %v885 = vpop.f32.mrb[0].mxu0
      %v886 = vadd.f32 %v307, %v885
      %887 = vmatprep.mubr.bf16.mxu0 0
      %888 = vmatmul.mubr.bf16.gmra.mrb[0].mxu0 %v475
      %v889 = vpop.f32.mrb[0].mxu0
      %v890 = vadd.f32 %v303, %v889
      %v891 = vpop.f32.mrb[0].mxu0
      %v892 = vadd.f32 %v307, %v891
      %v893 = vpop.f32.mrb[0].mxu0
      %v894 = vadd.f32 %v303, %v893
      %v895 = vpop.f32.mrb[0].mxu0
      %v896 = vadd.f32 %v307, %v895
      %897 = vdwg.mxu0
      %898 = vmatprep.subr.bf16.mxu0 %v506
      %899 = vmatpush1.bf16.msra.mxu0 %v503
      %900 = vmatprep.subr.bf16.mxu0 0
      %901 = vmatpush1.bf16.msra.mxu0 0
      %902 = vmatprep.subr.bf16.mxu0 0
      %903 = vmatpush1.bf16.msra.mxu0 0
      %904 = vmatprep.subr.bf16.mxu0 0
      %905 = vmatpush1.bf16.msra.mxu0 0
      %906 = vmatprep.subr.bf16.mxu0 0
      %907 = vmatpush1.bf16.msra.mxu0 0
      %908 = vmatprep.subr.bf16.mxu0 0
      %909 = vmatpush1.bf16.msra.mxu0 0
      %910 = vmatprep.subr.bf16.mxu0 0
      %911 = vmatpush1.bf16.msra.mxu0 0
      %912 = vmatprep.subr.bf16.mxu0 0
      %913 = vmatpush1.bf16.msra.mxu0 0
      %914 = vmatprep.subr.bf16.mxu0 0
      %915 = vmatpush1.bf16.msra.mxu0 0
      %916 = vmatprep.subr.bf16.mxu0 0
      %917 = vmatpush1.bf16.msra.mxu0 0
      %918 = vmatprep.subr.bf16.mxu0 0
      %919 = vmatpush1.bf16.msra.mxu0 0
      %920 = vmatprep.subr.bf16.mxu0 0
      %921 = vmatpush1.bf16.msra.mxu0 0
      %922 = vmatprep.subr.bf16.mxu0 0
      %923 = vmatpush1.bf16.msra.mxu0 0
      %924 = vmatprep.subr.bf16.mxu0 0
      %925 = vmatpush1.bf16.msra.mxu0 0
      %926 = vmatprep.subr.bf16.mxu0 0
      %927 = vmatpush1.bf16.msra.mxu0 0
      %928 = vmatprep.subr.bf16.mxu0 0
      %929 = vmatpush1.bf16.msra.mxu0 0
      %930 = vmatprep.mubr.bf16.mxu0 0
      %931 = vmatmul.mubr.bf16.gmra.mrb[0].mxu0 %v460
      %v932 = vpop.f32.mrb[0].mxu0
      %v933 = vadd.f32 %v311, %v932
      %v934 = vpop.f32.mrb[0].mxu0
      %v935 = vadd.f32 %v315, %v934
      %v936 = vpop.f32.mrb[0].mxu0
      %v937 = vadd.f32 %v311, %v936
      %v938 = vpop.f32.mrb[0].mxu0
      %v939 = vadd.f32 %v315, %v938
      %940 = vmatprep.mubr.bf16.mxu0 0
      %941 = vmatmul.mubr.bf16.gmra.mrb[0].mxu0 %v463
      %v942 = vpop.f32.mrb[0].mxu0
      %v943 = vadd.f32 %v311, %v942
      %v944 = vpop.f32.mrb[0].mxu0
      %v945 = vadd.f32 %v315, %v944
      %v946 = vpop.f32.mrb[0].mxu0
      %v947 = vadd.f32 %v311, %v946
      %v948 = vpop.f32.mrb[0].mxu0
      %v949 = vadd.f32 %v315, %v948
      %950 = vmatprep.mubr.bf16.mxu0 0
      %951 = vmatmul.mubr.bf16.gmra.mrb[0].mxu0 %v466
      %v952 = vpop.f32.mrb[0].mxu0
      %v953 = vadd.f32 %v311, %v952
      %v954 = vpop.f32.mrb[0].mxu0
      %v955 = vadd.f32 %v315, %v954
      %v956 = vpop.f32.mrb[0].mxu0
      %v957 = vadd.f32 %v311, %v956
      %v958 = vpop.f32.mrb[0].mxu0
      %v959 = vadd.f32 %v315, %v958
      %960 = vmatprep.mubr.bf16.mxu0 0
      %961 = vmatmul.mubr.bf16.gmra.mrb[0].mxu0 %v469
      %v962 = vpop.f32.mrb[0].mxu0
      %v963 = vadd.f32 %v311, %v962
      %v964 = vpop.f32.mrb[0].mxu0
      %v965 = vadd.f32 %v315, %v964
      %v966 = vpop.f32.mrb[0].mxu0
      %v967 = vadd.f32 %v311, %v966
      %v968 = vpop.f32.mrb[0].mxu0
      %v969 = vadd.f32 %v315, %v968
      %970 = vmatprep.mubr.bf16.mxu0 0
      %971 = vmatmul.mubr.bf16.gmra.mrb[0].mxu0 %v472
      %v972 = vpop.f32.mrb[0].mxu0
      %v973 = vadd.f32 %v311, %v972
      %v974 = vpop.f32.mrb[0].mxu0
      %v975 = vadd.f32 %v315, %v974
      %v976 = vpop.f32.mrb[0].mxu0
      %v977 = vadd.f32 %v311, %v976
      %v978 = vpop.f32.mrb[0].mxu0
      %v979 = vadd.f32 %v315, %v978
      %980 = vmatprep.mubr.bf16.mxu0 0
      %981 = vmatmul.mubr.bf16.gmra.mrb[0].mxu0 %v475
      %v982 = vpop.f32.mrb[0].mxu0
      %v983 = vadd.f32 %v311, %v982
      %v984 = vpop.f32.mrb[0].mxu0
      %v985 = vadd.f32 %v315, %v984
      %v986 = vpop.f32.mrb[0].mxu0
      %v987 = vadd.f32 %v311, %v986
      %v988 = vpop.f32.mrb[0].mxu0
      %v989 = vadd.f32 %v315, %v988
      %990 = vdwg.mxu0
      %991 = vmatprep.subr.bf16.mxu0 %v512
      %992 = vmatpush1.bf16.msra.mxu0 %v509
      %993 = vmatprep.subr.bf16.mxu0 0
      %994 = vmatpush1.bf16.msra.mxu0 0
      %995 = vmatprep.subr.bf16.mxu0 0
      %996 = vmatpush1.bf16.msra.mxu0 0
      %997 = vmatprep.subr.bf16.mxu0 0
      %998 = vmatpush1.bf16.msra.mxu0 0
      %999 = vmatprep.subr.bf16.mxu0 0
      %1000 = vmatpush1.bf16.msra.mxu0 0
      %1001 = vmatprep.subr.bf16.mxu0 0
      %1002 = vmatpush1.bf16.msra.mxu0 0
      %1003 = vmatprep.subr.bf16.mxu0 0
      %1004 = vmatpush1.bf16.msra.mxu0 0
      %1005 = vmatprep.subr.bf16.mxu0 0
      %1006 = vmatpush1.bf16.msra.mxu0 0
      %1007 = vmatprep.subr.bf16.mxu0 0
      %1008 = vmatpush1.bf16.msra.mxu0 0
      %1009 = vmatprep.subr.bf16.mxu0 0
      %1010 = vmatpush1.bf16.msra.mxu0 0
      %1011 = vmatprep.subr.bf16.mxu0 0
      %1012 = vmatpush1.bf16.msra.mxu0 0
      %1013 = vmatprep.subr.bf16.mxu0 0
      %1014 = vmatpush1.bf16.msra.mxu0 0
      %1015 = vmatprep.subr.bf16.mxu0 0
      %1016 = vmatpush1.bf16.msra.mxu0 0
      %1017 = vmatprep.subr.bf16.mxu0 0
      %1018 = vmatpush1.bf16.msra.mxu0 0
      %1019 = vmatprep.subr.bf16.mxu0 0
      %1020 = vmatpush1.bf16.msra.mxu0 0
      %1021 = vmatprep.subr.bf16.mxu0 0
      %1022 = vmatpush1.bf16.msra.mxu0 0
      %1023 = vmatprep.mubr.bf16.mxu0 0
      %1024 = vmatmul.mubr.bf16.gmra.mrb[0].mxu0 %v460
      %v1025 = vpop.f32.mrb[0].mxu0
      %v1026 = vadd.f32 %v319, %v1025
      %v1027 = vpop.f32.mrb[0].mxu0
      %v1028 = vadd.f32 %v323, %v1027
      %v1029 = vpop.f32.mrb[0].mxu0
      %v1030 = vadd.f32 %v319, %v1029
      %v1031 = vpop.f32.mrb[0].mxu0
      %v1032 = vadd.f32 %v323, %v1031
      %1033 = vmatprep.mubr.bf16.mxu0 0
      %1034 = vmatmul.mubr.bf16.gmra.mrb[0].mxu0 %v463
      %v1035 = vpop.f32.mrb[0].mxu0
      %v1036 = vadd.f32 %v319, %v1035
      %v1037 = vpop.f32.mrb[0].mxu0
      %v1038 = vadd.f32 %v323, %v1037
      %v1039 = vpop.f32.mrb[0].mxu0
      %v1040 = vadd.f32 %v319, %v1039
      %v1041 = vpop.f32.mrb[0].mxu0
      %v1042 = vadd.f32 %v323, %v1041
      %1043 = vmatprep.mubr.bf16.mxu0 0
      %1044 = vmatmul.mubr.bf16.gmra.mrb[0].mxu0 %v466
      %v1045 = vpop.f32.mrb[0].mxu0
      %v1046 = vadd.f32 %v319, %v1045
      %v1047 = vpop.f32.mrb[0].mxu0
      %v1048 = vadd.f32 %v323, %v1047
      %v1049 = vpop.f32.mrb[0].mxu0
      %v1050 = vadd.f32 %v319, %v1049
      %v1051 = vpop.f32.mrb[0].mxu0
      %v1052 = vadd.f32 %v323, %v1051
      %1053 = vmatprep.mubr.bf16.mxu0 0
      %1054 = vmatmul.mubr.bf16.gmra.mrb[0].mxu0 %v469
      %v1055 = vpop.f32.mrb[0].mxu0
      %v1056 = vadd.f32 %v319, %v1055
      %v1057 = vpop.f32.mrb[0].mxu0
      %v1058 = vadd.f32 %v323, %v1057
      %v1059 = vpop.f32.mrb[0].mxu0
      %v1060 = vadd.f32 %v319, %v1059
      %v1061 = vpop.f32.mrb[0].mxu0
      %v1062 = vadd.f32 %v323, %v1061
      %1063 = vmatprep.mubr.bf16.mxu0 0
      %1064 = vmatmul.mubr.bf16.gmra.mrb[0].mxu0 %v472
      %v1065 = vpop.f32.mrb[0].mxu0
      %v1066 = vadd.f32 %v319, %v1065
      %v1067 = vpop.f32.mrb[0].mxu0
      %v1068 = vadd.f32 %v323, %v1067
      %v1069 = vpop.f32.mrb[0].mxu0
      %v1070 = vadd.f32 %v319, %v1069
      %v1071 = vpop.f32.mrb[0].mxu0
      %v1072 = vadd.f32 %v323, %v1071
      %1073 = vmatprep.mubr.bf16.mxu0 0
      %1074 = vmatmul.mubr.bf16.gmra.mrb[0].mxu0 %v475
      %v1075 = vpop.f32.mrb[0].mxu0
      %v1076 = vadd.f32 %v319, %v1075
      %v1077 = vpop.f32.mrb[0].mxu0
      %v1078 = vadd.f32 %v323, %v1077
      %v1079 = vpop.f32.mrb[0].mxu0
      %v1080 = vadd.f32 %v319, %v1079
      %v1081 = vpop.f32.mrb[0].mxu0
      %v1082 = vadd.f32 %v323, %v1081
      %1083 = vdwg.mxu0
      %1084 = vmatprep.subr.bf16.mxu0 %v518
      %1085 = vmatpush1.bf16.msra.mxu0 %v515
      %1086 = vmatprep.subr.bf16.mxu0 0
      %1087 = vmatpush1.bf16.msra.mxu0 0
      %1088 = vmatprep.subr.bf16.mxu0 0
      %1089 = vmatpush1.bf16.msra.mxu0 0
      %1090 = vmatprep.subr.bf16.mxu0 0
      %1091 = vmatpush1.bf16.msra.mxu0 0
      %1092 = vmatprep.subr.bf16.mxu0 0
      %1093 = vmatpush1.bf16.msra.mxu0 0
      %1094 = vmatprep.subr.bf16.mxu0 0
      %1095 = vmatpush1.bf16.msra.mxu0 0
      %1096 = vmatprep.subr.bf16.mxu0 0
      %1097 = vmatpush1.bf16.msra.mxu0 0
      %1098 = vmatprep.subr.bf16.mxu0 0
      %1099 = vmatpush1.bf16.msra.mxu0 0
      %1100 = vmatprep.subr.bf16.mxu0 0
      %1101 = vmatpush1.bf16.msra.mxu0 0
      %1102 = vmatprep.subr.bf16.mxu0 0
      %1103 = vmatpush1.bf16.msra.mxu0 0
      %1104 = vmatprep.subr.bf16.mxu0 0
      %1105 = vmatpush1.bf16.msra.mxu0 0
      %1106 = vmatprep.subr.bf16.mxu0 0
      %1107 = vmatpush1.bf16.msra.mxu0 0
      %1108 = vmatprep.subr.bf16.mxu0 0
      %1109 = vmatpush1.bf16.msra.mxu0 0
      %1110 = vmatprep.subr.bf16.mxu0 0
      %1111 = vmatpush1.bf16.msra.mxu0 0
      %1112 = vmatprep.subr.bf16.mxu0 0
      %1113 = vmatpush1.bf16.msra.mxu0 0
      %1114 = vmatprep.subr.bf16.mxu0 0
      %1115 = vmatpush1.bf16.msra.mxu0 0
      %1116 = vmatprep.mubr.bf16.mxu0 0
      %1117 = vmatmul.mubr.bf16.gmra.mrb[0].mxu0 %v460
      %v1118 = vpop.f32.mrb[0].mxu0
      %v1119 = vadd.f32 %v327, %v1118
      %v1120 = vpop.f32.mrb[0].mxu0
      %v1121 = vadd.f32 %v331, %v1120
      %v1122 = vpop.f32.mrb[0].mxu0
      %v1123 = vadd.f32 %v327, %v1122
      %v1124 = vpop.f32.mrb[0].mxu0
      %v1125 = vadd.f32 %v331, %v1124
      %1126 = vmatprep.mubr.bf16.mxu0 0
      %1127 = vmatmul.mubr.bf16.gmra.mrb[0].mxu0 %v463
      %v1128 = vpop.f32.mrb[0].mxu0
      %v1129 = vadd.f32 %v327, %v1128
      %v1130 = vpop.f32.mrb[0].mxu0
      %v1131 = vadd.f32 %v331, %v1130
      %v1132 = vpop.f32.mrb[0].mxu0
      %v1133 = vadd.f32 %v327, %v1132
      %v1134 = vpop.f32.mrb[0].mxu0
      %v1135 = vadd.f32 %v331, %v1134
      %1136 = vmatprep.mubr.bf16.mxu0 0
      %1137 = vmatmul.mubr.bf16.gmra.mrb[0].mxu0 %v466
      %v1138 = vpop.f32.mrb[0].mxu0
      %v1139 = vadd.f32 %v327, %v1138
      %v1140 = vpop.f32.mrb[0].mxu0
      %v1141 = vadd.f32 %v331, %v1140
      %v1142 = vpop.f32.mrb[0].mxu0
      %v1143 = vadd.f32 %v327, %v1142
      %v1144 = vpop.f32.mrb[0].mxu0
      %v1145 = vadd.f32 %v331, %v1144
      %1146 = vmatprep.mubr.bf16.mxu0 0
      %1147 = vmatmul.mubr.bf16.gmra.mrb[0].mxu0 %v469
      %v1148 = vpop.f32.mrb[0].mxu0
      %v1149 = vadd.f32 %v327, %v1148
      %v1150 = vpop.f32.mrb[0].mxu0
      %v1151 = vadd.f32 %v331, %v1150
      %v1152 = vpop.f32.mrb[0].mxu0
      %v1153 = vadd.f32 %v327, %v1152
      %v1154 = vpop.f32.mrb[0].mxu0
      %v1155 = vadd.f32 %v331, %v1154
      %1156 = vmatprep.mubr.bf16.mxu0 0
      %1157 = vmatmul.mubr.bf16.gmra.mrb[0].mxu0 %v472
      %v1158 = vpop.f32.mrb[0].mxu0
      %v1159 = vadd.f32 %v327, %v1158
      %v1160 = vpop.f32.mrb[0].mxu0
      %v1161 = vadd.f32 %v331, %v1160
      %v1162 = vpop.f32.mrb[0].mxu0
      %v1163 = vadd.f32 %v327, %v1162
      %v1164 = vpop.f32.mrb[0].mxu0
      %v1165 = vadd.f32 %v331, %v1164
      %1166 = vmatprep.mubr.bf16.mxu0 0
      %1167 = vmatmul.mubr.bf16.gmra.mrb[0].mxu0 %v475
      %v1168 = vpop.f32.mrb[0].mxu0
      %v1169 = vadd.f32 %v327, %v1168
      %v1170 = vpop.f32.mrb[0].mxu0
      %v1171 = vadd.f32 %v331, %v1170
      %v1172 = vpop.f32.mrb[0].mxu0
      %v1173 = vadd.f32 %v327, %v1172
      %v1174 = vpop.f32.mrb[0].mxu0
      %v1175 = vadd.f32 %v331, %v1174
      %1176 = vdwg.mxu0
      %1177 = vmatprep.subr.bf16.mxu0 %v524
      %1178 = vmatpush1.bf16.msra.mxu0 %v521
      %1179 = vmatprep.subr.bf16.mxu0 0
      %1180 = vmatpush1.bf16.msra.mxu0 0
      %1181 = vmatprep.subr.bf16.mxu0 0
      %1182 = vmatpush1.bf16.msra.mxu0 0
      %1183 = vmatprep.subr.bf16.mxu0 0
      %1184 = vmatpush1.bf16.msra.mxu0 0
      %1185 = vmatprep.subr.bf16.mxu0 0
      %1186 = vmatpush1.bf16.msra.mxu0 0
      %1187 = vmatprep.subr.bf16.mxu0 0
      %1188 = vmatpush1.bf16.msra.mxu0 0
      %1189 = vmatprep.subr.bf16.mxu0 0
      %1190 = vmatpush1.bf16.msra.mxu0 0
      %1191 = vmatprep.subr.bf16.mxu0 0
      %1192 = vmatpush1.bf16.msra.mxu0 0
      %1193 = vmatprep.subr.bf16.mxu0 0
      %1194 = vmatpush1.bf16.msra.mxu0 0
      %1195 = vmatprep.subr.bf16.mxu0 0
      %1196 = vmatpush1.bf16.msra.mxu0 0
      %1197 = vmatprep.subr.bf16.mxu0 0
      %1198 = vmatpush1.bf16.msra.mxu0 0
      %1199 = vmatprep.subr.bf16.mxu0 0
      %1200 = vmatpush1.bf16.msra.mxu0 0
      %1201 = vmatprep.subr.bf16.mxu0 0
      %1202 = vmatpush1.bf16.msra.mxu0 0
      %1203 = vmatprep.subr.bf16.mxu0 0
      %1204 = vmatpush1.bf16.msra.mxu0 0
      %1205 = vmatprep.subr.bf16.mxu0 0
      %1206 = vmatpush1.bf16.msra.mxu0 0
      %1207 = vmatprep.subr.bf16.mxu0 0
      %1208 = vmatpush1.bf16.msra.mxu0 0
      %1209 = vmatprep.mubr.bf16.mxu0 0
      %1210 = vmatmul.mubr.bf16.gmra.mrb[0].mxu0 %v460
      %v1211 = vpop.f32.mrb[0].mxu0
      %v1212 = vadd.f32 %v335, %v1211
      %v1213 = vpop.f32.mrb[0].mxu0
      %v1214 = vadd.f32 %v339, %v1213
      %v1215 = vpop.f32.mrb[0].mxu0
      %v1216 = vadd.f32 %v335, %v1215
      %v1217 = vpop.f32.mrb[0].mxu0
      %v1218 = vadd.f32 %v339, %v1217
      %1219 = vmatprep.mubr.bf16.mxu0 0
      %1220 = vmatmul.mubr.bf16.gmra.mrb[0].mxu0 %v463
      %v1221 = vpop.f32.mrb[0].mxu0
      %v1222 = vadd.f32 %v335, %v1221
      %v1223 = vpop.f32.mrb[0].mxu0
      %v1224 = vadd.f32 %v339, %v1223
      %v1225 = vpop.f32.mrb[0].mxu0
      %v1226 = vadd.f32 %v335, %v1225
      %v1227 = vpop.f32.mrb[0].mxu0
      %v1228 = vadd.f32 %v339, %v1227
      %1229 = vmatprep.mubr.bf16.mxu0 0
      %1230 = vmatmul.mubr.bf16.gmra.mrb[0].mxu0 %v466
      %v1231 = vpop.f32.mrb[0].mxu0
      %v1232 = vadd.f32 %v335, %v1231
      %v1233 = vpop.f32.mrb[0].mxu0
      %v1234 = vadd.f32 %v339, %v1233
      %v1235 = vpop.f32.mrb[0].mxu0
      %v1236 = vadd.f32 %v335, %v1235
      %v1237 = vpop.f32.mrb[0].mxu0
      %v1238 = vadd.f32 %v339, %v1237
      %1239 = vmatprep.mubr.bf16.mxu0 0
      %1240 = vmatmul.mubr.bf16.gmra.mrb[0].mxu0 %v469
      %v1241 = vpop.f32.mrb[0].mxu0
      %v1242 = vadd.f32 %v335, %v1241
      %v1243 = vpop.f32.mrb[0].mxu0
      %v1244 = vadd.f32 %v339, %v1243
      %v1245 = vpop.f32.mrb[0].mxu0
      %v1246 = vadd.f32 %v335, %v1245
      %v1247 = vpop.f32.mrb[0].mxu0
      %v1248 = vadd.f32 %v339, %v1247
      %1249 = vmatprep.mubr.bf16.mxu0 0
      %1250 = vmatmul.mubr.bf16.gmra.mrb[0].mxu0 %v472
      %v1251 = vpop.f32.mrb[0].mxu0
      %v1252 = vadd.f32 %v335, %v1251
      %v1253 = vpop.f32.mrb[0].mxu0
      %v1254 = vadd.f32 %v339, %v1253
      %v1255 = vpop.f32.mrb[0].mxu0
      %v1256 = vadd.f32 %v335, %v1255
      %v1257 = vpop.f32.mrb[0].mxu0
      %v1258 = vadd.f32 %v339, %v1257
      %1259 = vmatprep.mubr.bf16.mxu0 0
      %1260 = vmatmul.mubr.bf16.gmra.mrb[0].mxu0 %v475
      %v1261 = vpop.f32.mrb[0].mxu0
      %v1262 = vadd.f32 %v335, %v1261
      %v1263 = vpop.f32.mrb[0].mxu0
      %v1264 = vadd.f32 %v339, %v1263
      %v1265 = vpop.f32.mrb[0].mxu0
      %v1266 = vadd.f32 %v335, %v1265
      %v1267 = vpop.f32.mrb[0].mxu0
      %v1268 = vadd.f32 %v339, %v1267
      %1269 = vdwg.mxu0
      %v1270 = vmax.f32 %v561, 0.0
      %v1271 = vmax.f32 %v563, 0.0
      %v1272 = vmax.f32 %v654, 0.0
      %v1273 = vmax.f32 %v656, 0.0
      %v1274 = vmax.f32 %v747, 0.0
      %v1275 = vmax.f32 %v749, 0.0
      %v1276 = vmax.f32 %v840, 0.0
      %v1277 = vmax.f32 %v842, 0.0
      %v1278 = vmax.f32 %v933, 0.0
      %v1279 = vmax.f32 %v935, 0.0
      %v1280 = vmax.f32 %v1026, 0.0
      %v1281 = vmax.f32 %v1028, 0.0
      %v1282 = vmax.f32 %v1119, 0.0
      %v1283 = vmax.f32 %v1121, 0.0
      %v1284 = vmax.f32 %v1212, 0.0
      %v1285 = vmax.f32 %v1214, 0.0
      %v1286 = vmax.f32 %v565, 0.0
      %v1287 = vmax.f32 %v567, 0.0
      %v1288 = vmax.f32 %v658, 0.0
      %v1289 = vmax.f32 %v660, 0.0
      %v1290 = vmax.f32 %v751, 0.0
      %v1291 = vmax.f32 %v753, 0.0
      %v1292 = vmax.f32 %v844, 0.0
      %v1293 = vmax.f32 %v846, 0.0
      %v1294 = vmax.f32 %v937, 0.0
      %v1295 = vmax.f32 %v939, 0.0
      %v1296 = vmax.f32 %v1030, 0.0
      %v1297 = vmax.f32 %v1032, 0.0
      %v1298 = vmax.f32 %v1123, 0.0
      %v1299 = vmax.f32 %v1125, 0.0
      %v1300 = vmax.f32 %v1216, 0.0
      %v1301 = vmax.f32 %v1218, 0.0
      %v1302 = vmax.f32 %v571, 0.0
      %v1303 = vmax.f32 %v573, 0.0
      %v1304 = vmax.f32 %v664, 0.0
      %v1305 = vmax.f32 %v666, 0.0
      %v1306 = vmax.f32 %v757, 0.0
      %v1307 = vmax.f32 %v759, 0.0
      %v1308 = vmax.f32 %v850, 0.0
      %v1309 = vmax.f32 %v852, 0.0
      %v1310 = vmax.f32 %v943, 0.0
      %v1311 = vmax.f32 %v945, 0.0
      %v1312 = vmax.f32 %v1036, 0.0
      %v1313 = vmax.f32 %v1038, 0.0
      %v1314 = vmax.f32 %v1129, 0.0
      %v1315 = vmax.f32 %v1131, 0.0
      %v1316 = vmax.f32 %v1222, 0.0
      %v1317 = vmax.f32 %v1224, 0.0
      %v1318 = vmax.f32 %v575, 0.0
      %v1319 = vmax.f32 %v577, 0.0
      %v1320 = vmax.f32 %v668, 0.0
      %v1321 = vmax.f32 %v670, 0.0
      %v1322 = vmax.f32 %v761, 0.0
      %v1323 = vmax.f32 %v763, 0.0
      %v1324 = vmax.f32 %v854, 0.0
      %v1325 = vmax.f32 %v856, 0.0
      %v1326 = vmax.f32 %v947, 0.0
      %v1327 = vmax.f32 %v949, 0.0
      %v1328 = vmax.f32 %v1040, 0.0
      %v1329 = vmax.f32 %v1042, 0.0
      %v1330 = vmax.f32 %v1133, 0.0
      %v1331 = vmax.f32 %v1135, 0.0
      %v1332 = vmax.f32 %v1226, 0.0
      %v1333 = vmax.f32 %v1228, 0.0
      %v1334 = vmax.f32 %v581, 0.0
      %v1335 = vmax.f32 %v583, 0.0
      %v1336 = vmax.f32 %v674, 0.0
      %v1337 = vmax.f32 %v676, 0.0
      %v1338 = vmax.f32 %v767, 0.0
      %v1339 = vmax.f32 %v769, 0.0
      %v1340 = vmax.f32 %v860, 0.0
      %v1341 = vmax.f32 %v862, 0.0
      %v1342 = vmax.f32 %v953, 0.0
      %v1343 = vmax.f32 %v955, 0.0
      %v1344 = vmax.f32 %v1046, 0.0
      %v1345 = vmax.f32 %v1048, 0.0
      %v1346 = vmax.f32 %v1139, 0.0
      %v1347 = vmax.f32 %v1141, 0.0
      %v1348 = vmax.f32 %v1232, 0.0
      %v1349 = vmax.f32 %v1234, 0.0
      %v1350 = vmax.f32 %v585, 0.0
      %v1351 = vmax.f32 %v587, 0.0
      %v1352 = vmax.f32 %v678, 0.0
      %v1353 = vmax.f32 %v680, 0.0
      %v1354 = vmax.f32 %v771, 0.0
      %v1355 = vmax.f32 %v773, 0.0
      %v1356 = vmax.f32 %v864, 0.0
      %v1357 = vmax.f32 %v866, 0.0
      %v1358 = vmax.f32 %v957, 0.0
      %v1359 = vmax.f32 %v959, 0.0
      %v1360 = vmax.f32 %v1050, 0.0
      %v1361 = vmax.f32 %v1052, 0.0
      %v1362 = vmax.f32 %v1143, 0.0
      %v1363 = vmax.f32 %v1145, 0.0
      %v1364 = vmax.f32 %v1236, 0.0
      %v1365 = vmax.f32 %v1238, 0.0
      %v1366 = vmax.f32 %v591, 0.0
      %v1367 = vmax.f32 %v593, 0.0
      %v1368 = vmax.f32 %v684, 0.0
      %v1369 = vmax.f32 %v686, 0.0
      %v1370 = vmax.f32 %v777, 0.0
      %v1371 = vmax.f32 %v779, 0.0
      %v1372 = vmax.f32 %v870, 0.0
      %v1373 = vmax.f32 %v872, 0.0
      %v1374 = vmax.f32 %v963, 0.0
      %v1375 = vmax.f32 %v965, 0.0
      %v1376 = vmax.f32 %v1056, 0.0
      %v1377 = vmax.f32 %v1058, 0.0
      %v1378 = vmax.f32 %v1149, 0.0
      %v1379 = vmax.f32 %v1151, 0.0
      %v1380 = vmax.f32 %v1242, 0.0
      %v1381 = vmax.f32 %v1244, 0.0
      %v1382 = vmax.f32 %v595, 0.0
      %v1383 = vmax.f32 %v597, 0.0
      %v1384 = vmax.f32 %v688, 0.0
      %v1385 = vmax.f32 %v690, 0.0
      %v1386 = vmax.f32 %v781, 0.0
      %v1387 = vmax.f32 %v783, 0.0
      %v1388 = vmax.f32 %v874, 0.0
      %v1389 = vmax.f32 %v876, 0.0
      %v1390 = vmax.f32 %v967, 0.0
      %v1391 = vmax.f32 %v969, 0.0
      %v1392 = vmax.f32 %v1060, 0.0
      %v1393 = vmax.f32 %v1062, 0.0
      %v1394 = vmax.f32 %v1153, 0.0
      %v1395 = vmax.f32 %v1155, 0.0
      %v1396 = vmax.f32 %v1246, 0.0
      %v1397 = vmax.f32 %v1248, 0.0
      %v1398 = vmax.f32 %v601, 0.0
      %v1399 = vmax.f32 %v603, 0.0
      %v1400 = vmax.f32 %v694, 0.0
      %v1401 = vmax.f32 %v696, 0.0
      %v1402 = vmax.f32 %v787, 0.0
      %v1403 = vmax.f32 %v789, 0.0
      %v1404 = vmax.f32 %v880, 0.0
      %v1405 = vmax.f32 %v882, 0.0
      %v1406 = vmax.f32 %v973, 0.0
      %v1407 = vmax.f32 %v975, 0.0
      %v1408 = vmax.f32 %v1066, 0.0
      %v1409 = vmax.f32 %v1068, 0.0
      %v1410 = vmax.f32 %v1159, 0.0
      %v1411 = vmax.f32 %v1161, 0.0
      %v1412 = vmax.f32 %v1252, 0.0
      %v1413 = vmax.f32 %v1254, 0.0
      %v1414 = vmax.f32 %v605, 0.0
      %v1415 = vmax.f32 %v607, 0.0
      %v1416 = vmax.f32 %v698, 0.0
      %v1417 = vmax.f32 %v700, 0.0
      %v1418 = vmax.f32 %v791, 0.0
      %v1419 = vmax.f32 %v793, 0.0
      %v1420 = vmax.f32 %v884, 0.0
      %v1421 = vmax.f32 %v886, 0.0
      %v1422 = vmax.f32 %v977, 0.0
      %v1423 = vmax.f32 %v979, 0.0
      %v1424 = vmax.f32 %v1070, 0.0
      %v1425 = vmax.f32 %v1072, 0.0
      %v1426 = vmax.f32 %v1163, 0.0
      %v1427 = vmax.f32 %v1165, 0.0
      %v1428 = vmax.f32 %v1256, 0.0
      %v1429 = vmax.f32 %v1258, 0.0
      %v1430 = vmax.f32 %v611, 0.0
      %v1431 = vmax.f32 %v613, 0.0
      %v1432 = vmax.f32 %v704, 0.0
      %v1433 = vmax.f32 %v706, 0.0
      %v1434 = vmax.f32 %v797, 0.0
      %v1435 = vmax.f32 %v799, 0.0
      %v1436 = vmax.f32 %v890, 0.0
      %v1437 = vmax.f32 %v892, 0.0
      %v1438 = vmax.f32 %v983, 0.0
      %v1439 = vmax.f32 %v985, 0.0
      %v1440 = vmax.f32 %v1076, 0.0
      %v1441 = vmax.f32 %v1078, 0.0
      %v1442 = vmax.f32 %v1169, 0.0
      %v1443 = vmax.f32 %v1171, 0.0
      %v1444 = vmax.f32 %v1262, 0.0
      %v1445 = vmax.f32 %v1264, 0.0
      %v1446 = vmax.f32 %v615, 0.0
      %v1447 = vmax.f32 %v617, 0.0
      %v1448 = vmax.f32 %v708, 0.0
      %v1449 = vmax.f32 %v710, 0.0
      %v1450 = vmax.f32 %v801, 0.0
      %v1451 = vmax.f32 %v803, 0.0
      %v1452 = vmax.f32 %v894, 0.0
      %v1453 = vmax.f32 %v896, 0.0
      %v1454 = vmax.f32 %v987, 0.0
      %v1455 = vmax.f32 %v989, 0.0
      %v1456 = vmax.f32 %v1080, 0.0
      %v1457 = vmax.f32 %v1082, 0.0
      %v1458 = vmax.f32 %v1173, 0.0
      %v1459 = vmax.f32 %v1175, 0.0
      %v1460 = vmax.f32 %v1266, 0.0
      %v1461 = vmax.f32 %v1268, 0.0
      %v1462 = vld [vmem:[#allocation2] sm:$0xff]
      %v1463 = vld [vmem:[#allocation2 + $0x8] sm:$0xff]
      %vm1464 = vcmask 785408
      %v1466 = vsel %vm1464, 1.0, 0
      %1468 = vmatprep.subr.mxu0 %v1271
      %1469 = vmatpush1.msra.mxu0 %v1270
      %1470 = vmatprep.subr.mxu0 %v1287
      %1471 = vmatpush1.msra.mxu0 %v1286
      %1472 = vmatprep.subr.mxu0 %v1303
      %1473 = vmatpush1.msra.mxu0 %v1302
      %1474 = vmatprep.subr.mxu0 %v1319
      %1475 = vmatpush1.msra.mxu0 %v1318
      %1476 = vmatprep.subr.mxu0 %v1335
      %1477 = vmatpush1.msra.mxu0 %v1334
      %1478 = vmatprep.subr.mxu0 %v1351
      %1479 = vmatpush1.msra.mxu0 %v1350
      %1480 = vmatprep.subr.mxu0 %v1367
      %1481 = vmatpush1.msra.mxu0 %v1366
      %1482 = vmatprep.subr.mxu0 %v1383
      %1483 = vmatpush1.msra.mxu0 %v1382
      %1484 = vmatprep.subr.mxu0 %v1399
      %1485 = vmatpush1.msra.mxu0 %v1398
      %1486 = vmatprep.subr.mxu0 %v1415
      %1487 = vmatpush1.msra.mxu0 %v1414
      %1488 = vmatprep.subr.mxu0 %v1431
      %1489 = vmatpush1.msra.mxu0 %v1430
      %1490 = vmatprep.subr.mxu0 %v1447
      %1491 = vmatpush1.msra.mxu0 %v1446
      %1492 = vmatprep.subr.mxu0 0.0
      %1493 = vmatpush1.msra.mxu0 0.0
      %1494 = vmatprep.subr.mxu0 0.0
      %1495 = vmatpush1.msra.mxu0 0.0
      %1496 = vmatprep.subr.mxu0 0.0
      %1497 = vmatpush1.msra.mxu0 0.0
      %1498 = vmatprep.subr.mxu0 0.0
      %1499 = vmatpush1.msra.mxu0 0.0
      %1500 = vmatprep.subr.mxu0 0.0
      %1501 = vmatpush1.msra.mxu0 0.0
      %1502 = vmatprep.subr.mxu0 0.0
      %1503 = vmatpush1.msra.mxu0 0.0
      %1504 = vmatprep.subr.mxu0 0.0
      %1505 = vmatpush1.msra.mxu0 0.0
      %1506 = vmatprep.subr.mxu0 0.0
      %1507 = vmatpush1.msra.mxu0 0.0
      %1508 = vmatprep.subr.mxu0 0.0
      %1509 = vmatpush1.msra.mxu0 0.0
      %1510 = vmatprep.subr.mxu0 0.0
      %1511 = vmatpush1.msra.mxu0 0.0
      %1512 = vmatprep.subr.mxu0 0.0
      %1513 = vmatpush1.msra.mxu0 0.0
      %1514 = vmatprep.subr.mxu0 0.0
      %1515 = vmatpush1.msra.mxu0 0.0
      %1516 = vmatprep.subr.mxu0 0.0
      %1517 = vmatpush1.msra.mxu0 0.0
      %1518 = vmatprep.subr.mxu0 0.0
      %1519 = vmatpush1.msra.mxu0 0.0
      %1520 = vmatprep.subr.mxu0 0.0
      %1521 = vmatpush1.msra.mxu0 0.0
      %1522 = vmatprep.subr.mxu0 0.0
      %1523 = vmatpush1.msra.mxu0 0.0
      %1524 = vmatprep.subr.mxu0 0.0
      %1525 = vmatpush1.msra.mxu0 0.0
      %1526 = vmatprep.subr.mxu0 0.0
      %1527 = vmatpush1.msra.mxu0 0.0
      %1528 = vmatprep.subr.mxu0 0.0
      %1529 = vmatpush1.msra.mxu0 0.0
      %1530 = vmatprep.subr.mxu0 0.0
      %1531 = vmatpush1.msra.mxu0 0.0
      %1532 = vmatprep.mubr.f32.mxu0 0.0
      %1533 = vmatmul.mubr.f32.gmra.mrb[0].mxu0 %v1466
      %v1534 = vpop.f32.mrb[0].mxu0
      %v1535 = vadd.f32 0.0, %v1534
      %v1536 = vpop.f32.mrb[0].mxu0
      %v1537 = vadd.f32 0.0, %v1536
      %1538 = vdwg.mxu0
      %1539 = vmatprep.subr.mxu0 %v1273
      %1540 = vmatpush1.msra.mxu0 %v1272
      %1541 = vmatprep.subr.mxu0 %v1289
      %1542 = vmatpush1.msra.mxu0 %v1288
      %1543 = vmatprep.subr.mxu0 %v1305
      %1544 = vmatpush1.msra.mxu0 %v1304
      %1545 = vmatprep.subr.mxu0 %v1321
      %1546 = vmatpush1.msra.mxu0 %v1320
      %1547 = vmatprep.subr.mxu0 %v1337
      %1548 = vmatpush1.msra.mxu0 %v1336
      %1549 = vmatprep.subr.mxu0 %v1353
      %1550 = vmatpush1.msra.mxu0 %v1352
      %1551 = vmatprep.subr.mxu0 %v1369
      %1552 = vmatpush1.msra.mxu0 %v1368
      %1553 = vmatprep.subr.mxu0 %v1385
      %1554 = vmatpush1.msra.mxu0 %v1384
      %1555 = vmatprep.subr.mxu0 %v1401
      %1556 = vmatpush1.msra.mxu0 %v1400
      %1557 = vmatprep.subr.mxu0 %v1417
      %1558 = vmatpush1.msra.mxu0 %v1416
      %1559 = vmatprep.subr.mxu0 %v1433
      %1560 = vmatpush1.msra.mxu0 %v1432
      %1561 = vmatprep.subr.mxu0 %v1449
      %1562 = vmatpush1.msra.mxu0 %v1448
      %1563 = vmatprep.subr.mxu0 0.0
      %1564 = vmatpush1.msra.mxu0 0.0
      %1565 = vmatprep.subr.mxu0 0.0
      %1566 = vmatpush1.msra.mxu0 0.0
      %1567 = vmatprep.subr.mxu0 0.0
      %1568 = vmatpush1.msra.mxu0 0.0
      %1569 = vmatprep.subr.mxu0 0.0
      %1570 = vmatpush1.msra.mxu0 0.0
      %1571 = vmatprep.subr.mxu0 0.0
      %1572 = vmatpush1.msra.mxu0 0.0
      %1573 = vmatprep.subr.mxu0 0.0
      %1574 = vmatpush1.msra.mxu0 0.0
      %1575 = vmatprep.subr.mxu0 0.0
      %1576 = vmatpush1.msra.mxu0 0.0
      %1577 = vmatprep.subr.mxu0 0.0
      %1578 = vmatpush1.msra.mxu0 0.0
      %1579 = vmatprep.subr.mxu0 0.0
      %1580 = vmatpush1.msra.mxu0 0.0
      %1581 = vmatprep.subr.mxu0 0.0
      %1582 = vmatpush1.msra.mxu0 0.0
      %1583 = vmatprep.subr.mxu0 0.0
      %1584 = vmatpush1.msra.mxu0 0.0
      %1585 = vmatprep.subr.mxu0 0.0
      %1586 = vmatpush1.msra.mxu0 0.0
      %1587 = vmatprep.subr.mxu0 0.0
      %1588 = vmatpush1.msra.mxu0 0.0
      %1589 = vmatprep.subr.mxu0 0.0
      %1590 = vmatpush1.msra.mxu0 0.0
      %1591 = vmatprep.subr.mxu0 0.0
      %1592 = vmatpush1.msra.mxu0 0.0
      %1593 = vmatprep.subr.mxu0 0.0
      %1594 = vmatpush1.msra.mxu0 0.0
      %1595 = vmatprep.subr.mxu0 0.0
      %1596 = vmatpush1.msra.mxu0 0.0
      %1597 = vmatprep.subr.mxu0 0.0
      %1598 = vmatpush1.msra.mxu0 0.0
      %1599 = vmatprep.subr.mxu0 0.0
      %1600 = vmatpush1.msra.mxu0 0.0
      %1601 = vmatprep.subr.mxu0 0.0
      %1602 = vmatpush1.msra.mxu0 0.0
      %1603 = vmatprep.mubr.f32.mxu0 0.0
      %1604 = vmatmul.mubr.f32.gmra.mrb[0].mxu0 %v1466
      %v1605 = vpop.f32.mrb[0].mxu0
      %v1606 = vadd.f32 0.0, %v1605
      %v1607 = vpop.f32.mrb[0].mxu0
      %v1608 = vadd.f32 0.0, %v1607
      %1609 = vdwg.mxu0
      %1610 = vmatprep.subr.mxu0 %v1275
      %1611 = vmatpush1.msra.mxu0 %v1274
      %1612 = vmatprep.subr.mxu0 %v1291
      %1613 = vmatpush1.msra.mxu0 %v1290
      %1614 = vmatprep.subr.mxu0 %v1307
      %1615 = vmatpush1.msra.mxu0 %v1306
      %1616 = vmatprep.subr.mxu0 %v1323
      %1617 = vmatpush1.msra.mxu0 %v1322
      %1618 = vmatprep.subr.mxu0 %v1339
      %1619 = vmatpush1.msra.mxu0 %v1338
      %1620 = vmatprep.subr.mxu0 %v1355
      %1621 = vmatpush1.msra.mxu0 %v1354
      %1622 = vmatprep.subr.mxu0 %v1371
      %1623 = vmatpush1.msra.mxu0 %v1370
      %1624 = vmatprep.subr.mxu0 %v1387
      %1625 = vmatpush1.msra.mxu0 %v1386
      %1626 = vmatprep.subr.mxu0 %v1403
      %1627 = vmatpush1.msra.mxu0 %v1402
      %1628 = vmatprep.subr.mxu0 %v1419
      %1629 = vmatpush1.msra.mxu0 %v1418
      %1630 = vmatprep.subr.mxu0 %v1435
      %1631 = vmatpush1.msra.mxu0 %v1434
      %1632 = vmatprep.subr.mxu0 %v1451
      %1633 = vmatpush1.msra.mxu0 %v1450
      %1634 = vmatprep.subr.mxu0 0.0
      %1635 = vmatpush1.msra.mxu0 0.0
      %1636 = vmatprep.subr.mxu0 0.0
      %1637 = vmatpush1.msra.mxu0 0.0
      %1638 = vmatprep.subr.mxu0 0.0
      %1639 = vmatpush1.msra.mxu0 0.0
      %1640 = vmatprep.subr.mxu0 0.0
      %1641 = vmatpush1.msra.mxu0 0.0
      %1642 = vmatprep.subr.mxu0 0.0
      %1643 = vmatpush1.msra.mxu0 0.0
      %1644 = vmatprep.subr.mxu0 0.0
      %1645 = vmatpush1.msra.mxu0 0.0
      %1646 = vmatprep.subr.mxu0 0.0
      %1647 = vmatpush1.msra.mxu0 0.0
      %1648 = vmatprep.subr.mxu0 0.0
      %1649 = vmatpush1.msra.mxu0 0.0
      %1650 = vmatprep.subr.mxu0 0.0
      %1651 = vmatpush1.msra.mxu0 0.0
      %1652 = vmatprep.subr.mxu0 0.0
      %1653 = vmatpush1.msra.mxu0 0.0
      %1654 = vmatprep.subr.mxu0 0.0
      %1655 = vmatpush1.msra.mxu0 0.0
      %1656 = vmatprep.subr.mxu0 0.0
      %1657 = vmatpush1.msra.mxu0 0.0
      %1658 = vmatprep.subr.mxu0 0.0
      %1659 = vmatpush1.msra.mxu0 0.0
      %1660 = vmatprep.subr.mxu0 0.0
      %1661 = vmatpush1.msra.mxu0 0.0
      %1662 = vmatprep.subr.mxu0 0.0
      %1663 = vmatpush1.msra.mxu0 0.0
      %1664 = vmatprep.subr.mxu0 0.0
      %1665 = vmatpush1.msra.mxu0 0.0
      %1666 = vmatprep.subr.mxu0 0.0
      %1667 = vmatpush1.msra.mxu0 0.0
      %1668 = vmatprep.subr.mxu0 0.0
      %1669 = vmatpush1.msra.mxu0 0.0
      %1670 = vmatprep.subr.mxu0 0.0
      %1671 = vmatpush1.msra.mxu0 0.0
      %1672 = vmatprep.subr.mxu0 0.0
      %1673 = vmatpush1.msra.mxu0 0.0
      %1674 = vmatprep.mubr.f32.mxu0 0.0
      %1675 = vmatmul.mubr.f32.gmra.mrb[0].mxu0 %v1466
      %v1676 = vpop.f32.mrb[0].mxu0
      %v1677 = vadd.f32 0.0, %v1676
      %v1678 = vpop.f32.mrb[0].mxu0
      %v1679 = vadd.f32 0.0, %v1678
      %1680 = vdwg.mxu0
      %1681 = vmatprep.subr.mxu0 %v1277
      %1682 = vmatpush1.msra.mxu0 %v1276
      %1683 = vmatprep.subr.mxu0 %v1293
      %1684 = vmatpush1.msra.mxu0 %v1292
      %1685 = vmatprep.subr.mxu0 %v1309
      %1686 = vmatpush1.msra.mxu0 %v1308
      %1687 = vmatprep.subr.mxu0 %v1325
      %1688 = vmatpush1.msra.mxu0 %v1324
      %1689 = vmatprep.subr.mxu0 %v1341
      %1690 = vmatpush1.msra.mxu0 %v1340
      %1691 = vmatprep.subr.mxu0 %v1357
      %1692 = vmatpush1.msra.mxu0 %v1356
      %1693 = vmatprep.subr.mxu0 %v1373
      %1694 = vmatpush1.msra.mxu0 %v1372
      %1695 = vmatprep.subr.mxu0 %v1389
      %1696 = vmatpush1.msra.mxu0 %v1388
      %1697 = vmatprep.subr.mxu0 %v1405
      %1698 = vmatpush1.msra.mxu0 %v1404
      %1699 = vmatprep.subr.mxu0 %v1421
      %1700 = vmatpush1.msra.mxu0 %v1420
      %1701 = vmatprep.subr.mxu0 %v1437
      %1702 = vmatpush1.msra.mxu0 %v1436
      %1703 = vmatprep.subr.mxu0 %v1453
      %1704 = vmatpush1.msra.mxu0 %v1452
      %1705 = vmatprep.subr.mxu0 0.0
      %1706 = vmatpush1.msra.mxu0 0.0
      %1707 = vmatprep.subr.mxu0 0.0
      %1708 = vmatpush1.msra.mxu0 0.0
      %1709 = vmatprep.subr.mxu0 0.0
      %1710 = vmatpush1.msra.mxu0 0.0
      %1711 = vmatprep.subr.mxu0 0.0
      %1712 = vmatpush1.msra.mxu0 0.0
      %1713 = vmatprep.subr.mxu0 0.0
      %1714 = vmatpush1.msra.mxu0 0.0
      %1715 = vmatprep.subr.mxu0 0.0
      %1716 = vmatpush1.msra.mxu0 0.0
      %1717 = vmatprep.subr.mxu0 0.0
      %1718 = vmatpush1.msra.mxu0 0.0
      %1719 = vmatprep.subr.mxu0 0.0
      %1720 = vmatpush1.msra.mxu0 0.0
      %1721 = vmatprep.subr.mxu0 0.0
      %1722 = vmatpush1.msra.mxu0 0.0
      %1723 = vmatprep.subr.mxu0 0.0
      %1724 = vmatpush1.msra.mxu0 0.0
      %1725 = vmatprep.subr.mxu0 0.0
      %1726 = vmatpush1.msra.mxu0 0.0
      %1727 = vmatprep.subr.mxu0 0.0
      %1728 = vmatpush1.msra.mxu0 0.0
      %1729 = vmatprep.subr.mxu0 0.0
      %1730 = vmatpush1.msra.mxu0 0.0
      %1731 = vmatprep.subr.mxu0 0.0
      %1732 = vmatpush1.msra.mxu0 0.0
      %1733 = vmatprep.subr.mxu0 0.0
      %1734 = vmatpush1.msra.mxu0 0.0
      %1735 = vmatprep.subr.mxu0 0.0
      %1736 = vmatpush1.msra.mxu0 0.0
      %1737 = vmatprep.subr.mxu0 0.0
      %1738 = vmatpush1.msra.mxu0 0.0
      %1739 = vmatprep.subr.mxu0 0.0
      %1740 = vmatpush1.msra.mxu0 0.0
      %1741 = vmatprep.subr.mxu0 0.0
      %1742 = vmatpush1.msra.mxu0 0.0
      %1743 = vmatprep.subr.mxu0 0.0
      %1744 = vmatpush1.msra.mxu0 0.0
      %1745 = vmatprep.mubr.f32.mxu0 0.0
      %1746 = vmatmul.mubr.f32.gmra.mrb[0].mxu0 %v1466
      %v1747 = vpop.f32.mrb[0].mxu0
      %v1748 = vadd.f32 0.0, %v1747
      %v1749 = vpop.f32.mrb[0].mxu0
      %v1750 = vadd.f32 0.0, %v1749
      %1751 = vdwg.mxu0
      %1752 = vmatprep.subr.mxu0 %v1279
      %1753 = vmatpush1.msra.mxu0 %v1278
      %1754 = vmatprep.subr.mxu0 %v1295
      %1755 = vmatpush1.msra.mxu0 %v1294
      %1756 = vmatprep.subr.mxu0 %v1311
      %1757 = vmatpush1.msra.mxu0 %v1310
      %1758 = vmatprep.subr.mxu0 %v1327
      %1759 = vmatpush1.msra.mxu0 %v1326
      %1760 = vmatprep.subr.mxu0 %v1343
      %1761 = vmatpush1.msra.mxu0 %v1342
      %1762 = vmatprep.subr.mxu0 %v1359
      %1763 = vmatpush1.msra.mxu0 %v1358
      %1764 = vmatprep.subr.mxu0 %v1375
      %1765 = vmatpush1.msra.mxu0 %v1374
      %1766 = vmatprep.subr.mxu0 %v1391
      %1767 = vmatpush1.msra.mxu0 %v1390
      %1768 = vmatprep.subr.mxu0 %v1407
      %1769 = vmatpush1.msra.mxu0 %v1406
      %1770 = vmatprep.subr.mxu0 %v1423
      %1771 = vmatpush1.msra.mxu0 %v1422
      %1772 = vmatprep.subr.mxu0 %v1439
      %1773 = vmatpush1.msra.mxu0 %v1438
      %1774 = vmatprep.subr.mxu0 %v1455
      %1775 = vmatpush1.msra.mxu0 %v1454
      %1776 = vmatprep.subr.mxu0 0.0
      %1777 = vmatpush1.msra.mxu0 0.0
      %1778 = vmatprep.subr.mxu0 0.0
      %1779 = vmatpush1.msra.mxu0 0.0
      %1780 = vmatprep.subr.mxu0 0.0
      %1781 = vmatpush1.msra.mxu0 0.0
      %1782 = vmatprep.subr.mxu0 0.0
      %1783 = vmatpush1.msra.mxu0 0.0
      %1784 = vmatprep.subr.mxu0 0.0
      %1785 = vmatpush1.msra.mxu0 0.0
      %1786 = vmatprep.subr.mxu0 0.0
      %1787 = vmatpush1.msra.mxu0 0.0
      %1788 = vmatprep.subr.mxu0 0.0
      %1789 = vmatpush1.msra.mxu0 0.0
      %1790 = vmatprep.subr.mxu0 0.0
      %1791 = vmatpush1.msra.mxu0 0.0
      %1792 = vmatprep.subr.mxu0 0.0
      %1793 = vmatpush1.msra.mxu0 0.0
      %1794 = vmatprep.subr.mxu0 0.0
      %1795 = vmatpush1.msra.mxu0 0.0
      %1796 = vmatprep.subr.mxu0 0.0
      %1797 = vmatpush1.msra.mxu0 0.0
      %1798 = vmatprep.subr.mxu0 0.0
      %1799 = vmatpush1.msra.mxu0 0.0
      %1800 = vmatprep.subr.mxu0 0.0
      %1801 = vmatpush1.msra.mxu0 0.0
      %1802 = vmatprep.subr.mxu0 0.0
      %1803 = vmatpush1.msra.mxu0 0.0
      %1804 = vmatprep.subr.mxu0 0.0
      %1805 = vmatpush1.msra.mxu0 0.0
      %1806 = vmatprep.subr.mxu0 0.0
      %1807 = vmatpush1.msra.mxu0 0.0
      %1808 = vmatprep.subr.mxu0 0.0
      %1809 = vmatpush1.msra.mxu0 0.0
      %1810 = vmatprep.subr.mxu0 0.0
      %1811 = vmatpush1.msra.mxu0 0.0
      %1812 = vmatprep.subr.mxu0 0.0
      %1813 = vmatpush1.msra.mxu0 0.0
      %1814 = vmatprep.subr.mxu0 0.0
      %1815 = vmatpush1.msra.mxu0 0.0
      %1816 = vmatprep.mubr.f32.mxu0 0.0
      %1817 = vmatmul.mubr.f32.gmra.mrb[0].mxu0 %v1466
      %v1818 = vpop.f32.mrb[0].mxu0
      %v1819 = vadd.f32 0.0, %v1818
      %v1820 = vpop.f32.mrb[0].mxu0
      %v1821 = vadd.f32 0.0, %v1820
      %1822 = vdwg.mxu0
      %1823 = vmatprep.subr.mxu0 %v1281
      %1824 = vmatpush1.msra.mxu0 %v1280
      %1825 = vmatprep.subr.mxu0 %v1297
      %1826 = vmatpush1.msra.mxu0 %v1296
      %1827 = vmatprep.subr.mxu0 %v1313
      %1828 = vmatpush1.msra.mxu0 %v1312
      %1829 = vmatprep.subr.mxu0 %v1329
      %1830 = vmatpush1.msra.mxu0 %v1328
      %1831 = vmatprep.subr.mxu0 %v1345
      %1832 = vmatpush1.msra.mxu0 %v1344
      %1833 = vmatprep.subr.mxu0 %v1361
      %1834 = vmatpush1.msra.mxu0 %v1360
      %1835 = vmatprep.subr.mxu0 %v1377
      %1836 = vmatpush1.msra.mxu0 %v1376
      %1837 = vmatprep.subr.mxu0 %v1393
      %1838 = vmatpush1.msra.mxu0 %v1392
      %1839 = vmatprep.subr.mxu0 %v1409
      %1840 = vmatpush1.msra.mxu0 %v1408
      %1841 = vmatprep.subr.mxu0 %v1425
      %1842 = vmatpush1.msra.mxu0 %v1424
      %1843 = vmatprep.subr.mxu0 %v1441
      %1844 = vmatpush1.msra.mxu0 %v1440
      %1845 = vmatprep.subr.mxu0 %v1457
      %1846 = vmatpush1.msra.mxu0 %v1456
      %1847 = vmatprep.subr.mxu0 0.0
      %1848 = vmatpush1.msra.mxu0 0.0
      %1849 = vmatprep.subr.mxu0 0.0
      %1850 = vmatpush1.msra.mxu0 0.0
      %1851 = vmatprep.subr.mxu0 0.0
      %1852 = vmatpush1.msra.mxu0 0.0
      %1853 = vmatprep.subr.mxu0 0.0
      %1854 = vmatpush1.msra.mxu0 0.0
      %1855 = vmatprep.subr.mxu0 0.0
      %1856 = vmatpush1.msra.mxu0 0.0
      %1857 = vmatprep.subr.mxu0 0.0
      %1858 = vmatpush1.msra.mxu0 0.0
      %1859 = vmatprep.subr.mxu0 0.0
      %1860 = vmatpush1.msra.mxu0 0.0
      %1861 = vmatprep.subr.mxu0 0.0
      %1862 = vmatpush1.msra.mxu0 0.0
      %1863 = vmatprep.subr.mxu0 0.0
      %1864 = vmatpush1.msra.mxu0 0.0
      %1865 = vmatprep.subr.mxu0 0.0
      %1866 = vmatpush1.msra.mxu0 0.0
      %1867 = vmatprep.subr.mxu0 0.0
      %1868 = vmatpush1.msra.mxu0 0.0
      %1869 = vmatprep.subr.mxu0 0.0
      %1870 = vmatpush1.msra.mxu0 0.0
      %1871 = vmatprep.subr.mxu0 0.0
      %1872 = vmatpush1.msra.mxu0 0.0
      %1873 = vmatprep.subr.mxu0 0.0
      %1874 = vmatpush1.msra.mxu0 0.0
      %1875 = vmatprep.subr.mxu0 0.0
      %1876 = vmatpush1.msra.mxu0 0.0
      %1877 = vmatprep.subr.mxu0 0.0
      %1878 = vmatpush1.msra.mxu0 0.0
      %1879 = vmatprep.subr.mxu0 0.0
      %1880 = vmatpush1.msra.mxu0 0.0
      %1881 = vmatprep.subr.mxu0 0.0
      %1882 = vmatpush1.msra.mxu0 0.0
      %1883 = vmatprep.subr.mxu0 0.0
      %1884 = vmatpush1.msra.mxu0 0.0
      %1885 = vmatprep.subr.mxu0 0.0
      %1886 = vmatpush1.msra.mxu0 0.0
      %1887 = vmatprep.mubr.f32.mxu0 0.0
      %1888 = vmatmul.mubr.f32.gmra.mrb[0].mxu0 %v1466
      %v1889 = vpop.f32.mrb[0].mxu0
      %v1890 = vadd.f32 0.0, %v1889
      %v1891 = vpop.f32.mrb[0].mxu0
      %v1892 = vadd.f32 0.0, %v1891
      %1893 = vdwg.mxu0
      %1894 = vmatprep.subr.mxu0 %v1283
      %1895 = vmatpush1.msra.mxu0 %v1282
      %1896 = vmatprep.subr.mxu0 %v1299
      %1897 = vmatpush1.msra.mxu0 %v1298
      %1898 = vmatprep.subr.mxu0 %v1315
      %1899 = vmatpush1.msra.mxu0 %v1314
      %1900 = vmatprep.subr.mxu0 %v1331
      %1901 = vmatpush1.msra.mxu0 %v1330
      %1902 = vmatprep.subr.mxu0 %v1347
      %1903 = vmatpush1.msra.mxu0 %v1346
      %1904 = vmatprep.subr.mxu0 %v1363
      %1905 = vmatpush1.msra.mxu0 %v1362
      %1906 = vmatprep.subr.mxu0 %v1379
      %1907 = vmatpush1.msra.mxu0 %v1378
      %1908 = vmatprep.subr.mxu0 %v1395
      %1909 = vmatpush1.msra.mxu0 %v1394
      %1910 = vmatprep.subr.mxu0 %v1411
      %1911 = vmatpush1.msra.mxu0 %v1410
      %1912 = vmatprep.subr.mxu0 %v1427
      %1913 = vmatpush1.msra.mxu0 %v1426
      %1914 = vmatprep.subr.mxu0 %v1443
      %1915 = vmatpush1.msra.mxu0 %v1442
      %1916 = vmatprep.subr.mxu0 %v1459
      %1917 = vmatpush1.msra.mxu0 %v1458
      %1918 = vmatprep.subr.mxu0 0.0
      %1919 = vmatpush1.msra.mxu0 0.0
      %1920 = vmatprep.subr.mxu0 0.0
      %1921 = vmatpush1.msra.mxu0 0.0
      %1922 = vmatprep.subr.mxu0 0.0
      %1923 = vmatpush1.msra.mxu0 0.0
      %1924 = vmatprep.subr.mxu0 0.0
      %1925 = vmatpush1.msra.mxu0 0.0
      %1926 = vmatprep.subr.mxu0 0.0
      %1927 = vmatpush1.msra.mxu0 0.0
      %1928 = vmatprep.subr.mxu0 0.0
      %1929 = vmatpush1.msra.mxu0 0.0
      %1930 = vmatprep.subr.mxu0 0.0
      %1931 = vmatpush1.msra.mxu0 0.0
      %1932 = vmatprep.subr.mxu0 0.0
      %1933 = vmatpush1.msra.mxu0 0.0
      %1934 = vmatprep.subr.mxu0 0.0
      %1935 = vmatpush1.msra.mxu0 0.0
      %1936 = vmatprep.subr.mxu0 0.0
      %1937 = vmatpush1.msra.mxu0 0.0
      %1938 = vmatprep.subr.mxu0 0.0
      %1939 = vmatpush1.msra.mxu0 0.0
      %1940 = vmatprep.subr.mxu0 0.0
      %1941 = vmatpush1.msra.mxu0 0.0
      %1942 = vmatprep.subr.mxu0 0.0
      %1943 = vmatpush1.msra.mxu0 0.0
      %1944 = vmatprep.subr.mxu0 0.0
      %1945 = vmatpush1.msra.mxu0 0.0
      %1946 = vmatprep.subr.mxu0 0.0
      %1947 = vmatpush1.msra.mxu0 0.0
      %1948 = vmatprep.subr.mxu0 0.0
      %1949 = vmatpush1.msra.mxu0 0.0
      %1950 = vmatprep.subr.mxu0 0.0
      %1951 = vmatpush1.msra.mxu0 0.0
      %1952 = vmatprep.subr.mxu0 0.0
      %1953 = vmatpush1.msra.mxu0 0.0
      %1954 = vmatprep.subr.mxu0 0.0
      %1955 = vmatpush1.msra.mxu0 0.0
      %1956 = vmatprep.subr.mxu0 0.0
      %1957 = vmatpush1.msra.mxu0 0.0
      %1958 = vmatprep.mubr.f32.mxu0 0.0
      %1959 = vmatmul.mubr.f32.gmra.mrb[0].mxu0 %v1466
      %v1960 = vpop.f32.mrb[0].mxu0
      %v1961 = vadd.f32 0.0, %v1960
      %v1962 = vpop.f32.mrb[0].mxu0
      %v1963 = vadd.f32 0.0, %v1962
      %1964 = vdwg.mxu0
      %1965 = vmatprep.subr.mxu0 %v1285
      %1966 = vmatpush1.msra.mxu0 %v1284
      %1967 = vmatprep.subr.mxu0 %v1301
      %1968 = vmatpush1.msra.mxu0 %v1300
      %1969 = vmatprep.subr.mxu0 %v1317
      %1970 = vmatpush1.msra.mxu0 %v1316
      %1971 = vmatprep.subr.mxu0 %v1333
      %1972 = vmatpush1.msra.mxu0 %v1332
      %1973 = vmatprep.subr.mxu0 %v1349
      %1974 = vmatpush1.msra.mxu0 %v1348
      %1975 = vmatprep.subr.mxu0 %v1365
      %1976 = vmatpush1.msra.mxu0 %v1364
      %1977 = vmatprep.subr.mxu0 %v1381
      %1978 = vmatpush1.msra.mxu0 %v1380
      %1979 = vmatprep.subr.mxu0 %v1397
      %1980 = vmatpush1.msra.mxu0 %v1396
      %1981 = vmatprep.subr.mxu0 %v1413
      %1982 = vmatpush1.msra.mxu0 %v1412
      %1983 = vmatprep.subr.mxu0 %v1429
      %1984 = vmatpush1.msra.mxu0 %v1428
      %1985 = vmatprep.subr.mxu0 %v1445
      %1986 = vmatpush1.msra.mxu0 %v1444
      %1987 = vmatprep.subr.mxu0 %v1461
      %1988 = vmatpush1.msra.mxu0 %v1460
      %1989 = vmatprep.subr.mxu0 0.0
      %1990 = vmatpush1.msra.mxu0 0.0
      %1991 = vmatprep.subr.mxu0 0.0
      %1992 = vmatpush1.msra.mxu0 0.0
      %1993 = vmatprep.subr.mxu0 0.0
      %1994 = vmatpush1.msra.mxu0 0.0
      %1995 = vmatprep.subr.mxu0 0.0
      %1996 = vmatpush1.msra.mxu0 0.0
      %1997 = vmatprep.subr.mxu0 0.0
      %1998 = vmatpush1.msra.mxu0 0.0
      %1999 = vmatprep.subr.mxu0 0.0
      %2000 = vmatpush1.msra.mxu0 0.0
      %2001 = vmatprep.subr.mxu0 0.0
      %2002 = vmatpush1.msra.mxu0 0.0
      %2003 = vmatprep.subr.mxu0 0.0
      %2004 = vmatpush1.msra.mxu0 0.0
      %2005 = vmatprep.subr.mxu0 0.0
      %2006 = vmatpush1.msra.mxu0 0.0
      %2007 = vmatprep.subr.mxu0 0.0
      %2008 = vmatpush1.msra.mxu0 0.0
      %2009 = vmatprep.subr.mxu0 0.0
      %2010 = vmatpush1.msra.mxu0 0.0
      %2011 = vmatprep.subr.mxu0 0.0
      %2012 = vmatpush1.msra.mxu0 0.0
      %2013 = vmatprep.subr.mxu0 0.0
      %2014 = vmatpush1.msra.mxu0 0.0
      %2015 = vmatprep.subr.mxu0 0.0
      %2016 = vmatpush1.msra.mxu0 0.0
      %2017 = vmatprep.subr.mxu0 0.0
      %2018 = vmatpush1.msra.mxu0 0.0
      %2019 = vmatprep.subr.mxu0 0.0
      %2020 = vmatpush1.msra.mxu0 0.0
      %2021 = vmatprep.subr.mxu0 0.0
      %2022 = vmatpush1.msra.mxu0 0.0
      %2023 = vmatprep.subr.mxu0 0.0
      %2024 = vmatpush1.msra.mxu0 0.0
      %2025 = vmatprep.subr.mxu0 0.0
      %2026 = vmatpush1.msra.mxu0 0.0
      %2027 = vmatprep.subr.mxu0 0.0
      %2028 = vmatpush1.msra.mxu0 0.0
      %2029 = vmatprep.mubr.f32.mxu0 0.0
      %2030 = vmatmul.mubr.f32.gmra.mrb[0].mxu0 %v1466
      %v2031 = vpop.f32.mrb[0].mxu0
      %v2032 = vadd.f32 0.0, %v2031
      %v2033 = vpop.f32.mrb[0].mxu0
      %v2034 = vadd.f32 0.0, %v2033
      %2035 = vdwg.mxu0
      %v2052 = vcombine.low %v1535, %v1537
      %v2053 = vcombine.low %v1606, %v1608
      %v2054 = vcombine.low %v1677, %v1679
      %v2055 = vcombine.low %v1748, %v1750
      %v2057 = vunpack.c.l.s4 1966171168
      %v2058 = vunpack.c.0.s8 %v2057
      %v2059 = vlaneseq
      %v2060 = vshrl.u32 %v2059, 7
      %v2061 = vsub.s32 %v2058, %v2060
      %v2062 = vrot.slane %v2052, %v2061
      %v2064 = vunpack.c.l.s4 1966171168
      %v2065 = vunpack.c.0.s8 %v2064
      %v2066 = vlaneseq
      %v2067 = vshrl.u32 %v2066, 7
      %v2068 = vsub.s32 %v2065, %v2067
      %v2069 = vrot.slane %v2053, %v2068
      %v2071 = vunpack.c.l.s4 1966171168
      %v2072 = vunpack.c.0.s8 %v2071
      %v2073 = vlaneseq
      %v2074 = vshrl.u32 %v2073, 7
      %v2075 = vsub.s32 %v2072, %v2074
      %v2076 = vrot.slane %v2054, %v2075
      %v2078 = vunpack.c.l.s4 1966171168
      %v2079 = vunpack.c.0.s8 %v2078
      %v2080 = vlaneseq
      %v2081 = vshrl.u32 %v2080, 7
      %v2082 = vsub.s32 %v2079, %v2081
      %v2083 = vrot.slane %v2055, %v2082
      %v2084 = vcombine.low %v2062, %v2069
      %v2085 = vcombine.low %v2076, %v2083
      %v2087 = vunpack.c.l.s4 1966171168
      %v2088 = vunpack.c.0.s8 %v2087
      %v2089 = vlaneseq
      %v2090 = vshrl.u32 %v2089, 7
      %v2091 = vsub.s32 %v2088, %v2090
      %v2092 = vrot.slane %v2084, %v2091
      %v2094 = vunpack.c.l.s4 1966171168
      %v2095 = vunpack.c.0.s8 %v2094
      %v2096 = vlaneseq
      %v2097 = vshrl.u32 %v2096, 7
      %v2098 = vsub.s32 %v2095, %v2097
      %v2099 = vrot.slane %v2085, %v2098
      %v2100 = vcombine.low %v2092, %v2099
      %v2101 = vcombine.low %v1819, %v1821
      %v2102 = vcombine.low %v1890, %v1892
      %v2103 = vcombine.low %v1961, %v1963
      %v2104 = vcombine.low %v2032, %v2034
      %v2106 = vunpack.c.l.s4 1966171168
      %v2107 = vunpack.c.0.s8 %v2106
      %v2108 = vlaneseq
      %v2109 = vshrl.u32 %v2108, 7
      %v2110 = vsub.s32 %v2107, %v2109
      %v2111 = vrot.slane %v2101, %v2110
      %v2113 = vunpack.c.l.s4 1966171168
      %v2114 = vunpack.c.0.s8 %v2113
      %v2115 = vlaneseq
      %v2116 = vshrl.u32 %v2115, 7
      %v2117 = vsub.s32 %v2114, %v2116
      %v2118 = vrot.slane %v2102, %v2117
      %v2120 = vunpack.c.l.s4 1966171168
      %v2121 = vunpack.c.0.s8 %v2120
      %v2122 = vlaneseq
      %v2123 = vshrl.u32 %v2122, 7
      %v2124 = vsub.s32 %v2121, %v2123
      %v2125 = vrot.slane %v2103, %v2124
      %v2127 = vunpack.c.l.s4 1966171168
      %v2128 = vunpack.c.0.s8 %v2127
      %v2129 = vlaneseq
      %v2130 = vshrl.u32 %v2129, 7
      %v2131 = vsub.s32 %v2128, %v2130
      %v2132 = vrot.slane %v2104, %v2131
      %v2133 = vcombine.low %v2111, %v2118
      %v2134 = vcombine.low %v2125, %v2132
      %v2136 = vunpack.c.l.s4 1966171168
      %v2137 = vunpack.c.0.s8 %v2136
      %v2138 = vlaneseq
      %v2139 = vshrl.u32 %v2138, 7
      %v2140 = vsub.s32 %v2137, %v2139
      %v2141 = vrot.slane %v2133, %v2140
      %v2143 = vunpack.c.l.s4 1966171168
      %v2144 = vunpack.c.0.s8 %v2143
      %v2145 = vlaneseq
      %v2146 = vshrl.u32 %v2145, 7
      %v2147 = vsub.s32 %v2144, %v2146
      %v2148 = vrot.slane %v2134, %v2147
      %v2149 = vcombine.low %v2141, %v2148
      %v2152 = vadd.f32 %v1462, %v2100
      %v2153 = vadd.f32 %v1463, %v2149
      %2154 = vst [vmem:[#allocation2] sm:$0xff] %v2152
      %2155 = vst [vmem:[#allocation2 + $0x8] sm:$0xff] %v2153
      // Predicated region
      $region45: #{cnn3d_forward.5} parent=39 // pred_check
        %p2156 = pneg %p250
      $region46: #{cnn3d_forward.5} parent=39 // pred_check_branch
        %2158 = sbr.rel (%p2156) target = $region48
      $region47: #{cnn3d_forward.5} parent=39 // pred_region
        %v2159 = vld [vmem:[#allocation2] sm:$0xff]
        %v2160 = vld [vmem:[#allocation2 + $0x8] sm:$0xff]
        %v2161 = vmul.f32 %v2159, 0.010416667
        %v2162 = vmul.f32 %v2160, 0.010416667
        %v2165 = vlaneseq
        %v2166 = vshrl.u32 %v2165, 7
        %v2167 = vsub.s32 0, %v2166
        %v2168 = vrot.slane %v2161, %v2167
        %v2169 = vlaneseq
        %v2170 = vshrl.u32 %v2169, 7
        %v2171 = vsub.s32 1, %v2170
        %v2172 = vrot.slane %v2161, %v2171
        %v2173 = vlaneseq
        %v2174 = vshrl.u32 %v2173, 7
        %v2175 = vsub.s32 2, %v2174
        %v2176 = vrot.slane %v2161, %v2175
        %v2177 = vlaneseq
        %v2178 = vshrl.u32 %v2177, 7
        %v2179 = vsub.s32 3, %v2178
        %v2180 = vrot.slane %v2161, %v2179
        %v2181 = vlaneseq
        %v2182 = vshrl.u32 %v2181, 7
        %v2183 = vsub.s32 4, %v2182
        %v2184 = vrot.slane %v2161, %v2183
        %v2185 = vlaneseq
        %v2186 = vshrl.u32 %v2185, 7
        %v2187 = vsub.s32 5, %v2186
        %v2188 = vrot.slane %v2161, %v2187
        %v2189 = vlaneseq
        %v2190 = vshrl.u32 %v2189, 7
        %v2191 = vsub.s32 6, %v2190
        %v2192 = vrot.slane %v2161, %v2191
        %v2193 = vlaneseq
        %v2194 = vshrl.u32 %v2193, 7
        %v2195 = vsub.s32 7, %v2194
        %v2196 = vrot.slane %v2161, %v2195
        %v2197 = vlaneseq
        %v2198 = vshrl.u32 %v2197, 7
        %v2199 = vsub.s32 0, %v2198
        %v2200 = vrot.slane %v2162, %v2199
        %v2201 = vlaneseq
        %v2202 = vshrl.u32 %v2201, 7
        %v2203 = vsub.s32 1, %v2202
        %v2204 = vrot.slane %v2162, %v2203
        %v2205 = vlaneseq
        %v2206 = vshrl.u32 %v2205, 7
        %v2207 = vsub.s32 2, %v2206
        %v2208 = vrot.slane %v2162, %v2207
        %v2209 = vlaneseq
        %v2210 = vshrl.u32 %v2209, 7
        %v2211 = vsub.s32 3, %v2210
        %v2212 = vrot.slane %v2162, %v2211
        %v2213 = vlaneseq
        %v2214 = vshrl.u32 %v2213, 7
        %v2215 = vsub.s32 4, %v2214
        %v2216 = vrot.slane %v2162, %v2215
        %v2217 = vlaneseq
        %v2218 = vshrl.u32 %v2217, 7
        %v2219 = vsub.s32 5, %v2218
        %v2220 = vrot.slane %v2162, %v2219
        %v2221 = vlaneseq
        %v2222 = vshrl.u32 %v2221, 7
        %v2223 = vsub.s32 6, %v2222
        %v2224 = vrot.slane %v2162, %v2223
        %v2225 = vlaneseq
        %v2226 = vshrl.u32 %v2225, 7
        %v2227 = vsub.s32 7, %v2226
        %v2228 = vrot.slane %v2162, %v2227
        %v2245 = vpack.c.bf16 %v2168, %v2168
        %v2246 = vpack.c.bf16 %v2172, %v2172
        %v2247 = vpack.c.bf16 %v2176, %v2176
        %v2248 = vpack.c.bf16 %v2180, %v2180
        %v2249 = vpack.c.bf16 %v2184, %v2184
        %v2250 = vpack.c.bf16 %v2188, %v2188
        %v2251 = vpack.c.bf16 %v2192, %v2192
        %v2252 = vpack.c.bf16 %v2196, %v2196
        %v2253 = vpack.c.bf16 %v2200, %v2200
        %v2254 = vpack.c.bf16 %v2204, %v2204
        %v2255 = vpack.c.bf16 %v2208, %v2208
        %v2256 = vpack.c.bf16 %v2212, %v2212
        %v2257 = vpack.c.bf16 %v2216, %v2216
        %v2258 = vpack.c.bf16 %v2220, %v2220
        %v2259 = vpack.c.bf16 %v2224, %v2224
        %v2260 = vpack.c.bf16 %v2228, %v2228
        %v2261 = vld [vmem:[%s3] sm:$0xf]
        %v2262 = vld [vmem:[%s3 + $0x4] sm:$0xf]
        %v2263 = vld [vmem:[%s3 + $0x8] sm:$0xf]
        %v2264 = vld [vmem:[%s3 + $0xc] sm:$0xf]
        %v2265 = vld [vmem:[%s3 + $0x10] sm:$0xf]
        %v2266 = vld [vmem:[%s3 + $0x14] sm:$0xf]
        %v2267 = vld [vmem:[%s3 + $0x18] sm:$0xf]
        %v2268 = vld [vmem:[%s3 + $0x1c] sm:$0xf]
        %v2269 = vld [vmem:[%s3 + $0x20] sm:$0xf]
        %v2270 = vld [vmem:[%s3 + $0x24] sm:$0xf]
        %v2271 = vld [vmem:[%s3 + $0x28] sm:$0xf]
        %v2272 = vld [vmem:[%s3 + $0x2c] sm:$0xf]
        %v2273 = vld [vmem:[%s3 + $0x30] sm:$0xf]
        %v2274 = vld [vmem:[%s3 + $0x34] sm:$0xf]
        %v2275 = vld [vmem:[%s3 + $0x38] sm:$0xf]
        %v2276 = vld [vmem:[%s3 + $0x3c] sm:$0xf]
        %v2277 = vld [vmem:[%s3 + $0x40] sm:$0xf]
        %v2278 = vld [vmem:[%s3 + $0x44] sm:$0xf]
        %v2279 = vld [vmem:[%s3 + $0x48] sm:$0xf]
        %v2280 = vld [vmem:[%s3 + $0x4c] sm:$0xf]
        %v2281 = vld [vmem:[%s3 + $0x50] sm:$0xf]
        %v2282 = vld [vmem:[%s3 + $0x54] sm:$0xf]
        %v2283 = vld [vmem:[%s3 + $0x58] sm:$0xf]
        %v2284 = vld [vmem:[%s3 + $0x5c] sm:$0xf]
        %v2285 = vld [vmem:[%s3 + $0x60] sm:$0xf]
        %v2286 = vld [vmem:[%s3 + $0x64] sm:$0xf]
        %v2287 = vld [vmem:[%s3 + $0x68] sm:$0xf]
        %v2288 = vld [vmem:[%s3 + $0x6c] sm:$0xf]
        %v2289 = vld [vmem:[%s3 + $0x70] sm:$0xf]
        %v2290 = vld [vmem:[%s3 + $0x74] sm:$0xf]
        %v2291 = vld [vmem:[%s3 + $0x78] sm:$0xf]
        %v2292 = vld [vmem:[%s3 + $0x7c] sm:$0xf]
        %v2293 = vld [vmem:[%s3 + $0x80] sm:$0xf]
        %v2294 = vld [vmem:[%s3 + $0x84] sm:$0xf]
        %v2295 = vld [vmem:[%s3 + $0x88] sm:$0xf]
        %v2296 = vld [vmem:[%s3 + $0x8c] sm:$0xf]
        %v2297 = vld [vmem:[%s3 + $0x90] sm:$0xf]
        %v2298 = vld [vmem:[%s3 + $0x94] sm:$0xf]
        %v2299 = vld [vmem:[%s3 + $0x98] sm:$0xf]
        %v2300 = vld [vmem:[%s3 + $0x9c] sm:$0xf]
        %v2301 = vld [vmem:[%s3 + $0xa0] sm:$0xf]
        %v2302 = vld [vmem:[%s3 + $0xa4] sm:$0xf]
        %v2303 = vld [vmem:[%s3 + $0xa8] sm:$0xf]
        %v2304 = vld [vmem:[%s3 + $0xac] sm:$0xf]
        %v2305 = vld [vmem:[%s3 + $0xb0] sm:$0xf]
        %v2306 = vld [vmem:[%s3 + $0xb4] sm:$0xf]
        %v2307 = vld [vmem:[%s3 + $0xb8] sm:$0xf]
        %v2308 = vld [vmem:[%s3 + $0xbc] sm:$0xf]
        %v2309 = vld [vmem:[%s3 + $0xc0] sm:$0xf]
        %v2310 = vld [vmem:[%s3 + $0xc4] sm:$0xf]
        %v2311 = vld [vmem:[%s3 + $0xc8] sm:$0xf]
        %v2312 = vld [vmem:[%s3 + $0xcc] sm:$0xf]
        %v2313 = vld [vmem:[%s3 + $0xd0] sm:$0xf]
        %v2314 = vld [vmem:[%s3 + $0xd4] sm:$0xf]
        %v2315 = vld [vmem:[%s3 + $0xd8] sm:$0xf]
        %v2316 = vld [vmem:[%s3 + $0xdc] sm:$0xf]
        %v2317 = vld [vmem:[%s3 + $0xe0] sm:$0xf]
        %v2318 = vld [vmem:[%s3 + $0xe4] sm:$0xf]
        %v2319 = vld [vmem:[%s3 + $0xe8] sm:$0xf]
        %v2320 = vld [vmem:[%s3 + $0xec] sm:$0xf]
        %v2321 = vld [vmem:[%s3 + $0xf0] sm:$0xf]
        %v2322 = vld [vmem:[%s3 + $0xf4] sm:$0xf]
        %v2323 = vld [vmem:[%s3 + $0xf8] sm:$0xf]
        %v2324 = vld [vmem:[%s3 + $0xfc] sm:$0xf]
        %v2325 = vld [vmem:[%s3 + $0x100] sm:$0xf]
        %v2326 = vld [vmem:[%s3 + $0x104] sm:$0xf]
        %v2327 = vld [vmem:[%s3 + $0x108] sm:$0xf]
        %v2328 = vld [vmem:[%s3 + $0x10c] sm:$0xf]
        %v2329 = vld [vmem:[%s3 + $0x110] sm:$0xf]
        %v2330 = vld [vmem:[%s3 + $0x114] sm:$0xf]
        %v2331 = vld [vmem:[%s3 + $0x118] sm:$0xf]
        %v2332 = vld [vmem:[%s3 + $0x11c] sm:$0xf]
        %v2333 = vld [vmem:[%s3 + $0x120] sm:$0xf]
        %v2334 = vld [vmem:[%s3 + $0x124] sm:$0xf]
        %v2335 = vld [vmem:[%s3 + $0x128] sm:$0xf]
        %v2336 = vld [vmem:[%s3 + $0x12c] sm:$0xf]
        %v2337 = vld [vmem:[%s3 + $0x130] sm:$0xf]
        %v2338 = vld [vmem:[%s3 + $0x134] sm:$0xf]
        %v2339 = vld [vmem:[%s3 + $0x138] sm:$0xf]
        %v2340 = vld [vmem:[%s3 + $0x13c] sm:$0xf]
        %v2341 = vld [vmem:[%s3 + $0x140] sm:$0xf]
        %v2342 = vld [vmem:[%s3 + $0x144] sm:$0xf]
        %v2343 = vld [vmem:[%s3 + $0x148] sm:$0xf]
        %v2344 = vld [vmem:[%s3 + $0x14c] sm:$0xf]
        %v2345 = vld [vmem:[%s3 + $0x150] sm:$0xf]
        %v2346 = vld [vmem:[%s3 + $0x154] sm:$0xf]
        %v2347 = vld [vmem:[%s3 + $0x158] sm:$0xf]
        %v2348 = vld [vmem:[%s3 + $0x15c] sm:$0xf]
        %v2349 = vld [vmem:[%s3 + $0x160] sm:$0xf]
        %v2350 = vld [vmem:[%s3 + $0x164] sm:$0xf]
        %v2351 = vld [vmem:[%s3 + $0x168] sm:$0xf]
        %v2352 = vld [vmem:[%s3 + $0x16c] sm:$0xf]
        %v2353 = vld [vmem:[%s3 + $0x170] sm:$0xf]
        %v2354 = vld [vmem:[%s3 + $0x174] sm:$0xf]
        %v2355 = vld [vmem:[%s3 + $0x178] sm:$0xf]
        %v2356 = vld [vmem:[%s3 + $0x17c] sm:$0xf]
        %v2357 = vld [vmem:[%s3 + $0x180] sm:$0xf]
        %v2358 = vld [vmem:[%s3 + $0x184] sm:$0xf]
        %v2359 = vld [vmem:[%s3 + $0x188] sm:$0xf]
        %v2360 = vld [vmem:[%s3 + $0x18c] sm:$0xf]
        %v2361 = vld [vmem:[%s3 + $0x190] sm:$0xf]
        %v2362 = vld [vmem:[%s3 + $0x194] sm:$0xf]
        %v2363 = vld [vmem:[%s3 + $0x198] sm:$0xf]
        %v2364 = vld [vmem:[%s3 + $0x19c] sm:$0xf]
        %v2365 = vld [vmem:[%s3 + $0x1a0] sm:$0xf]
        %v2366 = vld [vmem:[%s3 + $0x1a4] sm:$0xf]
        %v2367 = vld [vmem:[%s3 + $0x1a8] sm:$0xf]
        %v2368 = vld [vmem:[%s3 + $0x1ac] sm:$0xf]
        %v2369 = vld [vmem:[%s3 + $0x1b0] sm:$0xf]
        %v2370 = vld [vmem:[%s3 + $0x1b4] sm:$0xf]
        %v2371 = vld [vmem:[%s3 + $0x1b8] sm:$0xf]
        %v2372 = vld [vmem:[%s3 + $0x1bc] sm:$0xf]
        %v2373 = vld [vmem:[%s3 + $0x1c0] sm:$0xf]
        %v2374 = vld [vmem:[%s3 + $0x1c4] sm:$0xf]
        %v2375 = vld [vmem:[%s3 + $0x1c8] sm:$0xf]
        %v2376 = vld [vmem:[%s3 + $0x1cc] sm:$0xf]
        %v2377 = vld [vmem:[%s3 + $0x1d0] sm:$0xf]
        %v2378 = vld [vmem:[%s3 + $0x1d4] sm:$0xf]
        %v2379 = vld [vmem:[%s3 + $0x1d8] sm:$0xf]
        %v2380 = vld [vmem:[%s3 + $0x1dc] sm:$0xf]
        %v2381 = vld [vmem:[%s3 + $0x1e0] sm:$0xf]
        %v2382 = vld [vmem:[%s3 + $0x1e4] sm:$0xf]
        %v2383 = vld [vmem:[%s3 + $0x1e8] sm:$0xf]
        %v2384 = vld [vmem:[%s3 + $0x1ec] sm:$0xf]
        %v2385 = vld [vmem:[%s3 + $0x1f0] sm:$0xf]
        %v2386 = vld [vmem:[%s3 + $0x1f4] sm:$0xf]
        %v2387 = vld [vmem:[%s3 + $0x1f8] sm:$0xf]
        %v2388 = vld [vmem:[%s3 + $0x1fc] sm:$0xf]
        %v2389 = vld [vmem:[%s3 + $0x200] sm:$0xf]
        %v2390 = vld [vmem:[%s3 + $0x204] sm:$0xf]
        %v2391 = vld [vmem:[%s3 + $0x208] sm:$0xf]
        %v2392 = vld [vmem:[%s3 + $0x20c] sm:$0xf]
        %v2393 = vld [vmem:[%s3 + $0x210] sm:$0xf]
        %v2394 = vld [vmem:[%s3 + $0x214] sm:$0xf]
        %v2395 = vld [vmem:[%s3 + $0x218] sm:$0xf]
        %v2396 = vld [vmem:[%s3 + $0x21c] sm:$0xf]
        %v2397 = vld [vmem:[%s3 + $0x220] sm:$0xf]
        %v2398 = vld [vmem:[%s3 + $0x224] sm:$0xf]
        %v2399 = vld [vmem:[%s3 + $0x228] sm:$0xf]
        %v2400 = vld [vmem:[%s3 + $0x22c] sm:$0xf]
        %v2401 = vld [vmem:[%s3 + $0x230] sm:$0xf]
        %v2402 = vld [vmem:[%s3 + $0x234] sm:$0xf]
        %v2403 = vld [vmem:[%s3 + $0x238] sm:$0xf]
        %v2404 = vld [vmem:[%s3 + $0x23c] sm:$0xf]
        %v2405 = vld [vmem:[%s3 + $0x240] sm:$0xf]
        %v2406 = vld [vmem:[%s3 + $0x244] sm:$0xf]
        %v2407 = vld [vmem:[%s3 + $0x248] sm:$0xf]
        %v2408 = vld [vmem:[%s3 + $0x24c] sm:$0xf]
        %v2409 = vld [vmem:[%s3 + $0x250] sm:$0xf]
        %v2410 = vld [vmem:[%s3 + $0x254] sm:$0xf]
        %v2411 = vld [vmem:[%s3 + $0x258] sm:$0xf]
        %v2412 = vld [vmem:[%s3 + $0x25c] sm:$0xf]
        %v2413 = vld [vmem:[%s3 + $0x260] sm:$0xf]
        %v2414 = vld [vmem:[%s3 + $0x264] sm:$0xf]
        %v2415 = vld [vmem:[%s3 + $0x268] sm:$0xf]
        %v2416 = vld [vmem:[%s3 + $0x26c] sm:$0xf]
        %v2417 = vld [vmem:[%s3 + $0x270] sm:$0xf]
        %v2418 = vld [vmem:[%s3 + $0x274] sm:$0xf]
        %v2419 = vld [vmem:[%s3 + $0x278] sm:$0xf]
        %v2420 = vld [vmem:[%s3 + $0x27c] sm:$0xf]
        %v2421 = vld [vmem:[%s3 + $0x280] sm:$0xf]
        %v2422 = vld [vmem:[%s3 + $0x284] sm:$0xf]
        %v2423 = vld [vmem:[%s3 + $0x288] sm:$0xf]
        %v2424 = vld [vmem:[%s3 + $0x28c] sm:$0xf]
        %v2425 = vld [vmem:[%s3 + $0x290] sm:$0xf]
        %v2426 = vld [vmem:[%s3 + $0x294] sm:$0xf]
        %v2427 = vld [vmem:[%s3 + $0x298] sm:$0xf]
        %v2428 = vld [vmem:[%s3 + $0x29c] sm:$0xf]
        %v2429 = vld [vmem:[%s3 + $0x2a0] sm:$0xf]
        %v2430 = vld [vmem:[%s3 + $0x2a4] sm:$0xf]
        %v2431 = vld [vmem:[%s3 + $0x2a8] sm:$0xf]
        %v2432 = vld [vmem:[%s3 + $0x2ac] sm:$0xf]
        %v2433 = vld [vmem:[%s3 + $0x2b0] sm:$0xf]
        %v2434 = vld [vmem:[%s3 + $0x2b4] sm:$0xf]
        %v2435 = vld [vmem:[%s3 + $0x2b8] sm:$0xf]
        %v2436 = vld [vmem:[%s3 + $0x2bc] sm:$0xf]
        %v2437 = vld [vmem:[%s3 + $0x2c0] sm:$0xf]
        %v2438 = vld [vmem:[%s3 + $0x2c4] sm:$0xf]
        %v2439 = vld [vmem:[%s3 + $0x2c8] sm:$0xf]
        %v2440 = vld [vmem:[%s3 + $0x2cc] sm:$0xf]
        %v2441 = vld [vmem:[%s3 + $0x2d0] sm:$0xf]
        %v2442 = vld [vmem:[%s3 + $0x2d4] sm:$0xf]
        %v2443 = vld [vmem:[%s3 + $0x2d8] sm:$0xf]
        %v2444 = vld [vmem:[%s3 + $0x2dc] sm:$0xf]
        %v2445 = vld [vmem:[%s3 + $0x2e0] sm:$0xf]
        %v2446 = vld [vmem:[%s3 + $0x2e4] sm:$0xf]
        %v2447 = vld [vmem:[%s3 + $0x2e8] sm:$0xf]
        %v2448 = vld [vmem:[%s3 + $0x2ec] sm:$0xf]
        %v2449 = vld [vmem:[%s3 + $0x2f0] sm:$0xf]
        %v2450 = vld [vmem:[%s3 + $0x2f4] sm:$0xf]
        %v2451 = vld [vmem:[%s3 + $0x2f8] sm:$0xf]
        %v2452 = vld [vmem:[%s3 + $0x2fc] sm:$0xf]
        %v2453 = vld [vmem:[%s3 + $0x300] sm:$0xf]
        %v2454 = vld [vmem:[%s3 + $0x304] sm:$0xf]
        %v2455 = vld [vmem:[%s3 + $0x308] sm:$0xf]
        %v2456 = vld [vmem:[%s3 + $0x30c] sm:$0xf]
        %v2457 = vld [vmem:[%s3 + $0x310] sm:$0xf]
        %v2458 = vld [vmem:[%s3 + $0x314] sm:$0xf]
        %v2459 = vld [vmem:[%s3 + $0x318] sm:$0xf]
        %v2460 = vld [vmem:[%s3 + $0x31c] sm:$0xf]
        %v2461 = vld [vmem:[%s3 + $0x320] sm:$0xf]
        %v2462 = vld [vmem:[%s3 + $0x324] sm:$0xf]
        %v2463 = vld [vmem:[%s3 + $0x328] sm:$0xf]
        %v2464 = vld [vmem:[%s3 + $0x32c] sm:$0xf]
        %v2465 = vld [vmem:[%s3 + $0x330] sm:$0xf]
        %v2466 = vld [vmem:[%s3 + $0x334] sm:$0xf]
        %v2467 = vld [vmem:[%s3 + $0x338] sm:$0xf]
        %v2468 = vld [vmem:[%s3 + $0x33c] sm:$0xf]
        %v2469 = vld [vmem:[%s3 + $0x340] sm:$0xf]
        %v2470 = vld [vmem:[%s3 + $0x344] sm:$0xf]
        %v2471 = vld [vmem:[%s3 + $0x348] sm:$0xf]
        %v2472 = vld [vmem:[%s3 + $0x34c] sm:$0xf]
        %v2473 = vld [vmem:[%s3 + $0x350] sm:$0xf]
        %v2474 = vld [vmem:[%s3 + $0x354] sm:$0xf]
        %v2475 = vld [vmem:[%s3 + $0x358] sm:$0xf]
        %v2476 = vld [vmem:[%s3 + $0x35c] sm:$0xf]
        %v2477 = vld [vmem:[%s3 + $0x360] sm:$0xf]
        %v2478 = vld [vmem:[%s3 + $0x364] sm:$0xf]
        %v2479 = vld [vmem:[%s3 + $0x368] sm:$0xf]
        %v2480 = vld [vmem:[%s3 + $0x36c] sm:$0xf]
        %v2481 = vld [vmem:[%s3 + $0x370] sm:$0xf]
        %v2482 = vld [vmem:[%s3 + $0x374] sm:$0xf]
        %v2483 = vld [vmem:[%s3 + $0x378] sm:$0xf]
        %v2484 = vld [vmem:[%s3 + $0x37c] sm:$0xf]
        %v2485 = vld [vmem:[%s3 + $0x380] sm:$0xf]
        %v2486 = vld [vmem:[%s3 + $0x384] sm:$0xf]
        %v2487 = vld [vmem:[%s3 + $0x388] sm:$0xf]
        %v2488 = vld [vmem:[%s3 + $0x38c] sm:$0xf]
        %v2489 = vld [vmem:[%s3 + $0x390] sm:$0xf]
        %v2490 = vld [vmem:[%s3 + $0x394] sm:$0xf]
        %v2491 = vld [vmem:[%s3 + $0x398] sm:$0xf]
        %v2492 = vld [vmem:[%s3 + $0x39c] sm:$0xf]
        %v2493 = vld [vmem:[%s3 + $0x3a0] sm:$0xf]
        %v2494 = vld [vmem:[%s3 + $0x3a4] sm:$0xf]
        %v2495 = vld [vmem:[%s3 + $0x3a8] sm:$0xf]
        %v2496 = vld [vmem:[%s3 + $0x3ac] sm:$0xf]
        %v2497 = vld [vmem:[%s3 + $0x3b0] sm:$0xf]
        %v2498 = vld [vmem:[%s3 + $0x3b4] sm:$0xf]
        %v2499 = vld [vmem:[%s3 + $0x3b8] sm:$0xf]
        %v2500 = vld [vmem:[%s3 + $0x3bc] sm:$0xf]
        %v2501 = vld [vmem:[%s3 + $0x3c0] sm:$0xf]
        %v2502 = vld [vmem:[%s3 + $0x3c4] sm:$0xf]
        %v2503 = vld [vmem:[%s3 + $0x3c8] sm:$0xf]
        %v2504 = vld [vmem:[%s3 + $0x3cc] sm:$0xf]
        %v2505 = vld [vmem:[%s3 + $0x3d0] sm:$0xf]
        %v2506 = vld [vmem:[%s3 + $0x3d4] sm:$0xf]
        %v2507 = vld [vmem:[%s3 + $0x3d8] sm:$0xf]
        %v2508 = vld [vmem:[%s3 + $0x3dc] sm:$0xf]
        %v2509 = vld [vmem:[%s3 + $0x3e0] sm:$0xf]
        %v2510 = vld [vmem:[%s3 + $0x3e4] sm:$0xf]
        %v2511 = vld [vmem:[%s3 + $0x3e8] sm:$0xf]
        %v2512 = vld [vmem:[%s3 + $0x3ec] sm:$0xf]
        %v2513 = vld [vmem:[%s3 + $0x3f0] sm:$0xf]
        %v2514 = vld [vmem:[%s3 + $0x3f4] sm:$0xf]
        %v2515 = vld [vmem:[%s3 + $0x3f8] sm:$0xf]
        %v2516 = vld [vmem:[%s3 + $0x3fc] sm:$0xf]
        %v2517 = vld [vmem:[%s4] sm:$0x1]
        %v2774 = vunpack.c.l.b16 %v2261
        %v2775 = vunpack.c.l.b16 %v2262
        %v2776 = vunpack.c.l.b16 %v2263
        %v2777 = vunpack.c.l.b16 %v2264
        %v2778 = vunpack.c.l.b16 %v2265
        %v2779 = vunpack.c.l.b16 %v2266
        %v2780 = vunpack.c.l.b16 %v2267
        %v2781 = vunpack.c.l.b16 %v2268
        %v2782 = vunpack.c.l.b16 %v2269
        %v2783 = vunpack.c.l.b16 %v2270
        %v2784 = vunpack.c.l.b16 %v2271
        %v2785 = vunpack.c.l.b16 %v2272
        %v2786 = vunpack.c.l.b16 %v2273
        %v2787 = vunpack.c.l.b16 %v2274
        %v2788 = vunpack.c.l.b16 %v2275
        %v2789 = vunpack.c.l.b16 %v2276
        %v2790 = vunpack.c.l.b16 %v2277
        %v2791 = vunpack.c.l.b16 %v2278
        %v2792 = vunpack.c.l.b16 %v2279
        %v2793 = vunpack.c.l.b16 %v2280
        %v2794 = vunpack.c.l.b16 %v2281
        %v2795 = vunpack.c.l.b16 %v2282
        %v2796 = vunpack.c.l.b16 %v2283
        %v2797 = vunpack.c.l.b16 %v2284
        %v2798 = vunpack.c.l.b16 %v2285
        %v2799 = vunpack.c.l.b16 %v2286
        %v2800 = vunpack.c.l.b16 %v2287
        %v2801 = vunpack.c.l.b16 %v2288
        %v2802 = vunpack.c.l.b16 %v2289
        %v2803 = vunpack.c.l.b16 %v2290
        %v2804 = vunpack.c.l.b16 %v2291
        %v2805 = vunpack.c.l.b16 %v2292
        %v2806 = vunpack.c.l.b16 %v2293
        %v2807 = vunpack.c.l.b16 %v2294
        %v2808 = vunpack.c.l.b16 %v2295
        %v2809 = vunpack.c.l.b16 %v2296
        %v2810 = vunpack.c.l.b16 %v2297
        %v2811 = vunpack.c.l.b16 %v2298
        %v2812 = vunpack.c.l.b16 %v2299
        %v2813 = vunpack.c.l.b16 %v2300
        %v2814 = vunpack.c.l.b16 %v2301
        %v2815 = vunpack.c.l.b16 %v2302
        %v2816 = vunpack.c.l.b16 %v2303
        %v2817 = vunpack.c.l.b16 %v2304
        %v2818 = vunpack.c.l.b16 %v2305
        %v2819 = vunpack.c.l.b16 %v2306
        %v2820 = vunpack.c.l.b16 %v2307
        %v2821 = vunpack.c.l.b16 %v2308
        %v2822 = vunpack.c.l.b16 %v2309
        %v2823 = vunpack.c.l.b16 %v2310
        %v2824 = vunpack.c.l.b16 %v2311
        %v2825 = vunpack.c.l.b16 %v2312
        %v2826 = vunpack.c.l.b16 %v2313
        %v2827 = vunpack.c.l.b16 %v2314
        %v2828 = vunpack.c.l.b16 %v2315
        %v2829 = vunpack.c.l.b16 %v2316
        %v2830 = vunpack.c.l.b16 %v2317
        %v2831 = vunpack.c.l.b16 %v2318
        %v2832 = vunpack.c.l.b16 %v2319
        %v2833 = vunpack.c.l.b16 %v2320
        %v2834 = vunpack.c.l.b16 %v2321
        %v2835 = vunpack.c.l.b16 %v2322
        %v2836 = vunpack.c.l.b16 %v2323
        %v2837 = vunpack.c.l.b16 %v2324
        %v2838 = vunpack.c.l.b16 %v2325
        %v2839 = vunpack.c.l.b16 %v2326
        %v2840 = vunpack.c.l.b16 %v2327
        %v2841 = vunpack.c.l.b16 %v2328
        %v2842 = vunpack.c.l.b16 %v2329
        %v2843 = vunpack.c.l.b16 %v2330
        %v2844 = vunpack.c.l.b16 %v2331
        %v2845 = vunpack.c.l.b16 %v2332
        %v2846 = vunpack.c.l.b16 %v2333
        %v2847 = vunpack.c.l.b16 %v2334
        %v2848 = vunpack.c.l.b16 %v2335
        %v2849 = vunpack.c.l.b16 %v2336
        %v2850 = vunpack.c.l.b16 %v2337
        %v2851 = vunpack.c.l.b16 %v2338
        %v2852 = vunpack.c.l.b16 %v2339
        %v2853 = vunpack.c.l.b16 %v2340
        %v2854 = vunpack.c.l.b16 %v2341
        %v2855 = vunpack.c.l.b16 %v2342
        %v2856 = vunpack.c.l.b16 %v2343
        %v2857 = vunpack.c.l.b16 %v2344
        %v2858 = vunpack.c.l.b16 %v2345
        %v2859 = vunpack.c.l.b16 %v2346
        %v2860 = vunpack.c.l.b16 %v2347
        %v2861 = vunpack.c.l.b16 %v2348
        %v2862 = vunpack.c.l.b16 %v2349
        %v2863 = vunpack.c.l.b16 %v2350
        %v2864 = vunpack.c.l.b16 %v2351
        %v2865 = vunpack.c.l.b16 %v2352
        %v2866 = vunpack.c.l.b16 %v2353
        %v2867 = vunpack.c.l.b16 %v2354
        %v2868 = vunpack.c.l.b16 %v2355
        %v2869 = vunpack.c.l.b16 %v2356
        %v2870 = vunpack.c.l.b16 %v2357
        %v2871 = vunpack.c.l.b16 %v2358
        %v2872 = vunpack.c.l.b16 %v2359
        %v2873 = vunpack.c.l.b16 %v2360
        %v2874 = vunpack.c.l.b16 %v2361
        %v2875 = vunpack.c.l.b16 %v2362
        %v2876 = vunpack.c.l.b16 %v2363
        %v2877 = vunpack.c.l.b16 %v2364
        %v2878 = vunpack.c.l.b16 %v2365
        %v2879 = vunpack.c.l.b16 %v2366
        %v2880 = vunpack.c.l.b16 %v2367
        %v2881 = vunpack.c.l.b16 %v2368
        %v2882 = vunpack.c.l.b16 %v2369
        %v2883 = vunpack.c.l.b16 %v2370
        %v2884 = vunpack.c.l.b16 %v2371
        %v2885 = vunpack.c.l.b16 %v2372
        %v2886 = vunpack.c.l.b16 %v2373
        %v2887 = vunpack.c.l.b16 %v2374
        %v2888 = vunpack.c.l.b16 %v2375
        %v2889 = vunpack.c.l.b16 %v2376
        %v2890 = vunpack.c.l.b16 %v2377
        %v2891 = vunpack.c.l.b16 %v2378
        %v2892 = vunpack.c.l.b16 %v2379
        %v2893 = vunpack.c.l.b16 %v2380
        %v2894 = vunpack.c.l.b16 %v2381
        %v2895 = vunpack.c.l.b16 %v2382
        %v2896 = vunpack.c.l.b16 %v2383
        %v2897 = vunpack.c.l.b16 %v2384
        %v2898 = vunpack.c.l.b16 %v2385
        %v2899 = vunpack.c.l.b16 %v2386
        %v2900 = vunpack.c.l.b16 %v2387
        %v2901 = vunpack.c.l.b16 %v2388
        %v2902 = vunpack.c.l.b16 %v2389
        %v2903 = vunpack.c.l.b16 %v2390
        %v2904 = vunpack.c.l.b16 %v2391
        %v2905 = vunpack.c.l.b16 %v2392
        %v2906 = vunpack.c.l.b16 %v2393
        %v2907 = vunpack.c.l.b16 %v2394
        %v2908 = vunpack.c.l.b16 %v2395
        %v2909 = vunpack.c.l.b16 %v2396
        %v2910 = vunpack.c.l.b16 %v2397
        %v2911 = vunpack.c.l.b16 %v2398
        %v2912 = vunpack.c.l.b16 %v2399
        %v2913 = vunpack.c.l.b16 %v2400
        %v2914 = vunpack.c.l.b16 %v2401
        %v2915 = vunpack.c.l.b16 %v2402
        %v2916 = vunpack.c.l.b16 %v2403
        %v2917 = vunpack.c.l.b16 %v2404
        %v2918 = vunpack.c.l.b16 %v2405
        %v2919 = vunpack.c.l.b16 %v2406
        %v2920 = vunpack.c.l.b16 %v2407
        %v2921 = vunpack.c.l.b16 %v2408
        %v2922 = vunpack.c.l.b16 %v2409
        %v2923 = vunpack.c.l.b16 %v2410
        %v2924 = vunpack.c.l.b16 %v2411
        %v2925 = vunpack.c.l.b16 %v2412
        %v2926 = vunpack.c.l.b16 %v2413
        %v2927 = vunpack.c.l.b16 %v2414
        %v2928 = vunpack.c.l.b16 %v2415
        %v2929 = vunpack.c.l.b16 %v2416
        %v2930 = vunpack.c.l.b16 %v2417
        %v2931 = vunpack.c.l.b16 %v2418
        %v2932 = vunpack.c.l.b16 %v2419
        %v2933 = vunpack.c.l.b16 %v2420
        %v2934 = vunpack.c.l.b16 %v2421
        %v2935 = vunpack.c.l.b16 %v2422
        %v2936 = vunpack.c.l.b16 %v2423
        %v2937 = vunpack.c.l.b16 %v2424
        %v2938 = vunpack.c.l.b16 %v2425
        %v2939 = vunpack.c.l.b16 %v2426
        %v2940 = vunpack.c.l.b16 %v2427
        %v2941 = vunpack.c.l.b16 %v2428
        %v2942 = vunpack.c.l.b16 %v2429
        %v2943 = vunpack.c.l.b16 %v2430
        %v2944 = vunpack.c.l.b16 %v2431
        %v2945 = vunpack.c.l.b16 %v2432
        %v2946 = vunpack.c.l.b16 %v2433
        %v2947 = vunpack.c.l.b16 %v2434
        %v2948 = vunpack.c.l.b16 %v2435
        %v2949 = vunpack.c.l.b16 %v2436
        %v2950 = vunpack.c.l.b16 %v2437
        %v2951 = vunpack.c.l.b16 %v2438
        %v2952 = vunpack.c.l.b16 %v2439
        %v2953 = vunpack.c.l.b16 %v2440
        %v2954 = vunpack.c.l.b16 %v2441
        %v2955 = vunpack.c.l.b16 %v2442
        %v2956 = vunpack.c.l.b16 %v2443
        %v2957 = vunpack.c.l.b16 %v2444
        %v2958 = vunpack.c.l.b16 %v2445
        %v2959 = vunpack.c.l.b16 %v2446
        %v2960 = vunpack.c.l.b16 %v2447
        %v2961 = vunpack.c.l.b16 %v2448
        %v2962 = vunpack.c.l.b16 %v2449
        %v2963 = vunpack.c.l.b16 %v2450
        %v2964 = vunpack.c.l.b16 %v2451
        %v2965 = vunpack.c.l.b16 %v2452
        %v2966 = vunpack.c.l.b16 %v2453
        %v2967 = vunpack.c.l.b16 %v2454
        %v2968 = vunpack.c.l.b16 %v2455
        %v2969 = vunpack.c.l.b16 %v2456
        %v2970 = vunpack.c.l.b16 %v2457
        %v2971 = vunpack.c.l.b16 %v2458
        %v2972 = vunpack.c.l.b16 %v2459
        %v2973 = vunpack.c.l.b16 %v2460
        %v2974 = vunpack.c.l.b16 %v2461
        %v2975 = vunpack.c.l.b16 %v2462
        %v2976 = vunpack.c.l.b16 %v2463
        %v2977 = vunpack.c.l.b16 %v2464
        %v2978 = vunpack.c.l.b16 %v2465
        %v2979 = vunpack.c.l.b16 %v2466
        %v2980 = vunpack.c.l.b16 %v2467
        %v2981 = vunpack.c.l.b16 %v2468
        %v2982 = vunpack.c.l.b16 %v2469
        %v2983 = vunpack.c.l.b16 %v2470
        %v2984 = vunpack.c.l.b16 %v2471
        %v2985 = vunpack.c.l.b16 %v2472
        %v2986 = vunpack.c.l.b16 %v2473
        %v2987 = vunpack.c.l.b16 %v2474
        %v2988 = vunpack.c.l.b16 %v2475
        %v2989 = vunpack.c.l.b16 %v2476
        %v2990 = vunpack.c.l.b16 %v2477
        %v2991 = vunpack.c.l.b16 %v2478
        %v2992 = vunpack.c.l.b16 %v2479
        %v2993 = vunpack.c.l.b16 %v2480
        %v2994 = vunpack.c.l.b16 %v2481
        %v2995 = vunpack.c.l.b16 %v2482
        %v2996 = vunpack.c.l.b16 %v2483
        %v2997 = vunpack.c.l.b16 %v2484
        %v2998 = vunpack.c.l.b16 %v2485
        %v2999 = vunpack.c.l.b16 %v2486
        %v3000 = vunpack.c.l.b16 %v2487
        %v3001 = vunpack.c.l.b16 %v2488
        %v3002 = vunpack.c.l.b16 %v2489
        %v3003 = vunpack.c.l.b16 %v2490
        %v3004 = vunpack.c.l.b16 %v2491
        %v3005 = vunpack.c.l.b16 %v2492
        %v3006 = vunpack.c.l.b16 %v2493
        %v3007 = vunpack.c.l.b16 %v2494
        %v3008 = vunpack.c.l.b16 %v2495
        %v3009 = vunpack.c.l.b16 %v2496
        %v3010 = vunpack.c.l.b16 %v2497
        %v3011 = vunpack.c.l.b16 %v2498
        %v3012 = vunpack.c.l.b16 %v2499
        %v3013 = vunpack.c.l.b16 %v2500
        %v3014 = vunpack.c.l.b16 %v2501
        %v3015 = vunpack.c.l.b16 %v2502
        %v3016 = vunpack.c.l.b16 %v2503
        %v3017 = vunpack.c.l.b16 %v2504
        %v3018 = vunpack.c.l.b16 %v2505
        %v3019 = vunpack.c.l.b16 %v2506
        %v3020 = vunpack.c.l.b16 %v2507
        %v3021 = vunpack.c.l.b16 %v2508
        %v3022 = vunpack.c.l.b16 %v2509
        %v3023 = vunpack.c.l.b16 %v2510
        %v3024 = vunpack.c.l.b16 %v2511
        %v3025 = vunpack.c.l.b16 %v2512
        %v3026 = vunpack.c.l.b16 %v2513
        %v3027 = vunpack.c.l.b16 %v2514
        %v3028 = vunpack.c.l.b16 %v2515
        %v3029 = vunpack.c.l.b16 %v2516
        %v3030 = vpack.c.b16 %v2775, %v2774
        %v3031 = vpack.c.b16 %v2777, %v2776
        %v3032 = vpack.c.b16 %v2779, %v2778
        %v3033 = vpack.c.b16 %v2781, %v2780
        %v3034 = vpack.c.b16 %v2783, %v2782
        %v3035 = vpack.c.b16 %v2785, %v2784
        %v3036 = vpack.c.b16 %v2787, %v2786
        %v3037 = vpack.c.b16 %v2789, %v2788
        %v3038 = vpack.c.b16 %v2791, %v2790
        %v3039 = vpack.c.b16 %v2793, %v2792
        %v3040 = vpack.c.b16 %v2795, %v2794
        %v3041 = vpack.c.b16 %v2797, %v2796
        %v3042 = vpack.c.b16 %v2799, %v2798
        %v3043 = vpack.c.b16 %v2801, %v2800
        %v3044 = vpack.c.b16 %v2803, %v2802
        %v3045 = vpack.c.b16 %v2805, %v2804
        %v3046 = vpack.c.b16 %v2807, %v2806
        %v3047 = vpack.c.b16 %v2809, %v2808
        %v3048 = vpack.c.b16 %v2811, %v2810
        %v3049 = vpack.c.b16 %v2813, %v2812
        %v3050 = vpack.c.b16 %v2815, %v2814
        %v3051 = vpack.c.b16 %v2817, %v2816
        %v3052 = vpack.c.b16 %v2819, %v2818
        %v3053 = vpack.c.b16 %v2821, %v2820
        %v3054 = vpack.c.b16 %v2823, %v2822
        %v3055 = vpack.c.b16 %v2825, %v2824
        %v3056 = vpack.c.b16 %v2827, %v2826
        %v3057 = vpack.c.b16 %v2829, %v2828
        %v3058 = vpack.c.b16 %v2831, %v2830
        %v3059 = vpack.c.b16 %v2833, %v2832
        %v3060 = vpack.c.b16 %v2835, %v2834
        %v3061 = vpack.c.b16 %v2837, %v2836
        %v3062 = vpack.c.b16 %v2839, %v2838
        %v3063 = vpack.c.b16 %v2841, %v2840
        %v3064 = vpack.c.b16 %v2843, %v2842
        %v3065 = vpack.c.b16 %v2845, %v2844
        %v3066 = vpack.c.b16 %v2847, %v2846
        %v3067 = vpack.c.b16 %v2849, %v2848
        %v3068 = vpack.c.b16 %v2851, %v2850
        %v3069 = vpack.c.b16 %v2853, %v2852
        %v3070 = vpack.c.b16 %v2855, %v2854
        %v3071 = vpack.c.b16 %v2857, %v2856
        %v3072 = vpack.c.b16 %v2859, %v2858
        %v3073 = vpack.c.b16 %v2861, %v2860
        %v3074 = vpack.c.b16 %v2863, %v2862
        %v3075 = vpack.c.b16 %v2865, %v2864
        %v3076 = vpack.c.b16 %v2867, %v2866
        %v3077 = vpack.c.b16 %v2869, %v2868
        %v3078 = vpack.c.b16 %v2871, %v2870
        %v3079 = vpack.c.b16 %v2873, %v2872
        %v3080 = vpack.c.b16 %v2875, %v2874
        %v3081 = vpack.c.b16 %v2877, %v2876
        %v3082 = vpack.c.b16 %v2879, %v2878
        %v3083 = vpack.c.b16 %v2881, %v2880
        %v3084 = vpack.c.b16 %v2883, %v2882
        %v3085 = vpack.c.b16 %v2885, %v2884
        %v3086 = vpack.c.b16 %v2887, %v2886
        %v3087 = vpack.c.b16 %v2889, %v2888
        %v3088 = vpack.c.b16 %v2891, %v2890
        %v3089 = vpack.c.b16 %v2893, %v2892
        %v3090 = vpack.c.b16 %v2895, %v2894
        %v3091 = vpack.c.b16 %v2897, %v2896
        %v3092 = vpack.c.b16 %v2899, %v2898
        %v3093 = vpack.c.b16 %v2901, %v2900
        %v3094 = vpack.c.b16 %v2903, %v2902
        %v3095 = vpack.c.b16 %v2905, %v2904
        %v3096 = vpack.c.b16 %v2907, %v2906
        %v3097 = vpack.c.b16 %v2909, %v2908
        %v3098 = vpack.c.b16 %v2911, %v2910
        %v3099 = vpack.c.b16 %v2913, %v2912
        %v3100 = vpack.c.b16 %v2915, %v2914
        %v3101 = vpack.c.b16 %v2917, %v2916
        %v3102 = vpack.c.b16 %v2919, %v2918
        %v3103 = vpack.c.b16 %v2921, %v2920
        %v3104 = vpack.c.b16 %v2923, %v2922
        %v3105 = vpack.c.b16 %v2925, %v2924
        %v3106 = vpack.c.b16 %v2927, %v2926
        %v3107 = vpack.c.b16 %v2929, %v2928
        %v3108 = vpack.c.b16 %v2931, %v2930
        %v3109 = vpack.c.b16 %v2933, %v2932
        %v3110 = vpack.c.b16 %v2935, %v2934
        %v3111 = vpack.c.b16 %v2937, %v2936
        %v3112 = vpack.c.b16 %v2939, %v2938
        %v3113 = vpack.c.b16 %v2941, %v2940
        %v3114 = vpack.c.b16 %v2943, %v2942
        %v3115 = vpack.c.b16 %v2945, %v2944
        %v3116 = vpack.c.b16 %v2947, %v2946
        %v3117 = vpack.c.b16 %v2949, %v2948
        %v3118 = vpack.c.b16 %v2951, %v2950
        %v3119 = vpack.c.b16 %v2953, %v2952
        %v3120 = vpack.c.b16 %v2955, %v2954
        %v3121 = vpack.c.b16 %v2957, %v2956
        %v3122 = vpack.c.b16 %v2959, %v2958
        %v3123 = vpack.c.b16 %v2961, %v2960
        %v3124 = vpack.c.b16 %v2963, %v2962
        %v3125 = vpack.c.b16 %v2965, %v2964
        %v3126 = vpack.c.b16 %v2967, %v2966
        %v3127 = vpack.c.b16 %v2969, %v2968
        %v3128 = vpack.c.b16 %v2971, %v2970
        %v3129 = vpack.c.b16 %v2973, %v2972
        %v3130 = vpack.c.b16 %v2975, %v2974
        %v3131 = vpack.c.b16 %v2977, %v2976
        %v3132 = vpack.c.b16 %v2979, %v2978
        %v3133 = vpack.c.b16 %v2981, %v2980
        %v3134 = vpack.c.b16 %v2983, %v2982
        %v3135 = vpack.c.b16 %v2985, %v2984
        %v3136 = vpack.c.b16 %v2987, %v2986
        %v3137 = vpack.c.b16 %v2989, %v2988
        %v3138 = vpack.c.b16 %v2991, %v2990
        %v3139 = vpack.c.b16 %v2993, %v2992
        %v3140 = vpack.c.b16 %v2995, %v2994
        %v3141 = vpack.c.b16 %v2997, %v2996
        %v3142 = vpack.c.b16 %v2999, %v2998
        %v3143 = vpack.c.b16 %v3001, %v3000
        %v3144 = vpack.c.b16 %v3003, %v3002
        %v3145 = vpack.c.b16 %v3005, %v3004
        %v3146 = vpack.c.b16 %v3007, %v3006
        %v3147 = vpack.c.b16 %v3009, %v3008
        %v3148 = vpack.c.b16 %v3011, %v3010
        %v3149 = vpack.c.b16 %v3013, %v3012
        %v3150 = vpack.c.b16 %v3015, %v3014
        %v3151 = vpack.c.b16 %v3017, %v3016
        %v3152 = vpack.c.b16 %v3019, %v3018
        %v3153 = vpack.c.b16 %v3021, %v3020
        %v3154 = vpack.c.b16 %v3023, %v3022
        %v3155 = vpack.c.b16 %v3025, %v3024
        %v3156 = vpack.c.b16 %v3027, %v3026
        %v3157 = vpack.c.b16 %v3029, %v3028
        %3286 = vmatprep.subr.bf16.mxu0 0
        %3287 = vmatpush1.bf16.msra.mxu0 %v3030
        %3288 = vmatprep.subr.bf16.mxu0 0
        %3289 = vmatpush1.bf16.msra.mxu0 %v3031
        %3290 = vmatprep.subr.bf16.mxu0 0
        %3291 = vmatpush1.bf16.msra.mxu0 %v3032
        %3292 = vmatprep.subr.bf16.mxu0 0
        %3293 = vmatpush1.bf16.msra.mxu0 %v3033
        %3294 = vmatprep.subr.bf16.mxu0 0
        %3295 = vmatpush1.bf16.msra.mxu0 %v3034
        %3296 = vmatprep.subr.bf16.mxu0 0
        %3297 = vmatpush1.bf16.msra.mxu0 %v3035
        %3298 = vmatprep.subr.bf16.mxu0 0
        %3299 = vmatpush1.bf16.msra.mxu0 %v3036
        %3300 = vmatprep.subr.bf16.mxu0 0
        %3301 = vmatpush1.bf16.msra.mxu0 %v3037
        %3302 = vmatprep.subr.bf16.mxu0 0
        %3303 = vmatpush1.bf16.msra.mxu0 %v3038
        %3304 = vmatprep.subr.bf16.mxu0 0
        %3305 = vmatpush1.bf16.msra.mxu0 %v3039
        %3306 = vmatprep.subr.bf16.mxu0 0
        %3307 = vmatpush1.bf16.msra.mxu0 %v3040
        %3308 = vmatprep.subr.bf16.mxu0 0
        %3309 = vmatpush1.bf16.msra.mxu0 %v3041
        %3310 = vmatprep.subr.bf16.mxu0 0
        %3311 = vmatpush1.bf16.msra.mxu0 %v3042
        %3312 = vmatprep.subr.bf16.mxu0 0
        %3313 = vmatpush1.bf16.msra.mxu0 %v3043
        %3314 = vmatprep.subr.bf16.mxu0 0
        %3315 = vmatpush1.bf16.msra.mxu0 %v3044
        %3316 = vmatprep.subr.bf16.mxu0 0
        %3317 = vmatpush1.bf16.msra.mxu0 %v3045
        %3318 = vmatprep.mubr.bf16.mxu0 %v2246
        %3319 = vmatmul.mubr.bf16.gmra.mrb[0].mxu0 %v2245
        %v3320 = vpop.f32.mrb[0].mxu0
        %v3321 = vadd.f32 %v2517, %v3320
        %v3322 = vpop.f32.mrb[0].mxu0
        %v3323 = vpop.f32.mrb[0].mxu0
        %v3324 = vpop.f32.mrb[0].mxu0
        %3325 = vdwg.mxu0
        %3326 = vmatprep.subr.bf16.mxu0 0
        %3327 = vmatpush1.bf16.msra.mxu0 %v3046
        %3328 = vmatprep.subr.bf16.mxu0 0
        %3329 = vmatpush1.bf16.msra.mxu0 %v3047
        %3330 = vmatprep.subr.bf16.mxu0 0
        %3331 = vmatpush1.bf16.msra.mxu0 %v3048
        %3332 = vmatprep.subr.bf16.mxu0 0
        %3333 = vmatpush1.bf16.msra.mxu0 %v3049
        %3334 = vmatprep.subr.bf16.mxu0 0
        %3335 = vmatpush1.bf16.msra.mxu0 %v3050
        %3336 = vmatprep.subr.bf16.mxu0 0
        %3337 = vmatpush1.bf16.msra.mxu0 %v3051
        %3338 = vmatprep.subr.bf16.mxu0 0
        %3339 = vmatpush1.bf16.msra.mxu0 %v3052
        %3340 = vmatprep.subr.bf16.mxu0 0
        %3341 = vmatpush1.bf16.msra.mxu0 %v3053
        %3342 = vmatprep.subr.bf16.mxu0 0
        %3343 = vmatpush1.bf16.msra.mxu0 %v3054
        %3344 = vmatprep.subr.bf16.mxu0 0
        %3345 = vmatpush1.bf16.msra.mxu0 %v3055
        %3346 = vmatprep.subr.bf16.mxu0 0
        %3347 = vmatpush1.bf16.msra.mxu0 %v3056
        %3348 = vmatprep.subr.bf16.mxu0 0
        %3349 = vmatpush1.bf16.msra.mxu0 %v3057
        %3350 = vmatprep.subr.bf16.mxu0 0
        %3351 = vmatpush1.bf16.msra.mxu0 %v3058
        %3352 = vmatprep.subr.bf16.mxu0 0
        %3353 = vmatpush1.bf16.msra.mxu0 %v3059
        %3354 = vmatprep.subr.bf16.mxu0 0
        %3355 = vmatpush1.bf16.msra.mxu0 %v3060
        %3356 = vmatprep.subr.bf16.mxu0 0
        %3357 = vmatpush1.bf16.msra.mxu0 %v3061
        %3358 = vmatprep.mubr.bf16.mxu0 %v2248
        %3359 = vmatmul.mubr.bf16.gmra.mrb[0].mxu0 %v2247
        %v3360 = vpop.f32.mrb[0].mxu0
        %v3361 = vadd.f32 %v3321, %v3360
        %v3362 = vpop.f32.mrb[0].mxu0
        %v3363 = vpop.f32.mrb[0].mxu0
        %v3364 = vpop.f32.mrb[0].mxu0
        %3365 = vdwg.mxu0
        %3366 = vmatprep.subr.bf16.mxu0 0
        %3367 = vmatpush1.bf16.msra.mxu0 %v3062
        %3368 = vmatprep.subr.bf16.mxu0 0
        %3369 = vmatpush1.bf16.msra.mxu0 %v3063
        %3370 = vmatprep.subr.bf16.mxu0 0
        %3371 = vmatpush1.bf16.msra.mxu0 %v3064
        %3372 = vmatprep.subr.bf16.mxu0 0
        %3373 = vmatpush1.bf16.msra.mxu0 %v3065
        %3374 = vmatprep.subr.bf16.mxu0 0
        %3375 = vmatpush1.bf16.msra.mxu0 %v3066
        %3376 = vmatprep.subr.bf16.mxu0 0
        %3377 = vmatpush1.bf16.msra.mxu0 %v3067
        %3378 = vmatprep.subr.bf16.mxu0 0
        %3379 = vmatpush1.bf16.msra.mxu0 %v3068
        %3380 = vmatprep.subr.bf16.mxu0 0
        %3381 = vmatpush1.bf16.msra.mxu0 %v3069
        %3382 = vmatprep.subr.bf16.mxu0 0
        %3383 = vmatpush1.bf16.msra.mxu0 %v3070
        %3384 = vmatprep.subr.bf16.mxu0 0
        %3385 = vmatpush1.bf16.msra.mxu0 %v3071
        %3386 = vmatprep.subr.bf16.mxu0 0
        %3387 = vmatpush1.bf16.msra.mxu0 %v3072
        %3388 = vmatprep.subr.bf16.mxu0 0
        %3389 = vmatpush1.bf16.msra.mxu0 %v3073
        %3390 = vmatprep.subr.bf16.mxu0 0
        %3391 = vmatpush1.bf16.msra.mxu0 %v3074
        %3392 = vmatprep.subr.bf16.mxu0 0
        %3393 = vmatpush1.bf16.msra.mxu0 %v3075
        %3394 = vmatprep.subr.bf16.mxu0 0
        %3395 = vmatpush1.bf16.msra.mxu0 %v3076
        %3396 = vmatprep.subr.bf16.mxu0 0
        %3397 = vmatpush1.bf16.msra.mxu0 %v3077
        %3398 = vmatprep.mubr.bf16.mxu0 %v2250
        %3399 = vmatmul.mubr.bf16.gmra.mrb[0].mxu0 %v2249
        %v3400 = vpop.f32.mrb[0].mxu0
        %v3401 = vadd.f32 %v3361, %v3400
        %v3402 = vpop.f32.mrb[0].mxu0
        %v3403 = vpop.f32.mrb[0].mxu0
        %v3404 = vpop.f32.mrb[0].mxu0
        %3405 = vdwg.mxu0
        %3406 = vmatprep.subr.bf16.mxu0 0
        %3407 = vmatpush1.bf16.msra.mxu0 %v3078
        %3408 = vmatprep.subr.bf16.mxu0 0
        %3409 = vmatpush1.bf16.msra.mxu0 %v3079
        %3410 = vmatprep.subr.bf16.mxu0 0
        %3411 = vmatpush1.bf16.msra.mxu0 %v3080
        %3412 = vmatprep.subr.bf16.mxu0 0
        %3413 = vmatpush1.bf16.msra.mxu0 %v3081
        %3414 = vmatprep.subr.bf16.mxu0 0
        %3415 = vmatpush1.bf16.msra.mxu0 %v3082
        %3416 = vmatprep.subr.bf16.mxu0 0
        %3417 = vmatpush1.bf16.msra.mxu0 %v3083
        %3418 = vmatprep.subr.bf16.mxu0 0
        %3419 = vmatpush1.bf16.msra.mxu0 %v3084
        %3420 = vmatprep.subr.bf16.mxu0 0
        %3421 = vmatpush1.bf16.msra.mxu0 %v3085
        %3422 = vmatprep.subr.bf16.mxu0 0
        %3423 = vmatpush1.bf16.msra.mxu0 %v3086
        %3424 = vmatprep.subr.bf16.mxu0 0
        %3425 = vmatpush1.bf16.msra.mxu0 %v3087
        %3426 = vmatprep.subr.bf16.mxu0 0
        %3427 = vmatpush1.bf16.msra.mxu0 %v3088
        %3428 = vmatprep.subr.bf16.mxu0 0
        %3429 = vmatpush1.bf16.msra.mxu0 %v3089
        %3430 = vmatprep.subr.bf16.mxu0 0
        %3431 = vmatpush1.bf16.msra.mxu0 %v3090
        %3432 = vmatprep.subr.bf16.mxu0 0
        %3433 = vmatpush1.bf16.msra.mxu0 %v3091
        %3434 = vmatprep.subr.bf16.mxu0 0
        %3435 = vmatpush1.bf16.msra.mxu0 %v3092
        %3436 = vmatprep.subr.bf16.mxu0 0
        %3437 = vmatpush1.bf16.msra.mxu0 %v3093
        %3438 = vmatprep.mubr.bf16.mxu0 %v2252
        %3439 = vmatmul.mubr.bf16.gmra.mrb[0].mxu0 %v2251
        %v3440 = vpop.f32.mrb[0].mxu0
        %v3441 = vadd.f32 %v3401, %v3440
        %v3442 = vpop.f32.mrb[0].mxu0
        %v3443 = vpop.f32.mrb[0].mxu0
        %v3444 = vpop.f32.mrb[0].mxu0
        %3445 = vdwg.mxu0
        %3446 = vmatprep.subr.bf16.mxu0 0
        %3447 = vmatpush1.bf16.msra.mxu0 %v3094
        %3448 = vmatprep.subr.bf16.mxu0 0
        %3449 = vmatpush1.bf16.msra.mxu0 %v3095
        %3450 = vmatprep.subr.bf16.mxu0 0
        %3451 = vmatpush1.bf16.msra.mxu0 %v3096
        %3452 = vmatprep.subr.bf16.mxu0 0
        %3453 = vmatpush1.bf16.msra.mxu0 %v3097
        %3454 = vmatprep.subr.bf16.mxu0 0
        %3455 = vmatpush1.bf16.msra.mxu0 %v3098
        %3456 = vmatprep.subr.bf16.mxu0 0
        %3457 = vmatpush1.bf16.msra.mxu0 %v3099
        %3458 = vmatprep.subr.bf16.mxu0 0
        %3459 = vmatpush1.bf16.msra.mxu0 %v3100
        %3460 = vmatprep.subr.bf16.mxu0 0
        %3461 = vmatpush1.bf16.msra.mxu0 %v3101
        %3462 = vmatprep.subr.bf16.mxu0 0
        %3463 = vmatpush1.bf16.msra.mxu0 %v3102
        %3464 = vmatprep.subr.bf16.mxu0 0
        %3465 = vmatpush1.bf16.msra.mxu0 %v3103
        %3466 = vmatprep.subr.bf16.mxu0 0
        %3467 = vmatpush1.bf16.msra.mxu0 %v3104
        %3468 = vmatprep.subr.bf16.mxu0 0
        %3469 = vmatpush1.bf16.msra.mxu0 %v3105
        %3470 = vmatprep.subr.bf16.mxu0 0
        %3471 = vmatpush1.bf16.msra.mxu0 %v3106
        %3472 = vmatprep.subr.bf16.mxu0 0
        %3473 = vmatpush1.bf16.msra.mxu0 %v3107
        %3474 = vmatprep.subr.bf16.mxu0 0
        %3475 = vmatpush1.bf16.msra.mxu0 %v3108
        %3476 = vmatprep.subr.bf16.mxu0 0
        %3477 = vmatpush1.bf16.msra.mxu0 %v3109
        %3478 = vmatprep.mubr.bf16.mxu0 %v2254
        %3479 = vmatmul.mubr.bf16.gmra.mrb[0].mxu0 %v2253
        %v3480 = vpop.f32.mrb[0].mxu0
        %v3481 = vadd.f32 %v3441, %v3480
        %v3482 = vpop.f32.mrb[0].mxu0
        %v3483 = vpop.f32.mrb[0].mxu0
        %v3484 = vpop.f32.mrb[0].mxu0
        %3485 = vdwg.mxu0
        %3486 = vmatprep.subr.bf16.mxu0 0
        %3487 = vmatpush1.bf16.msra.mxu0 %v3110
        %3488 = vmatprep.subr.bf16.mxu0 0
        %3489 = vmatpush1.bf16.msra.mxu0 %v3111
        %3490 = vmatprep.subr.bf16.mxu0 0
        %3491 = vmatpush1.bf16.msra.mxu0 %v3112
        %3492 = vmatprep.subr.bf16.mxu0 0
        %3493 = vmatpush1.bf16.msra.mxu0 %v3113
        %3494 = vmatprep.subr.bf16.mxu0 0
        %3495 = vmatpush1.bf16.msra.mxu0 %v3114
        %3496 = vmatprep.subr.bf16.mxu0 0
        %3497 = vmatpush1.bf16.msra.mxu0 %v3115
        %3498 = vmatprep.subr.bf16.mxu0 0
        %3499 = vmatpush1.bf16.msra.mxu0 %v3116
        %3500 = vmatprep.subr.bf16.mxu0 0
        %3501 = vmatpush1.bf16.msra.mxu0 %v3117
        %3502 = vmatprep.subr.bf16.mxu0 0
        %3503 = vmatpush1.bf16.msra.mxu0 %v3118
        %3504 = vmatprep.subr.bf16.mxu0 0
        %3505 = vmatpush1.bf16.msra.mxu0 %v3119
        %3506 = vmatprep.subr.bf16.mxu0 0
        %3507 = vmatpush1.bf16.msra.mxu0 %v3120
        %3508 = vmatprep.subr.bf16.mxu0 0
        %3509 = vmatpush1.bf16.msra.mxu0 %v3121
        %3510 = vmatprep.subr.bf16.mxu0 0
        %3511 = vmatpush1.bf16.msra.mxu0 %v3122
        %3512 = vmatprep.subr.bf16.mxu0 0
        %3513 = vmatpush1.bf16.msra.mxu0 %v3123
        %3514 = vmatprep.subr.bf16.mxu0 0
        %3515 = vmatpush1.bf16.msra.mxu0 %v3124
        %3516 = vmatprep.subr.bf16.mxu0 0
        %3517 = vmatpush1.bf16.msra.mxu0 %v3125
        %3518 = vmatprep.mubr.bf16.mxu0 %v2256
        %3519 = vmatmul.mubr.bf16.gmra.mrb[0].mxu0 %v2255
        %v3520 = vpop.f32.mrb[0].mxu0
        %v3521 = vadd.f32 %v3481, %v3520
        %v3522 = vpop.f32.mrb[0].mxu0
        %v3523 = vpop.f32.mrb[0].mxu0
        %v3524 = vpop.f32.mrb[0].mxu0
        %3525 = vdwg.mxu0
        %3526 = vmatprep.subr.bf16.mxu0 0
        %3527 = vmatpush1.bf16.msra.mxu0 %v3126
        %3528 = vmatprep.subr.bf16.mxu0 0
        %3529 = vmatpush1.bf16.msra.mxu0 %v3127
        %3530 = vmatprep.subr.bf16.mxu0 0
        %3531 = vmatpush1.bf16.msra.mxu0 %v3128
        %3532 = vmatprep.subr.bf16.mxu0 0
        %3533 = vmatpush1.bf16.msra.mxu0 %v3129
        %3534 = vmatprep.subr.bf16.mxu0 0
        %3535 = vmatpush1.bf16.msra.mxu0 %v3130
        %3536 = vmatprep.subr.bf16.mxu0 0
        %3537 = vmatpush1.bf16.msra.mxu0 %v3131
        %3538 = vmatprep.subr.bf16.mxu0 0
        %3539 = vmatpush1.bf16.msra.mxu0 %v3132
        %3540 = vmatprep.subr.bf16.mxu0 0
        %3541 = vmatpush1.bf16.msra.mxu0 %v3133
        %3542 = vmatprep.subr.bf16.mxu0 0
        %3543 = vmatpush1.bf16.msra.mxu0 %v3134
        %3544 = vmatprep.subr.bf16.mxu0 0
        %3545 = vmatpush1.bf16.msra.mxu0 %v3135
        %3546 = vmatprep.subr.bf16.mxu0 0
        %3547 = vmatpush1.bf16.msra.mxu0 %v3136
        %3548 = vmatprep.subr.bf16.mxu0 0
        %3549 = vmatpush1.bf16.msra.mxu0 %v3137
        %3550 = vmatprep.subr.bf16.mxu0 0
        %3551 = vmatpush1.bf16.msra.mxu0 %v3138
        %3552 = vmatprep.subr.bf16.mxu0 0
        %3553 = vmatpush1.bf16.msra.mxu0 %v3139
        %3554 = vmatprep.subr.bf16.mxu0 0
        %3555 = vmatpush1.bf16.msra.mxu0 %v3140
        %3556 = vmatprep.subr.bf16.mxu0 0
        %3557 = vmatpush1.bf16.msra.mxu0 %v3141
        %3558 = vmatprep.mubr.bf16.mxu0 %v2258
        %3559 = vmatmul.mubr.bf16.gmra.mrb[0].mxu0 %v2257
        %v3560 = vpop.f32.mrb[0].mxu0
        %v3561 = vadd.f32 %v3521, %v3560
        %v3562 = vpop.f32.mrb[0].mxu0
        %v3563 = vpop.f32.mrb[0].mxu0
        %v3564 = vpop.f32.mrb[0].mxu0
        %3565 = vdwg.mxu0
        %3566 = vmatprep.subr.bf16.mxu0 0
        %3567 = vmatpush1.bf16.msra.mxu0 %v3142
        %3568 = vmatprep.subr.bf16.mxu0 0
        %3569 = vmatpush1.bf16.msra.mxu0 %v3143
        %3570 = vmatprep.subr.bf16.mxu0 0
        %3571 = vmatpush1.bf16.msra.mxu0 %v3144
        %3572 = vmatprep.subr.bf16.mxu0 0
        %3573 = vmatpush1.bf16.msra.mxu0 %v3145
        %3574 = vmatprep.subr.bf16.mxu0 0
        %3575 = vmatpush1.bf16.msra.mxu0 %v3146
        %3576 = vmatprep.subr.bf16.mxu0 0
        %3577 = vmatpush1.bf16.msra.mxu0 %v3147
        %3578 = vmatprep.subr.bf16.mxu0 0
        %3579 = vmatpush1.bf16.msra.mxu0 %v3148
        %3580 = vmatprep.subr.bf16.mxu0 0
        %3581 = vmatpush1.bf16.msra.mxu0 %v3149
        %3582 = vmatprep.subr.bf16.mxu0 0
        %3583 = vmatpush1.bf16.msra.mxu0 %v3150
        %3584 = vmatprep.subr.bf16.mxu0 0
        %3585 = vmatpush1.bf16.msra.mxu0 %v3151
        %3586 = vmatprep.subr.bf16.mxu0 0
        %3587 = vmatpush1.bf16.msra.mxu0 %v3152
        %3588 = vmatprep.subr.bf16.mxu0 0
        %3589 = vmatpush1.bf16.msra.mxu0 %v3153
        %3590 = vmatprep.subr.bf16.mxu0 0
        %3591 = vmatpush1.bf16.msra.mxu0 %v3154
        %3592 = vmatprep.subr.bf16.mxu0 0
        %3593 = vmatpush1.bf16.msra.mxu0 %v3155
        %3594 = vmatprep.subr.bf16.mxu0 0
        %3595 = vmatpush1.bf16.msra.mxu0 %v3156
        %3596 = vmatprep.subr.bf16.mxu0 0
        %3597 = vmatpush1.bf16.msra.mxu0 %v3157
        %3598 = vmatprep.mubr.bf16.mxu0 %v2260
        %3599 = vmatmul.mubr.bf16.gmra.mrb[0].mxu0 %v2259
        %v3600 = vpop.f32.mrb[0].mxu0
        %v3601 = vadd.f32 %v3561, %v3600
        %v3602 = vpop.f32.mrb[0].mxu0
        %v3603 = vpop.f32.mrb[0].mxu0
        %v3604 = vpop.f32.mrb[0].mxu0
        %3605 = vdwg.mxu0
        %vm3606 = vcmask 73728
        %3607 = vst.msk [vmem:[%s248] sm:$0x1] %vm3606, %v3601
      $region48: #{cnn3d_forward.5} parent=39 // pred_fallthru
        _
      %p3608 = scmp.lt.s32.totalorder %s20, 1
      %s3609 = scalar_select %p3608, %s20, 1
      %s3610 = scalar_lea.vmem %s5, %s3609
      // Predicated region
      $region49: #{cnn3d_forward.5} parent=39 // pred_check
        %p3611 = pneg %p158
      $region50: #{cnn3d_forward.5} parent=39 // pred_check_branch
        %3613 = sbr.rel (%p3611) target = $region52
      $region51: #{cnn3d_forward.5} parent=39 // pred_region
        _
      $region52: #{cnn3d_forward.5} parent=39 // pred_fallthru
        _
    $region40: #{cnn3d_forward.5} parent=5 // pred_fallthru
      _
    %p3614 = scmp.le.s32.totalorder 2, %s11
    // Predicated region
    $region53: #{cnn3d_forward.5} parent=5 // pred_check
      %p3615 = pneg %p3614
    $region54: #{cnn3d_forward.5} parent=5 // pred_check_branch
      %3617 = sbr.rel (%p3615) target = $region56
    $region55: #{cnn3d_forward.5} parent=5 // pred_region
      %s3618 = ssub.s32 %s11, 2
      // Predicated region
      $region57: #{cnn3d_forward.5} parent=55 // pred_check
        %p3619 = pneg %p164
      $region58: #{cnn3d_forward.5} parent=55 // pred_check_branch
        %3621 = sbr.rel (%p3619) target = $region60
      $region59: #{cnn3d_forward.5} parent=55 // pred_region
        %p3622 = scmp.lt.s32.totalorder %s22, 1
        %s3623 = scalar_select %p3622, %s22, 1
        %s3624 = scalar_lea.vmem %s5, %s3623
      $region60: #{cnn3d_forward.5} parent=55 // pred_fallthru
        _
    $region56: #{cnn3d_forward.5} parent=5 // pred_fallthru
      _
  $region6: #{cnn3d_forward.5} parent=0 // loop_footer
    %s15 = sadd.s32 1, %s11
  $region7: #{cnn3d_forward.5} parent=0 // loop_footer_branch
    %10 = sbr.rel target = $region3
  $region8: #{cnn3d_forward.5} parent=0 // loop_exit
    _

</llo_original>
